<compile_context>
chip_gen: v7x
topology: tpu7x:2x2x1
jax: 0.10.0
libtpu: 0.0.40
codegen_flags: <defaults>
</compile_context>

<pallas_src>
import math

import jax
import jax.numpy as jnp
from jax.experimental import pallas as pl
from jax.experimental.pallas import tpu as pltpu

VMEM_LIMIT = 32 * 1024 * 1024  # safe on v5e/v6e/v7x; tiles below stay well under


# ----------------------------- tiling helpers -----------------------------

def _pick_tile(dim, target, align):
    """Largest multiple of `align` that divides `dim` and is <= target.
    Falls back to the full dim (always legal: block == full array dim)."""
    if dim <= target:
        return dim
    t = (min(target, dim) // align) * align
    while t >= align:
        if dim % t == 0:
            return t
        t -= align
    return dim


# ----------------------------- fused matmul kernel -----------------------------

def _make_fused_mm_kernel(*, has_gamma, has_res, pre_relu, x_scale):
    def kernel(*refs):
        it = iter(refs)
        x_ref = next(it)
        g_ref = next(it) if has_gamma else None
        w_ref = next(it)
        r_ref = next(it) if has_res else None
        o_ref = next(it)
        acc_ref = next(it)

        k = pl.program_id(2)

        @pl.when(k == 0)
        def _init():
            acc_ref[...] = jnp.zeros_like(acc_ref)

        x = x_ref[...].astype(jnp.float32)
        if has_gamma:
            # T5LayerNorm (RMSNorm): no mean subtraction, no bias, eps=1e-6.
            # (K axis is a single block when gamma is fused.)
            var = jnp.mean(x * x, axis=-1, keepdims=True)
            x = x * jax.lax.rsqrt(var + 1e-6) * g_ref[...].astype(jnp.float32)
        if pre_relu:
            x = jnp.maximum(x, 0.0)
        if x_scale is not None:
            x = x * x_scale
        acc_ref[...] += jnp.dot(
            x.astype(jnp.bfloat16), w_ref[...].astype(jnp.bfloat16),
            preferred_element_type=jnp.float32)

        @pl.when(k == pl.num_programs(2) - 1)
        def _finalize():
            y = acc_ref[...]
            if has_res:
                y = y + r_ref[...].astype(jnp.float32)
            o_ref[...] = y.astype(o_ref.dtype)

    return kernel


def fused_matmul(x, w, *, gamma=None, residual=None, pre_relu=False,
                 x_scale=None, tm=256, tn=512, tk=512):
    """y = [residual +] (rmsnorm_gamma? relu? scale?)(x) @ w, tiled & pipelined."""
    M, K = x.shape
    K2, N = w.shape
    assert K == K2
    if gamma is not None:
        tk = K  # the norm needs the whole feature dim in one block
    tm = _pick_tile(M, tm, 8)
    tn = _pick_tile(N, tn, 128)
    tk = _pick_tile(K, tk, 128)
    grid = (M // tm, N // tn, K // tk)

    in_specs = [pl.BlockSpec((tm, tk), lambda i, j, k: (i, k))]
    args = [x]
    if gamma is not None:
        in_specs.append(pl.BlockSpec((1, K), lambda i, j, k: (0, 0)))
        args.append(gamma.reshape(1, K).astype(jnp.float32))
    in_specs.append(pl.BlockSpec((tk, tn), lambda i, j, k: (k, j)))
    args.append(w)
    if residual is not None:
        in_specs.append(pl.BlockSpec((tm, tn), lambda i, j, k: (i, j)))
        args.append(residual)

    kernel = _make_fused_mm_kernel(
        has_gamma=gamma is not None, has_res=residual is not None,
        pre_relu=pre_relu, x_scale=None if x_scale is None else float(x_scale))

    return pl.pallas_call(
        kernel,
        out_shape=jax.ShapeDtypeStruct((M, N), jnp.float32),
        grid=grid,
        in_specs=in_specs,
        out_specs=pl.BlockSpec((tm, tn), lambda i, j, k: (i, j)),
        scratch_shapes=[pltpu.VMEM((tm, tn), jnp.float32)],
        compiler_params=pltpu.CompilerParams(
            dimension_semantics=("parallel", "parallel", "arbitrary"),
            vmem_limit_bytes=VMEM_LIMIT),
    )(*args)


# ----------------------------- attention kernel -----------------------------

def _make_attention_kernel(H, Dk, has_bias):
    def kernel(*refs):
        if has_bias:
            q_ref, k_ref, v_ref, b_ref, o_ref = refs
        else:
            q_ref, k_ref, v_ref, o_ref = refs
        q_all = q_ref[0].astype(jnp.bfloat16)   # (Tq, H*Dk)
        k_all = k_ref[0].astype(jnp.bfloat16)   # (Tk, H*Dk)
        v_all = v_ref[0].astype(jnp.bfloat16)   # (Tk, H*Dk)
        for h in range(H):                       # static unroll over heads
            lo, hi = h * Dk, (h + 1) * Dk
            qh, kh, vh = q_all[:, lo:hi], k_all[:, lo:hi], v_all[:, lo:hi]
            # T5 does NOT scale scores; contract last dims (no explicit K^T).
            s = jax.lax.dot_general(qh, kh, (((1,), (1,)), ((), ())),
                                    preferred_element_type=jnp.float32)
            if has_bias:
                s = s + b_ref[h]                 # rel-pos bias + causal mask
            m = jnp.max(s, axis=-1, keepdims=True)
            p = jnp.exp(s - m)
            p = p * pl.reciprocal(jnp.sum(p, axis=-1, keepdims=True), approx=True)
            ctx = jnp.dot(p.astype(jnp.bfloat16), vh,
                          preferred_element_type=jnp.float32)   # (Tq, Dk)
            o_ref[0, :, lo:hi] = ctx
    return kernel


def pallas_attention(q, k, v, bias, *, n_heads, d_kv):
    """q: (B,Tq,H*Dk), k/v: (B,Tk,H*Dk), bias: (H,Tq,Tk) or None -> (B,Tq,H*Dk)."""
    B, Tq, inner = q.shape
    Tk = k.shape[1]
    has_bias = bias is not None
    in_specs = [pl.BlockSpec((1, Tq, inner), lambda b: (b, 0, 0)),
                pl.BlockSpec((1, Tk, inner), lambda b: (b, 0, 0)),
                pl.BlockSpec((1, Tk, inner), lambda b: (b, 0, 0))]
    args = [q, k, v]
    if has_bias:
        in_specs.append(pl.BlockSpec((n_heads, Tq, Tk), lambda b: (0, 0, 0)))
        args.append(bias)
    return pl.pallas_call(
        _make_attention_kernel(n_heads, d_kv, has_bias),
        out_shape=jax.ShapeDtypeStruct((B, Tq, inner), jnp.float32),
        grid=(B,),
        in_specs=in_specs,
        out_specs=pl.BlockSpec((1, Tq, inner), lambda b: (b, 0, 0)),
        compiler_params=pltpu.CompilerParams(
            dimension_semantics=("parallel",),
            vmem_limit_bytes=VMEM_LIMIT),
    )(*args)


# ----------------------------- T5 glue (plain JAX) -----------------------------

def _relative_position_bucket(relative_position, num_buckets, max_distance):
    # Decoder self-attention: bidirectional=False (HF T5Attention).
    rp = -jnp.minimum(relative_position, 0)
    max_exact = num_buckets // 2
    is_small = rp < max_exact
    rp_large = max_exact + (
        jnp.log(jnp.maximum(rp, 1).astype(jnp.float32) / max_exact)
        / math.log(max_distance / max_exact)
        * (num_buckets - max_exact)
    ).astype(jnp.int32)
    rp_large = jnp.minimum(rp_large, num_buckets - 1)
    return jnp.where(is_small, rp, rp_large)


def compute_self_position_bias(rel_bias_table, Tq, Tk, num_buckets, max_distance):
    ctx = jnp.arange(Tq, dtype=jnp.int32)[:, None]
    mem = jnp.arange(Tk, dtype=jnp.int32)[None, :]
    buckets = _relative_position_bucket(mem - ctx, num_buckets, max_distance)  # (Tq,Tk)
    bias = jnp.transpose(rel_bias_table[buckets], (2, 0, 1))       # (H, Tq, Tk)
    causal = jnp.where(mem <= ctx, 0.0, -1e9)                      # (Tq, Tk)
    return (bias + causal).astype(jnp.float32)                     # (H, Tq, Tk)


def export_t5_forward(params, cfg, input_ids, encoder_hidden_states,
                      final_seq_len, past_key_values=None):
    # TODO(synk): incremental decoding with non-None past_key_values (KV-cache
    # concat) is not implemented; this covers the past_key_values=None path.
    assert past_key_values is None
    B, T = input_ids.shape
    Te = encoder_hidden_states.shape[1]
    D, H, Dk = cfg["d_model"], cfg["n_heads"], cfg["d_kv"]
    inner = H * Dk

    hidden = params["embed"][input_ids].astype(jnp.float32)        # (B, T, D)
    self_bias = compute_self_position_bias(
        params["rel_bias"], T, T, cfg["rel_buckets"], cfg["rel_max_dist"])
    enc2d = encoder_hidden_states.reshape(B * Te, D).astype(jnp.float32)

    pkv = []
    for lp in params["layers"]:
        h2d = hidden.reshape(B * T, D)

        # --- self-attention: fused RMSNorm + (Q|K|V) projection ---
        qkv = fused_matmul(h2d, lp["s_qkv"], gamma=lp["ln_self"])  # (B*T, 3*inner)
        q = qkv[:, :inner].reshape(B, T, inner)
        sk = qkv[:, inner:2 * inner]
        sv = qkv[:, 2 * inner:]
        ctx = pallas_attention(q, sk.reshape(B, T, inner), sv.reshape(B, T, inner),
                               self_bias, n_heads=H, d_kv=Dk)
        hidden = fused_matmul(ctx.reshape(B * T, inner), lp["so"],
                              residual=h2d).reshape(B, T, D)
        sk4 = sk.reshape(B, T, H, Dk).transpose(0, 2, 1, 3)        # (B,H,T,Dk)
        sv4 = sv.reshape(B, T, H, Dk).transpose(0, 2, 1, 3)

        # --- cross-attention: fused RMSNorm + Q, single (K|V) projection, no bias ---
        h2d = hidden.reshape(B * T, D)
        cq = fused_matmul(h2d, lp["cq"], gamma=lp["ln_cross"]).reshape(B, T, inner)
        ckv = fused_matmul(enc2d, lp["c_kv"])                      # (B*Te, 2*inner)
        ck = ckv[:, :inner]
        cv = ckv[:, inner:]
        ctx = pallas_attention(cq, ck.reshape(B, Te, inner), cv.reshape(B, Te, inner),
                               None, n_heads=H, d_kv=Dk)
        hidden = fused_matmul(ctx.reshape(B * T, inner), lp["co"],
                              residual=h2d).reshape(B, T, D)
        ck4 = ck.reshape(B, Te, H, Dk).transpose(0, 2, 1, 3)
        cv4 = cv.reshape(B, Te, H, Dk).transpose(0, 2, 1, 3)

        # --- feed-forward: fused RMSNorm+wi, then fused ReLU+wo+residual ---
        h2d = hidden.reshape(B * T, D)
        ffh = fused_matmul(h2d, lp["wi"], gamma=lp["ln_ff"])       # (B*T, d_ff)
        hidden = fused_matmul(ffh, lp["wo"], pre_relu=True,
                              residual=h2d).reshape(B, T, D)

        pkv.append((sk4, sv4, ck4, cv4))

    # ExportT5 head: final RMSNorm + model_dim**-0.5 scale + lm_head, fused and
    # tiled over the vocab axis so the weight streams through VMEM.
    logits = fused_matmul(hidden.reshape(B * T, D), params["lm_head"],
                          gamma=params["final_ln"], x_scale=D ** -0.5)
    logits = logits.reshape(B, T, cfg["vocab"])

    # ExportT5 wrapper: slice self-attn K/V (j <= 1) to final_seq_len.
    if isinstance(final_seq_len, int):
        L = final_seq_len                       # recommended path: no host sync
    else:
        # TODO(synk): a traced final_seq_len cannot define an output shape; the
        # one-time host read below is unavoidable unless the API returns
        # full-length K/V plus the length instead of sliced tensors.
        L = int(final_seq_len[0])
    pkv = tuple(
        tuple(x[:, :, :L, :] if j <= 1 else x for j, x in enumerate(layer))
        for layer in pkv
    )
    return {"last_hidden_state": logits, "past_key_values": pkv}


# ----------------------------- parameter init -----------------------------

def init_params(key, cfg):
    D, H, Dk, F, V = (cfg["d_model"], cfg["n_heads"], cfg["d_kv"],
                      cfg["d_ff"], cfg["vocab"])
    inner = H * Dk

    def w_bf16(k, shape, scale=0.02):
        return (scale * jax.random.normal(k, shape)).astype(jnp.bfloat16)

    keys = iter(jax.random.split(key, 3 + 7 * cfg["num_layers"]))
    params = {
        "embed": jax.random.normal(next(keys), (V, D)).astype(jnp.float32),
        "rel_bias": (0.02 * jax.random.normal(next(keys), (cfg["rel_buckets"], H))
                     ).astype(jnp.float32),
        "final_ln": jnp.ones((D,), jnp.float32),
        "lm_head": w_bf16(next(keys), (D, V)),     # Linear weight stored [in, out]
        "layers": [],
    }
    for _ in range(cfg["num_layers"]):
        lp = {
            "ln_self": jnp.ones((D,), jnp.float32),
            "s_qkv": w_bf16(next(keys), (D, 3 * inner)),   # concat(Wq|Wk|Wv), [in,out]
            "so": w_bf16(next(keys), (inner, D)),
            "ln_cross": jnp.ones((D,), jnp.float32),
            "cq": w_bf16(next(keys), (D, inner)),
            "c_kv": w_bf16(next(keys), (D, 2 * inner)),    # concat(Wk|Wv), [in,out]
            "co": w_bf16(next(keys), (inner, D)),
            "ln_ff": jnp.ones((D,), jnp.float32),
            "wi": w_bf16(next(keys), (D, F)),
            "wo": w_bf16(next(keys), (F, D)),
        }
        params["layers"].append(lp)
    return params


# ----------------------------- main -----------------------------

if __name__ == "__main__":
    cfg = dict(d_model=32, n_heads=4, d_kv=8, d_ff=64, num_layers=2,
               vocab=128, rel_buckets=8, rel_max_dist=16)

    key = jax.random.PRNGKey(0)
    k_param, k_ids, k_enc = jax.random.split(key, 3)

    B, T, Te = 2, 8, 8
    params = init_params(k_param, cfg)
    input_ids = jax.random.randint(k_ids, (B, T), 0, cfg["vocab"], dtype=jnp.int32)
    encoder_hidden_states = jax.random.normal(k_enc, (B, Te, cfg["d_model"]),
                                              dtype=jnp.float32)
    # final_seq_len passed as a host int (static) so the whole forward can be
    # jitted and no device->host sync is needed for the K/V slice.
    final_seq_len = T

    fwd = jax.jit(lambda p, ids, enc: export_t5_forward(
        p, cfg, ids, enc, final_seq_len, past_key_values=None))
    out = fwd(params, input_ids, encoder_hidden_states)

    jax.block_until_ready(out["last_hidden_state"])
    for layer in out["past_key_values"]:
        for t in layer:
            jax.block_until_ready(t)

    assert out["last_hidden_state"].shape == (B, T, cfg["vocab"])
    assert len(out["past_key_values"]) == cfg["num_layers"]
    assert all(len(l) == 4 for l in out["past_key_values"])
    assert out["past_key_values"][0][0].shape == (B, cfg["n_heads"], T, cfg["d_kv"])
    assert out["past_key_values"][0][2].shape == (B, cfg["n_heads"], Te, cfg["d_kv"])

    print("KERNEL_OK")
</pallas_src>

<mosaic_0001>
module attributes {stable_mosaic.version = 11 : i64} {
  func.func @kernel(%arg0: i32, %arg1: i32, %arg2: i32, %arg3: memref<16x32xf32, #tpu.memory_space<vmem>>, %arg4: memref<32x64xbf16, #tpu.memory_space<vmem>>, %arg5: memref<16x64xf32, #tpu.memory_space<vmem>>, %arg6: memref<16x64xf32, #tpu.memory_space<vmem>>) attributes {dimension_semantics = [#tpu.dimension_semantics<parallel>, #tpu.dimension_semantics<parallel>, #tpu.dimension_semantics<arbitrary>], iteration_bounds = array<i64: 1, 1, 1>, scalar_prefetch = 0 : i64, scratch_operands = 1 : i64, tpu.core_type = #tpu.core_type<tc>, window_params = [{transform_indices = @transform_0, window_bounds = array<i64: 16, 32>}, {transform_indices = @transform_1, window_bounds = array<i64: 32, 64>}, {transform_indices = @transform_2, window_bounds = array<i64: 16, 64>}]} {
    %c0_i32 = arith.constant 0 : i32
    %0 = arith.cmpi eq, %arg2, %c0_i32 : i32
    %1 = arith.extui %0 : i1 to i32
    %c0_i32_0 = arith.constant 0 : i32
    %2 = arith.cmpi ne, %1, %c0_i32_0 : i32
    scf.if %2 {
      %cst_10 = arith.constant 0.000000e+00 : f32
      %13 = vector.broadcast %cst_10 : f32 to vector<16x64xf32>
      %c0_11 = arith.constant 0 : index
      %c0_12 = arith.constant 0 : index
      %14 = vector.load %arg6[%c0_11, %c0_12] : memref<16x64xf32, #tpu.memory_space<vmem>>, vector<16x64xf32>
      tpu.vector_store %arg6[%c0_11, %c0_12], %13 {strides = array<i32>} : memref<16x64xf32, #tpu.memory_space<vmem>>, vector<16x64xf32>,
    } else {
    }
    %c0 = arith.constant 0 : index
    %c0_1 = arith.constant 0 : index
    %3 = vector.load %arg3[%c0, %c0_1] : memref<16x32xf32, #tpu.memory_space<vmem>>, vector<16x32xf32>
    %c0_2 = arith.constant 0 : index
    %c0_3 = arith.constant 0 : index
    %4 = vector.load %arg6[%c0_2, %c0_3] : memref<16x64xf32, #tpu.memory_space<vmem>>, vector<16x64xf32>
    %5 = arith.truncf %3 : vector<16x32xf32> to vector<16x32xbf16>
    %c0_4 = arith.constant 0 : index
    %c0_5 = arith.constant 0 : index
    %6 = vector.load %arg4[%c0_4, %c0_5] : memref<32x64xbf16, #tpu.memory_space<vmem>>, vector<32x64xbf16>
    %cst = arith.constant dense<0.000000e+00> : vector<16x64xf32>
    %7 = tpu.matmul %5, %6, %cst {dimension_numbers = #tpu.dot_dimension_numbers<[1], [0], [0], [1], [0, 0, 1, 1], [], []>} : vector<16x32xbf16>, vector<32x64xbf16>, vector<16x64xf32> -> vector<16x64xf32>
    %8 = arith.addf %4, %7 : vector<16x64xf32>
    %c0_6 = arith.constant 0 : index
    %c0_7 = arith.constant 0 : index
    %9 = vector.load %arg6[%c0_6, %c0_7] : memref<16x64xf32, #tpu.memory_space<vmem>>, vector<16x64xf32>
    tpu.vector_store %arg6[%c0_6, %c0_7], %8 {strides = array<i32>} : memref<16x64xf32, #tpu.memory_space<vmem>>, vector<16x64xf32>,
    %c0_i32_8 = arith.constant 0 : i32
    %10 = arith.cmpi eq, %arg2, %c0_i32_8 : i32
    %11 = arith.extui %10 : i1 to i32
    %c0_i32_9 = arith.constant 0 : i32
    %12 = arith.cmpi ne, %11, %c0_i32_9 : i32
    scf.if %12 {
      %c0_10 = arith.constant 0 : index
      %c0_11 = arith.constant 0 : index
      %13 = vector.load %arg6[%c0_10, %c0_11] : memref<16x64xf32, #tpu.memory_space<vmem>>, vector<16x64xf32>
      %c0_12 = arith.constant 0 : index
      %c0_13 = arith.constant 0 : index
      %14 = vector.load %arg5[%c0_12, %c0_13] : memref<16x64xf32, #tpu.memory_space<vmem>>, vector<16x64xf32>
      tpu.vector_store %arg5[%c0_12, %c0_13], %13 {strides = array<i32>} : memref<16x64xf32, #tpu.memory_space<vmem>>, vector<16x64xf32>,
    } else {
    }
    return
  }
  func.func @transform_0(%arg0: i32, %arg1: i32, %arg2: i32) -> (i32, i32) {
    %c0_i32 = arith.constant 0 : i32
    return %arg0, %arg2 : i32, i32
  }
  func.func @transform_1(%arg0: i32, %arg1: i32, %arg2: i32) -> (i32, i32) {
    %c0_i32 = arith.constant 0 : i32
    return %arg2, %arg1 : i32, i32
  }
  func.func @transform_2(%arg0: i32, %arg1: i32, %arg2: i32) -> (i32, i32) {
    %c0_i32 = arith.constant 0 : i32
    return %arg0, %arg1 : i32, i32
  }
}

module attributes {stable_mosaic.version = 11 : i64} {
  func.func @kernel(%arg0: i32, %arg1: i32, %arg2: i32, %arg3: memref<16x32xf32, #tpu.memory_space<vmem>>, %arg4: memref<1x32xf32, #tpu.memory_space<vmem>>, %arg5: memref<32x96xbf16, #tpu.memory_space<vmem>>, %arg6: memref<16x96xf32, #tpu.memory_space<vmem>>, %arg7: memref<16x96xf32, #tpu.memory_space<vmem>>) attributes {dimension_semantics = [#tpu.dimension_semantics<parallel>, #tpu.dimension_semantics<parallel>, #tpu.dimension_semantics<arbitrary>], iteration_bounds = array<i64: 1, 1, 1>, scalar_prefetch = 0 : i64, scratch_operands = 1 : i64, tpu.core_type = #tpu.core_type<tc>, window_params = [{transform_indices = @transform_0, window_bounds = array<i64: 16, 32>}, {pipeline_mode = #tpu.pipeline_mode<synchronous>, transform_indices = @transform_1, window_bounds = array<i64: 1, 32>}, {transform_indices = @transform_2, window_bounds = array<i64: 32, 96>}, {transform_indices = @transform_3, window_bounds = array<i64: 16, 96>}]} {
    %c0_i32 = arith.constant 0 : i32
    %0 = arith.cmpi eq, %arg2, %c0_i32 : i32
    %1 = arith.extui %0 : i1 to i32
    %c0_i32_0 = arith.constant 0 : i32
    %2 = arith.cmpi ne, %1, %c0_i32_0 : i32
    scf.if %2 {
      %cst_15 = arith.constant 0.000000e+00 : f32
      %26 = vector.broadcast %cst_15 : f32 to vector<16x96xf32>
      %c0_16 = arith.constant 0 : index
      %c0_17 = arith.constant 0 : index
      %27 = vector.load %arg7[%c0_16, %c0_17] : memref<16x96xf32, #tpu.memory_space<vmem>>, vector<16x96xf32>
      tpu.vector_store %arg7[%c0_16, %c0_17], %26 {strides = array<i32>} : memref<16x96xf32, #tpu.memory_space<vmem>>, vector<16x96xf32>,
    } else {
    }
    %c0 = arith.constant 0 : index
    %c0_1 = arith.constant 0 : index
    %3 = vector.load %arg3[%c0, %c0_1] : memref<16x32xf32, #tpu.memory_space<vmem>>, vector<16x32xf32>
    %4 = arith.mulf %3, %3 : vector<16x32xf32>
    %cst = arith.constant dense<0.000000e+00> : vector<16xf32>
    %5 = vector.multi_reduction <add>, %4, %cst [1] : vector<16x32xf32> to vector<16xf32>
    %6 = vector.shape_cast %5 : vector<16xf32> to vector<16x1xf32>
    %cst_2 = arith.constant 3.200000e+01 : f32
    %7 = vector.broadcast %cst_2 : f32 to vector<16x1xf32>
    %8 = arith.divf %6, %7 : vector<16x1xf32>
    %cst_3 = arith.constant 9.99999997E-7 : f32
    %9 = vector.broadcast %cst_3 : f32 to vector<16x1xf32>
    %10 = arith.addf %8, %9 : vector<16x1xf32>
    %11 = math.rsqrt %10 : vector<16x1xf32>
    %12 = vector.broadcast %11 : vector<16x1xf32> to vector<16x32xf32>
    %13 = arith.mulf %3, %12 : vector<16x32xf32>
    %c0_4 = arith.constant 0 : index
    %c0_5 = arith.constant 0 : index
    %14 = vector.load %arg4[%c0_4, %c0_5] : memref<1x32xf32, #tpu.memory_space<vmem>>, vector<1x32xf32>
    %15 = vector.broadcast %14 : vector<1x32xf32> to vector<16x32xf32>
    %16 = arith.mulf %13, %15 : vector<16x32xf32>
    %c0_6 = arith.constant 0 : index
    %c0_7 = arith.constant 0 : index
    %17 = vector.load %arg7[%c0_6, %c0_7] : memref<16x96xf32, #tpu.memory_space<vmem>>, vector<16x96xf32>
    %18 = arith.truncf %16 : vector<16x32xf32> to vector<16x32xbf16>
    %c0_8 = arith.constant 0 : index
    %c0_9 = arith.constant 0 : index
    %19 = vector.load %arg5[%c0_8, %c0_9] : memref<32x96xbf16, #tpu.memory_space<vmem>>, vector<32x96xbf16>
    %cst_10 = arith.constant dense<0.000000e+00> : vector<16x96xf32>
    %20 = tpu.matmul %18, %19, %cst_10 {dimension_numbers = #tpu.dot_dimension_numbers<[1], [0], [0], [1], [0, 0, 1, 1], [], []>} : vector<16x32xbf16>, vector<32x96xbf16>, vector<16x96xf32> -> vector<16x96xf32>
    %21 = arith.addf %17, %20 : vector<16x96xf32>
    %c0_11 = arith.constant 0 : index
    %c0_12 = arith.constant 0 : index
    %22 = vector.load %arg7[%c0_11, %c0_12] : memref<16x96xf32, #tpu.memory_space<vmem>>, vector<16x96xf32>
    tpu.vector_store %arg7[%c0_11, %c0_12], %21 {strides = array<i32>} : memref<16x96xf32, #tpu.memory_space<vmem>>, vector<16x96xf32>,
    %c0_i32_13 = arith.constant 0 : i32
    %23 = arith.cmpi eq, %arg2, %c0_i32_13 : i32
    %24 = arith.extui %23 : i1 to i32
    %c0_i32_14 = arith.constant 0 : i32
    %25 = arith.cmpi ne, %24, %c0_i32_14 : i32
    scf.if %25 {
      %c0_15 = arith.constant 0 : index
      %c0_16 = arith.constant 0 : index
      %26 = vector.load %arg7[%c0_15, %c0_16] : memref<16x96xf32, #tpu.memory_space<vmem>>, vector<16x96xf32>
      %c0_17 = arith.constant 0 : index
      %c0_18 = arith.constant 0 : index
      %27 = vector.load %arg6[%c0_17, %c0_18] : memref<16x96xf32, #tpu.memory_space<vmem>>, vector<16x96xf32>
      tpu.vector_store %arg6[%c0_17, %c0_18], %26 {strides = array<i32>} : memref<16x96xf32, #tpu.memory_space<vmem>>, vector<16x96xf32>,
    } else {
    }
    return
  }
  func.func @transform_0(%arg0: i32, %arg1: i32, %arg2: i32) -> (i32, i32) {
    %c0_i32 = arith.constant 0 : i32
    return %arg0, %arg2 : i32, i32
  }
  func.func @transform_1(%arg0: i32, %arg1: i32, %arg2: i32) -> (i32, i32) {
    %c0_i32 = arith.constant 0 : i32
    %c0_i32_0 = arith.constant 0 : i32
    %c0_i32_1 = arith.constant 0 : i32
    return %c0_i32, %c0_i32_0 : i32, i32
  }
  func.func @transform_2(%arg0: i32, %arg1: i32, %arg2: i32) -> (i32, i32) {
    %c0_i32 = arith.constant 0 : i32
    return %arg2, %arg1 : i32, i32
  }
  func.func @transform_3(%arg0: i32, %arg1: i32, %arg2: i32) -> (i32, i32) {
    %c0_i32 = arith.constant 0 : i32
    return %arg0, %arg1 : i32, i32
  }
}

module attributes {stable_mosaic.version = 11 : i64} {
  func.func @kernel(%arg0: i32, %arg1: i32, %arg2: i32, %arg3: memref<16x32xf32, #tpu.memory_space<vmem>>, %arg4: memref<32x32xbf16, #tpu.memory_space<vmem>>, %arg5: memref<16x32xf32, #tpu.memory_space<vmem>>, %arg6: memref<16x32xf32, #tpu.memory_space<vmem>>, %arg7: memref<16x32xf32, #tpu.memory_space<vmem>>) attributes {dimension_semantics = [#tpu.dimension_semantics<parallel>, #tpu.dimension_semantics<parallel>, #tpu.dimension_semantics<arbitrary>], iteration_bounds = array<i64: 1, 1, 1>, scalar_prefetch = 0 : i64, scratch_operands = 1 : i64, tpu.core_type = #tpu.core_type<tc>, window_params = [{transform_indices = @transform_0, window_bounds = array<i64: 16, 32>}, {transform_indices = @transform_1, window_bounds = array<i64: 32, 32>}, {transform_indices = @transform_2, window_bounds = array<i64: 16, 32>}, {transform_indices = @transform_3, window_bounds = array<i64: 16, 32>}]} {
    %c0_i32 = arith.constant 0 : i32
    %0 = arith.cmpi eq, %arg2, %c0_i32 : i32
    %1 = arith.extui %0 : i1 to i32
    %c0_i32_0 = arith.constant 0 : i32
    %2 = arith.cmpi ne, %1, %c0_i32_0 : i32
    scf.if %2 {
      %cst_10 = arith.constant 0.000000e+00 : f32
      %13 = vector.broadcast %cst_10 : f32 to vector<16x32xf32>
      %c0_11 = arith.constant 0 : index
      %c0_12 = arith.constant 0 : index
      %14 = vector.load %arg7[%c0_11, %c0_12] : memref<16x32xf32, #tpu.memory_space<vmem>>, vector<16x32xf32>
      tpu.vector_store %arg7[%c0_11, %c0_12], %13 {strides = array<i32>} : memref<16x32xf32, #tpu.memory_space<vmem>>, vector<16x32xf32>,
    } else {
    }
    %c0 = arith.constant 0 : index
    %c0_1 = arith.constant 0 : index
    %3 = vector.load %arg3[%c0, %c0_1] : memref<16x32xf32, #tpu.memory_space<vmem>>, vector<16x32xf32>
    %c0_2 = arith.constant 0 : index
    %c0_3 = arith.constant 0 : index
    %4 = vector.load %arg7[%c0_2, %c0_3] : memref<16x32xf32, #tpu.memory_space<vmem>>, vector<16x32xf32>
    %5 = arith.truncf %3 : vector<16x32xf32> to vector<16x32xbf16>
    %c0_4 = arith.constant 0 : index
    %c0_5 = arith.constant 0 : index
    %6 = vector.load %arg4[%c0_4, %c0_5] : memref<32x32xbf16, #tpu.memory_space<vmem>>, vector<32x32xbf16>
    %cst = arith.constant dense<0.000000e+00> : vector<16x32xf32>
    %7 = tpu.matmul %5, %6, %cst {dimension_numbers = #tpu.dot_dimension_numbers<[1], [0], [0], [1], [0, 0, 1, 1], [], []>} : vector<16x32xbf16>, vector<32x32xbf16>, vector<16x32xf32> -> vector<16x32xf32>
    %8 = arith.addf %4, %7 : vector<16x32xf32>
    %c0_6 = arith.constant 0 : index
    %c0_7 = arith.constant 0 : index
    %9 = vector.load %arg7[%c0_6, %c0_7] : memref<16x32xf32, #tpu.memory_space<vmem>>, vector<16x32xf32>
    tpu.vector_store %arg7[%c0_6, %c0_7], %8 {strides = array<i32>} : memref<16x32xf32, #tpu.memory_space<vmem>>, vector<16x32xf32>,
    %c0_i32_8 = arith.constant 0 : i32
    %10 = arith.cmpi eq, %arg2, %c0_i32_8 : i32
    %11 = arith.extui %10 : i1 to i32
    %c0_i32_9 = arith.constant 0 : i32
    %12 = arith.cmpi ne, %11, %c0_i32_9 : i32
    scf.if %12 {
      %c0_10 = arith.constant 0 : index
      %c0_11 = arith.constant 0 : index
      %13 = vector.load %arg7[%c0_10, %c0_11] : memref<16x32xf32, #tpu.memory_space<vmem>>, vector<16x32xf32>
      %c0_12 = arith.constant 0 : index
      %c0_13 = arith.constant 0 : index
      %14 = vector.load %arg5[%c0_12, %c0_13] : memref<16x32xf32, #tpu.memory_space<vmem>>, vector<16x32xf32>
      %15 = arith.addf %13, %14 : vector<16x32xf32>
      %c0_14 = arith.constant 0 : index
      %c0_15 = arith.constant 0 : index
      %16 = vector.load %arg6[%c0_14, %c0_15] : memref<16x32xf32, #tpu.memory_space<vmem>>, vector<16x32xf32>
      tpu.vector_store %arg6[%c0_14, %c0_15], %15 {strides = array<i32>} : memref<16x32xf32, #tpu.memory_space<vmem>>, vector<16x32xf32>,
    } else {
    }
    return
  }
  func.func @transform_0(%arg0: i32, %arg1: i32, %arg2: i32) -> (i32, i32) {
    %c0_i32 = arith.constant 0 : i32
    return %arg0, %arg2 : i32, i32
  }
  func.func @transform_1(%arg0: i32, %arg1: i32, %arg2: i32) -> (i32, i32) {
    %c0_i32 = arith.constant 0 : i32
    return %arg2, %arg1 : i32, i32
  }
  func.func @transform_2(%arg0: i32, %arg1: i32, %arg2: i32) -> (i32, i32) {
    %c0_i32 = arith.constant 0 : i32
    return %arg0, %arg1 : i32, i32
  }
  func.func @transform_3(%arg0: i32, %arg1: i32, %arg2: i32) -> (i32, i32) {
    %c0_i32 = arith.constant 0 : i32
    return %arg0, %arg1 : i32, i32
  }
}

module attributes {stable_mosaic.version = 11 : i64} {
  func.func @kernel(%arg0: i32, %arg1: memref<1x8x32xf32, #tpu.memory_space<vmem>>, %arg2: memref<1x8x32xf32, #tpu.memory_space<vmem>>, %arg3: memref<1x8x32xf32, #tpu.memory_space<vmem>>, %arg4: memref<4x8x8xf32, #tpu.memory_space<vmem>>, %arg5: memref<1x8x32xf32, #tpu.memory_space<vmem>>) attributes {dimension_semantics = [#tpu.dimension_semantics<parallel>], iteration_bounds = array<i64: 2>, scalar_prefetch = 0 : i64, scratch_operands = 0 : i64, tpu.core_type = #tpu.core_type<tc>, window_params = [{transform_indices = @transform_0, window_bounds = array<i64: 1, 8, 32>}, {transform_indices = @transform_1, window_bounds = array<i64: 1, 8, 32>}, {transform_indices = @transform_2, window_bounds = array<i64: 1, 8, 32>}, {pipeline_mode = #tpu.pipeline_mode<synchronous>, transform_indices = @transform_3, window_bounds = array<i64: 4, 8, 8>}, {transform_indices = @transform_4, window_bounds = array<i64: 1, 8, 32>}]} {
    %c0 = arith.constant 0 : index
    %c0_0 = arith.constant 0 : index
    %c0_1 = arith.constant 0 : index
    %0 = vector.load %arg1[%c0, %c0_0, %c0_1] : memref<1x8x32xf32, #tpu.memory_space<vmem>>, vector<1x8x32xf32>
    %1 = vector.shape_cast %0 : vector<1x8x32xf32> to vector<8x32xf32>
    %2 = arith.truncf %1 : vector<8x32xf32> to vector<8x32xbf16>
    %c0_2 = arith.constant 0 : index
    %c0_3 = arith.constant 0 : index
    %c0_4 = arith.constant 0 : index
    %3 = vector.load %arg2[%c0_2, %c0_3, %c0_4] : memref<1x8x32xf32, #tpu.memory_space<vmem>>, vector<1x8x32xf32>
    %4 = vector.shape_cast %3 : vector<1x8x32xf32> to vector<8x32xf32>
    %5 = arith.truncf %4 : vector<8x32xf32> to vector<8x32xbf16>
    %c0_5 = arith.constant 0 : index
    %c0_6 = arith.constant 0 : index
    %c0_7 = arith.constant 0 : index
    %6 = vector.load %arg3[%c0_5, %c0_6, %c0_7] : memref<1x8x32xf32, #tpu.memory_space<vmem>>, vector<1x8x32xf32>
    %7 = vector.shape_cast %6 : vector<1x8x32xf32> to vector<8x32xf32>
    %8 = arith.truncf %7 : vector<8x32xf32> to vector<8x32xbf16>
    %9 = vector.extract_strided_slice %2 {offsets = [0, 0], sizes = [8, 8], strides = [1, 1]} : vector<8x32xbf16> to vector<8x8xbf16>
    %10 = vector.extract_strided_slice %5 {offsets = [0, 0], sizes = [8, 8], strides = [1, 1]} : vector<8x32xbf16> to vector<8x8xbf16>
    %11 = vector.extract_strided_slice %8 {offsets = [0, 0], sizes = [8, 8], strides = [1, 1]} : vector<8x32xbf16> to vector<8x8xbf16>
    %cst = arith.constant dense<0.000000e+00> : vector<8x8xf32>
    %12 = tpu.matmul %9, %10, %cst {dimension_numbers = #tpu.dot_dimension_numbers<[1], [1], [0], [0], [0, 0, 1, 0], [], []>} : vector<8x8xbf16>, vector<8x8xbf16>, vector<8x8xf32> -> vector<8x8xf32>
    %c0_8 = arith.constant 0 : index
    %c0_9 = arith.constant 0 : index
    %c0_10 = arith.constant 0 : index
    %13 = vector.load %arg4[%c0_8, %c0_9, %c0_10] : memref<4x8x8xf32, #tpu.memory_space<vmem>>, vector<1x8x8xf32>
    %14 = vector.shape_cast %13 : vector<1x8x8xf32> to vector<8x8xf32>
    %15 = arith.addf %12, %14 : vector<8x8xf32>
    %cst_11 = arith.constant dense<0xFF800000> : vector<8xf32>
    %16 = vector.multi_reduction <maximumf>, %15, %cst_11 [1] : vector<8x8xf32> to vector<8xf32>
    %17 = vector.shape_cast %16 : vector<8xf32> to vector<8x1xf32>
    %18 = vector.broadcast %17 : vector<8x1xf32> to vector<8x8xf32>
    %19 = arith.subf %15, %18 : vector<8x8xf32>
    %20 = math.exp %19 : vector<8x8xf32>
    %cst_12 = arith.constant dense<0.000000e+00> : vector<8xf32>
    %21 = vector.multi_reduction <add>, %20, %cst_12 [1] : vector<8x8xf32> to vector<8xf32>
    %22 = vector.shape_cast %21 : vector<8xf32> to vector<8x1xf32>
    %23 = tpu.reciprocal %22 {approx = true} : vector<8x1xf32> -> vector<8x1xf32>
    %24 = vector.broadcast %23 : vector<8x1xf32> to vector<8x8xf32>
    %25 = arith.mulf %20, %24 : vector<8x8xf32>
    %26 = arith.truncf %25 : vector<8x8xf32> to vector<8x8xbf16>
    %cst_13 = arith.constant dense<0.000000e+00> : vector<8x8xf32>
    %27 = tpu.matmul %26, %11, %cst_13 {dimension_numbers = #tpu.dot_dimension_numbers<[1], [0], [0], [1], [0, 0, 1, 1], [], []>} : vector<8x8xbf16>, vector<8x8xbf16>, vector<8x8xf32> -> vector<8x8xf32>
    %c0_14 = arith.constant 0 : index
    %c0_15 = arith.constant 0 : index
    %c0_16 = arith.constant 0 : index
    %28 = vector.load %arg5[%c0_14, %c0_15, %c0_16] : memref<1x8x32xf32, #tpu.memory_space<vmem>>, vector<1x8x8xf32>
    %29 = vector.shape_cast %28 : vector<1x8x8xf32> to vector<8x8xf32>
    %30 = vector.shape_cast %27 : vector<8x8xf32> to vector<1x8x8xf32>
    tpu.vector_store %arg5[%c0_14, %c0_15, %c0_16], %30 {strides = array<i32>} : memref<1x8x32xf32, #tpu.memory_space<vmem>>, vector<1x8x8xf32>,
    %31 = vector.extract_strided_slice %2 {offsets = [0, 8], sizes = [8, 8], strides = [1, 1]} : vector<8x32xbf16> to vector<8x8xbf16>
    %32 = vector.extract_strided_slice %5 {offsets = [0, 8], sizes = [8, 8], strides = [1, 1]} : vector<8x32xbf16> to vector<8x8xbf16>
    %33 = vector.extract_strided_slice %8 {offsets = [0, 8], sizes = [8, 8], strides = [1, 1]} : vector<8x32xbf16> to vector<8x8xbf16>
    %cst_17 = arith.constant dense<0.000000e+00> : vector<8x8xf32>
    %34 = tpu.matmul %31, %32, %cst_17 {dimension_numbers = #tpu.dot_dimension_numbers<[1], [1], [0], [0], [0, 0, 1, 0], [], []>} : vector<8x8xbf16>, vector<8x8xbf16>, vector<8x8xf32> -> vector<8x8xf32>
    %c1 = arith.constant 1 : index
    %c0_18 = arith.constant 0 : index
    %c0_19 = arith.constant 0 : index
    %35 = vector.load %arg4[%c1, %c0_18, %c0_19] : memref<4x8x8xf32, #tpu.memory_space<vmem>>, vector<1x8x8xf32>
    %36 = vector.shape_cast %35 : vector<1x8x8xf32> to vector<8x8xf32>
    %37 = arith.addf %34, %36 : vector<8x8xf32>
    %cst_20 = arith.constant dense<0xFF800000> : vector<8xf32>
    %38 = vector.multi_reduction <maximumf>, %37, %cst_20 [1] : vector<8x8xf32> to vector<8xf32>
    %39 = vector.shape_cast %38 : vector<8xf32> to vector<8x1xf32>
    %40 = vector.broadcast %39 : vector<8x1xf32> to vector<8x8xf32>
    %41 = arith.subf %37, %40 : vector<8x8xf32>
    %42 = math.exp %41 : vector<8x8xf32>
    %cst_21 = arith.constant dense<0.000000e+00> : vector<8xf32>
    %43 = vector.multi_reduction <add>, %42, %cst_21 [1] : vector<8x8xf32> to vector<8xf32>
    %44 = vector.shape_cast %43 : vector<8xf32> to vector<8x1xf32>
    %45 = tpu.reciprocal %44 {approx = true} : vector<8x1xf32> -> vector<8x1xf32>
    %46 = vector.broadcast %45 : vector<8x1xf32> to vector<8x8xf32>
    %47 = arith.mulf %42, %46 : vector<8x8xf32>
    %48 = arith.truncf %47 : vector<8x8xf32> to vector<8x8xbf16>
    %cst_22 = arith.constant dense<0.000000e+00> : vector<8x8xf32>
    %49 = tpu.matmul %48, %33, %cst_22 {dimension_numbers = #tpu.dot_dimension_numbers<[1], [0], [0], [1], [0, 0, 1, 1], [], []>} : vector<8x8xbf16>, vector<8x8xbf16>, vector<8x8xf32> -> vector<8x8xf32>
    %c0_23 = arith.constant 0 : index
    %c0_24 = arith.constant 0 : index
    %c8 = arith.constant 8 : index
    %50 = vector.load %arg5[%c0_23, %c0_24, %c8] : memref<1x8x32xf32, #tpu.memory_space<vmem>>, vector<1x8x8xf32>
    %51 = vector.shape_cast %50 : vector<1x8x8xf32> to vector<8x8xf32>
    %52 = vector.shape_cast %49 : vector<8x8xf32> to vector<1x8x8xf32>
    tpu.vector_store %arg5[%c0_23, %c0_24, %c8], %52 {strides = array<i32>} : memref<1x8x32xf32, #tpu.memory_space<vmem>>, vector<1x8x8xf32>,
    %53 = vector.extract_strided_slice %2 {offsets = [0, 16], sizes = [8, 8], strides = [1, 1]} : vector<8x32xbf16> to vector<8x8xbf16>
    %54 = vector.extract_strided_slice %5 {offsets = [0, 16], sizes = [8, 8], strides = [1, 1]} : vector<8x32xbf16> to vector<8x8xbf16>
    %55 = vector.extract_strided_slice %8 {offsets = [0, 16], sizes = [8, 8], strides = [1, 1]} : vector<8x32xbf16> to vector<8x8xbf16>
    %cst_25 = arith.constant dense<0.000000e+00> : vector<8x8xf32>
    %56 = tpu.matmul %53, %54, %cst_25 {dimension_numbers = #tpu.dot_dimension_numbers<[1], [1], [0], [0], [0, 0, 1, 0], [], []>} : vector<8x8xbf16>, vector<8x8xbf16>, vector<8x8xf32> -> vector<8x8xf32>
    %c2 = arith.constant 2 : index
    %c0_26 = arith.constant 0 : index
    %c0_27 = arith.constant 0 : index
    %57 = vector.load %arg4[%c2, %c0_26, %c0_27] : memref<4x8x8xf32, #tpu.memory_space<vmem>>, vector<1x8x8xf32>
    %58 = vector.shape_cast %57 : vector<1x8x8xf32> to vector<8x8xf32>
    %59 = arith.addf %56, %58 : vector<8x8xf32>
    %cst_28 = arith.constant dense<0xFF800000> : vector<8xf32>
    %60 = vector.multi_reduction <maximumf>, %59, %cst_28 [1] : vector<8x8xf32> to vector<8xf32>
    %61 = vector.shape_cast %60 : vector<8xf32> to vector<8x1xf32>
    %62 = vector.broadcast %61 : vector<8x1xf32> to vector<8x8xf32>
    %63 = arith.subf %59, %62 : vector<8x8xf32>
    %64 = math.exp %63 : vector<8x8xf32>
    %cst_29 = arith.constant dense<0.000000e+00> : vector<8xf32>
    %65 = vector.multi_reduction <add>, %64, %cst_29 [1] : vector<8x8xf32> to vector<8xf32>
    %66 = vector.shape_cast %65 : vector<8xf32> to vector<8x1xf32>
    %67 = tpu.reciprocal %66 {approx = true} : vector<8x1xf32> -> vector<8x1xf32>
    %68 = vector.broadcast %67 : vector<8x1xf32> to vector<8x8xf32>
    %69 = arith.mulf %64, %68 : vector<8x8xf32>
    %70 = arith.truncf %69 : vector<8x8xf32> to vector<8x8xbf16>
    %cst_30 = arith.constant dense<0.000000e+00> : vector<8x8xf32>
    %71 = tpu.matmul %70, %55, %cst_30 {dimension_numbers = #tpu.dot_dimension_numbers<[1], [0], [0], [1], [0, 0, 1, 1], [], []>} : vector<8x8xbf16>, vector<8x8xbf16>, vector<8x8xf32> -> vector<8x8xf32>
    %c0_31 = arith.constant 0 : index
    %c0_32 = arith.constant 0 : index
    %c16 = arith.constant 16 : index
    %72 = vector.load %arg5[%c0_31, %c0_32, %c16] : memref<1x8x32xf32, #tpu.memory_space<vmem>>, vector<1x8x8xf32>
    %73 = vector.shape_cast %72 : vector<1x8x8xf32> to vector<8x8xf32>
    %74 = vector.shape_cast %71 : vector<8x8xf32> to vector<1x8x8xf32>
    tpu.vector_store %arg5[%c0_31, %c0_32, %c16], %74 {strides = array<i32>} : memref<1x8x32xf32, #tpu.memory_space<vmem>>, vector<1x8x8xf32>,
    %75 = vector.extract_strided_slice %2 {offsets = [0, 24], sizes = [8, 8], strides = [1, 1]} : vector<8x32xbf16> to vector<8x8xbf16>
    %76 = vector.extract_strided_slice %5 {offsets = [0, 24], sizes = [8, 8], strides = [1, 1]} : vector<8x32xbf16> to vector<8x8xbf16>
    %77 = vector.extract_strided_slice %8 {offsets = [0, 24], sizes = [8, 8], strides = [1, 1]} : vector<8x32xbf16> to vector<8x8xbf16>
    %cst_33 = arith.constant dense<0.000000e+00> : vector<8x8xf32>
    %78 = tpu.matmul %75, %76, %cst_33 {dimension_numbers = #tpu.dot_dimension_numbers<[1], [1], [0], [0], [0, 0, 1, 0], [], []>} : vector<8x8xbf16>, vector<8x8xbf16>, vector<8x8xf32> -> vector<8x8xf32>
    %c3 = arith.constant 3 : index
    %c0_34 = arith.constant 0 : index
    %c0_35 = arith.constant 0 : index
    %79 = vector.load %arg4[%c3, %c0_34, %c0_35] : memref<4x8x8xf32, #tpu.memory_space<vmem>>, vector<1x8x8xf32>
    %80 = vector.shape_cast %79 : vector<1x8x8xf32> to vector<8x8xf32>
    %81 = arith.addf %78, %80 : vector<8x8xf32>
    %cst_36 = arith.constant dense<0xFF800000> : vector<8xf32>
    %82 = vector.multi_reduction <maximumf>, %81, %cst_36 [1] : vector<8x8xf32> to vector<8xf32>
    %83 = vector.shape_cast %82 : vector<8xf32> to vector<8x1xf32>
    %84 = vector.broadcast %83 : vector<8x1xf32> to vector<8x8xf32>
    %85 = arith.subf %81, %84 : vector<8x8xf32>
    %86 = math.exp %85 : vector<8x8xf32>
    %cst_37 = arith.constant dense<0.000000e+00> : vector<8xf32>
    %87 = vector.multi_reduction <add>, %86, %cst_37 [1] : vector<8x8xf32> to vector<8xf32>
    %88 = vector.shape_cast %87 : vector<8xf32> to vector<8x1xf32>
    %89 = tpu.reciprocal %88 {approx = true} : vector<8x1xf32> -> vector<8x1xf32>
    %90 = vector.broadcast %89 : vector<8x1xf32> to vector<8x8xf32>
    %91 = arith.mulf %86, %90 : vector<8x8xf32>
    %92 = arith.truncf %91 : vector<8x8xf32> to vector<8x8xbf16>
    %cst_38 = arith.constant dense<0.000000e+00> : vector<8x8xf32>
    %93 = tpu.matmul %92, %77, %cst_38 {dimension_numbers = #tpu.dot_dimension_numbers<[1], [0], [0], [1], [0, 0, 1, 1], [], []>} : vector<8x8xbf16>, vector<8x8xbf16>, vector<8x8xf32> -> vector<8x8xf32>
    %c0_39 = arith.constant 0 : index
    %c0_40 = arith.constant 0 : index
    %c24 = arith.constant 24 : index
    %94 = vector.load %arg5[%c0_39, %c0_40, %c24] : memref<1x8x32xf32, #tpu.memory_space<vmem>>, vector<1x8x8xf32>
    %95 = vector.shape_cast %94 : vector<1x8x8xf32> to vector<8x8xf32>
    %96 = vector.shape_cast %93 : vector<8x8xf32> to vector<1x8x8xf32>
    tpu.vector_store %arg5[%c0_39, %c0_40, %c24], %96 {strides = array<i32>} : memref<1x8x32xf32, #tpu.memory_space<vmem>>, vector<1x8x8xf32>,
    return
  }
  func.func @transform_0(%arg0: i32) -> (i32, i32, i32) {
    %c0_i32 = arith.constant 0 : i32
    %c0_i32_0 = arith.constant 0 : i32
    %c0_i32_1 = arith.constant 0 : i32
    return %arg0, %c0_i32, %c0_i32_0 : i32, i32, i32
  }
  func.func @transform_1(%arg0: i32) -> (i32, i32, i32) {
    %c0_i32 = arith.constant 0 : i32
    %c0_i32_0 = arith.constant 0 : i32
    %c0_i32_1 = arith.constant 0 : i32
    return %arg0, %c0_i32, %c0_i32_0 : i32, i32, i32
  }
  func.func @transform_2(%arg0: i32) -> (i32, i32, i32) {
    %c0_i32 = arith.constant 0 : i32
    %c0_i32_0 = arith.constant 0 : i32
    %c0_i32_1 = arith.constant 0 : i32
    return %arg0, %c0_i32, %c0_i32_0 : i32, i32, i32
  }
  func.func @transform_3(%arg0: i32) -> (i32, i32, i32) {
    %c0_i32 = arith.constant 0 : i32
    %c0_i32_0 = arith.constant 0 : i32
    %c0_i32_1 = arith.constant 0 : i32
    %c0_i32_2 = arith.constant 0 : i32
    return %c0_i32, %c0_i32_0, %c0_i32_1 : i32, i32, i32
  }
  func.func @transform_4(%arg0: i32) -> (i32, i32, i32) {
    %c0_i32 = arith.constant 0 : i32
    %c0_i32_0 = arith.constant 0 : i32
    %c0_i32_1 = arith.constant 0 : i32
    return %arg0, %c0_i32, %c0_i32_0 : i32, i32, i32
  }
}

module attributes {stable_mosaic.version = 11 : i64} {
  func.func @kernel(%arg0: i32, %arg1: i32, %arg2: i32, %arg3: memref<16x32xf32, #tpu.memory_space<vmem>>, %arg4: memref<1x32xf32, #tpu.memory_space<vmem>>, %arg5: memref<32x32xbf16, #tpu.memory_space<vmem>>, %arg6: memref<16x32xf32, #tpu.memory_space<vmem>>, %arg7: memref<16x32xf32, #tpu.memory_space<vmem>>) attributes {dimension_semantics = [#tpu.dimension_semantics<parallel>, #tpu.dimension_semantics<parallel>, #tpu.dimension_semantics<arbitrary>], iteration_bounds = array<i64: 1, 1, 1>, scalar_prefetch = 0 : i64, scratch_operands = 1 : i64, tpu.core_type = #tpu.core_type<tc>, window_params = [{transform_indices = @transform_0, window_bounds = array<i64: 16, 32>}, {pipeline_mode = #tpu.pipeline_mode<synchronous>, transform_indices = @transform_1, window_bounds = array<i64: 1, 32>}, {transform_indices = @transform_2, window_bounds = array<i64: 32, 32>}, {transform_indices = @transform_3, window_bounds = array<i64: 16, 32>}]} {
    %c0_i32 = arith.constant 0 : i32
    %0 = arith.cmpi eq, %arg2, %c0_i32 : i32
    %1 = arith.extui %0 : i1 to i32
    %c0_i32_0 = arith.constant 0 : i32
    %2 = arith.cmpi ne, %1, %c0_i32_0 : i32
    scf.if %2 {
      %cst_15 = arith.constant 0.000000e+00 : f32
      %26 = vector.broadcast %cst_15 : f32 to vector<16x32xf32>
      %c0_16 = arith.constant 0 : index
      %c0_17 = arith.constant 0 : index
      %27 = vector.load %arg7[%c0_16, %c0_17] : memref<16x32xf32, #tpu.memory_space<vmem>>, vector<16x32xf32>
      tpu.vector_store %arg7[%c0_16, %c0_17], %26 {strides = array<i32>} : memref<16x32xf32, #tpu.memory_space<vmem>>, vector<16x32xf32>,
    } else {
    }
    %c0 = arith.constant 0 : index
    %c0_1 = arith.constant 0 : index
    %3 = vector.load %arg3[%c0, %c0_1] : memref<16x32xf32, #tpu.memory_space<vmem>>, vector<16x32xf32>
    %4 = arith.mulf %3, %3 : vector<16x32xf32>
    %cst = arith.constant dense<0.000000e+00> : vector<16xf32>
    %5 = vector.multi_reduction <add>, %4, %cst [1] : vector<16x32xf32> to vector<16xf32>
    %6 = vector.shape_cast %5 : vector<16xf32> to vector<16x1xf32>
    %cst_2 = arith.constant 3.200000e+01 : f32
    %7 = vector.broadcast %cst_2 : f32 to vector<16x1xf32>
    %8 = arith.divf %6, %7 : vector<16x1xf32>
    %cst_3 = arith.constant 9.99999997E-7 : f32
    %9 = vector.broadcast %cst_3 : f32 to vector<16x1xf32>
    %10 = arith.addf %8, %9 : vector<16x1xf32>
    %11 = math.rsqrt %10 : vector<16x1xf32>
    %12 = vector.broadcast %11 : vector<16x1xf32> to vector<16x32xf32>
    %13 = arith.mulf %3, %12 : vector<16x32xf32>
    %c0_4 = arith.constant 0 : index
    %c0_5 = arith.constant 0 : index
    %14 = vector.load %arg4[%c0_4, %c0_5] : memref<1x32xf32, #tpu.memory_space<vmem>>, vector<1x32xf32>
    %15 = vector.broadcast %14 : vector<1x32xf32> to vector<16x32xf32>
    %16 = arith.mulf %13, %15 : vector<16x32xf32>
    %c0_6 = arith.constant 0 : index
    %c0_7 = arith.constant 0 : index
    %17 = vector.load %arg7[%c0_6, %c0_7] : memref<16x32xf32, #tpu.memory_space<vmem>>, vector<16x32xf32>
    %18 = arith.truncf %16 : vector<16x32xf32> to vector<16x32xbf16>
    %c0_8 = arith.constant 0 : index
    %c0_9 = arith.constant 0 : index
    %19 = vector.load %arg5[%c0_8, %c0_9] : memref<32x32xbf16, #tpu.memory_space<vmem>>, vector<32x32xbf16>
    %cst_10 = arith.constant dense<0.000000e+00> : vector<16x32xf32>
    %20 = tpu.matmul %18, %19, %cst_10 {dimension_numbers = #tpu.dot_dimension_numbers<[1], [0], [0], [1], [0, 0, 1, 1], [], []>} : vector<16x32xbf16>, vector<32x32xbf16>, vector<16x32xf32> -> vector<16x32xf32>
    %21 = arith.addf %17, %20 : vector<16x32xf32>
    %c0_11 = arith.constant 0 : index
    %c0_12 = arith.constant 0 : index
    %22 = vector.load %arg7[%c0_11, %c0_12] : memref<16x32xf32, #tpu.memory_space<vmem>>, vector<16x32xf32>
    tpu.vector_store %arg7[%c0_11, %c0_12], %21 {strides = array<i32>} : memref<16x32xf32, #tpu.memory_space<vmem>>, vector<16x32xf32>,
    %c0_i32_13 = arith.constant 0 : i32
    %23 = arith.cmpi eq, %arg2, %c0_i32_13 : i32
    %24 = arith.extui %23 : i1 to i32
    %c0_i32_14 = arith.constant 0 : i32
    %25 = arith.cmpi ne, %24, %c0_i32_14 : i32
    scf.if %25 {
      %c0_15 = arith.constant 0 : index
      %c0_16 = arith.constant 0 : index
      %26 = vector.load %arg7[%c0_15, %c0_16] : memref<16x32xf32, #tpu.memory_space<vmem>>, vector<16x32xf32>
      %c0_17 = arith.constant 0 : index
      %c0_18 = arith.constant 0 : index
      %27 = vector.load %arg6[%c0_17, %c0_18] : memref<16x32xf32, #tpu.memory_space<vmem>>, vector<16x32xf32>
      tpu.vector_store %arg6[%c0_17, %c0_18], %26 {strides = array<i32>} : memref<16x32xf32, #tpu.memory_space<vmem>>, vector<16x32xf32>,
    } else {
    }
    return
  }
  func.func @transform_0(%arg0: i32, %arg1: i32, %arg2: i32) -> (i32, i32) {
    %c0_i32 = arith.constant 0 : i32
    return %arg0, %arg2 : i32, i32
  }
  func.func @transform_1(%arg0: i32, %arg1: i32, %arg2: i32) -> (i32, i32) {
    %c0_i32 = arith.constant 0 : i32
    %c0_i32_0 = arith.constant 0 : i32
    %c0_i32_1 = arith.constant 0 : i32
    return %c0_i32, %c0_i32_0 : i32, i32
  }
  func.func @transform_2(%arg0: i32, %arg1: i32, %arg2: i32) -> (i32, i32) {
    %c0_i32 = arith.constant 0 : i32
    return %arg2, %arg1 : i32, i32
  }
  func.func @transform_3(%arg0: i32, %arg1: i32, %arg2: i32) -> (i32, i32) {
    %c0_i32 = arith.constant 0 : i32
    return %arg0, %arg1 : i32, i32
  }
}

module attributes {stable_mosaic.version = 11 : i64} {
  func.func @kernel(%arg0: i32, %arg1: memref<1x8x32xf32, #tpu.memory_space<vmem>>, %arg2: memref<1x8x32xf32, #tpu.memory_space<vmem>>, %arg3: memref<1x8x32xf32, #tpu.memory_space<vmem>>, %arg4: memref<1x8x32xf32, #tpu.memory_space<vmem>>) attributes {dimension_semantics = [#tpu.dimension_semantics<parallel>], iteration_bounds = array<i64: 2>, scalar_prefetch = 0 : i64, scratch_operands = 0 : i64, tpu.core_type = #tpu.core_type<tc>, window_params = [{transform_indices = @transform_0, window_bounds = array<i64: 1, 8, 32>}, {transform_indices = @transform_1, window_bounds = array<i64: 1, 8, 32>}, {transform_indices = @transform_2, window_bounds = array<i64: 1, 8, 32>}, {transform_indices = @transform_3, window_bounds = array<i64: 1, 8, 32>}]} {
    %c0 = arith.constant 0 : index
    %c0_0 = arith.constant 0 : index
    %c0_1 = arith.constant 0 : index
    %0 = vector.load %arg1[%c0, %c0_0, %c0_1] : memref<1x8x32xf32, #tpu.memory_space<vmem>>, vector<1x8x32xf32>
    %1 = vector.shape_cast %0 : vector<1x8x32xf32> to vector<8x32xf32>
    %2 = arith.truncf %1 : vector<8x32xf32> to vector<8x32xbf16>
    %c0_2 = arith.constant 0 : index
    %c0_3 = arith.constant 0 : index
    %c0_4 = arith.constant 0 : index
    %3 = vector.load %arg2[%c0_2, %c0_3, %c0_4] : memref<1x8x32xf32, #tpu.memory_space<vmem>>, vector<1x8x32xf32>
    %4 = vector.shape_cast %3 : vector<1x8x32xf32> to vector<8x32xf32>
    %5 = arith.truncf %4 : vector<8x32xf32> to vector<8x32xbf16>
    %c0_5 = arith.constant 0 : index
    %c0_6 = arith.constant 0 : index
    %c0_7 = arith.constant 0 : index
    %6 = vector.load %arg3[%c0_5, %c0_6, %c0_7] : memref<1x8x32xf32, #tpu.memory_space<vmem>>, vector<1x8x32xf32>
    %7 = vector.shape_cast %6 : vector<1x8x32xf32> to vector<8x32xf32>
    %8 = arith.truncf %7 : vector<8x32xf32> to vector<8x32xbf16>
    %9 = vector.extract_strided_slice %2 {offsets = [0, 0], sizes = [8, 8], strides = [1, 1]} : vector<8x32xbf16> to vector<8x8xbf16>
    %10 = vector.extract_strided_slice %5 {offsets = [0, 0], sizes = [8, 8], strides = [1, 1]} : vector<8x32xbf16> to vector<8x8xbf16>
    %11 = vector.extract_strided_slice %8 {offsets = [0, 0], sizes = [8, 8], strides = [1, 1]} : vector<8x32xbf16> to vector<8x8xbf16>
    %cst = arith.constant dense<0.000000e+00> : vector<8x8xf32>
    %12 = tpu.matmul %9, %10, %cst {dimension_numbers = #tpu.dot_dimension_numbers<[1], [1], [0], [0], [0, 0, 1, 0], [], []>} : vector<8x8xbf16>, vector<8x8xbf16>, vector<8x8xf32> -> vector<8x8xf32>
    %cst_8 = arith.constant dense<0xFF800000> : vector<8xf32>
    %13 = vector.multi_reduction <maximumf>, %12, %cst_8 [1] : vector<8x8xf32> to vector<8xf32>
    %14 = vector.shape_cast %13 : vector<8xf32> to vector<8x1xf32>
    %15 = vector.broadcast %14 : vector<8x1xf32> to vector<8x8xf32>
    %16 = arith.subf %12, %15 : vector<8x8xf32>
    %17 = math.exp %16 : vector<8x8xf32>
    %cst_9 = arith.constant dense<0.000000e+00> : vector<8xf32>
    %18 = vector.multi_reduction <add>, %17, %cst_9 [1] : vector<8x8xf32> to vector<8xf32>
    %19 = vector.shape_cast %18 : vector<8xf32> to vector<8x1xf32>
    %20 = tpu.reciprocal %19 {approx = true} : vector<8x1xf32> -> vector<8x1xf32>
    %21 = vector.broadcast %20 : vector<8x1xf32> to vector<8x8xf32>
    %22 = arith.mulf %17, %21 : vector<8x8xf32>
    %23 = arith.truncf %22 : vector<8x8xf32> to vector<8x8xbf16>
    %cst_10 = arith.constant dense<0.000000e+00> : vector<8x8xf32>
    %24 = tpu.matmul %23, %11, %cst_10 {dimension_numbers = #tpu.dot_dimension_numbers<[1], [0], [0], [1], [0, 0, 1, 1], [], []>} : vector<8x8xbf16>, vector<8x8xbf16>, vector<8x8xf32> -> vector<8x8xf32>
    %c0_11 = arith.constant 0 : index
    %c0_12 = arith.constant 0 : index
    %c0_13 = arith.constant 0 : index
    %25 = vector.load %arg4[%c0_11, %c0_12, %c0_13] : memref<1x8x32xf32, #tpu.memory_space<vmem>>, vector<1x8x8xf32>
    %26 = vector.shape_cast %25 : vector<1x8x8xf32> to vector<8x8xf32>
    %27 = vector.shape_cast %24 : vector<8x8xf32> to vector<1x8x8xf32>
    tpu.vector_store %arg4[%c0_11, %c0_12, %c0_13], %27 {strides = array<i32>} : memref<1x8x32xf32, #tpu.memory_space<vmem>>, vector<1x8x8xf32>,
    %28 = vector.extract_strided_slice %2 {offsets = [0, 8], sizes = [8, 8], strides = [1, 1]} : vector<8x32xbf16> to vector<8x8xbf16>
    %29 = vector.extract_strided_slice %5 {offsets = [0, 8], sizes = [8, 8], strides = [1, 1]} : vector<8x32xbf16> to vector<8x8xbf16>
    %30 = vector.extract_strided_slice %8 {offsets = [0, 8], sizes = [8, 8], strides = [1, 1]} : vector<8x32xbf16> to vector<8x8xbf16>
    %cst_14 = arith.constant dense<0.000000e+00> : vector<8x8xf32>
    %31 = tpu.matmul %28, %29, %cst_14 {dimension_numbers = #tpu.dot_dimension_numbers<[1], [1], [0], [0], [0, 0, 1, 0], [], []>} : vector<8x8xbf16>, vector<8x8xbf16>, vector<8x8xf32> -> vector<8x8xf32>
    %cst_15 = arith.constant dense<0xFF800000> : vector<8xf32>
    %32 = vector.multi_reduction <maximumf>, %31, %cst_15 [1] : vector<8x8xf32> to vector<8xf32>
    %33 = vector.shape_cast %32 : vector<8xf32> to vector<8x1xf32>
    %34 = vector.broadcast %33 : vector<8x1xf32> to vector<8x8xf32>
    %35 = arith.subf %31, %34 : vector<8x8xf32>
    %36 = math.exp %35 : vector<8x8xf32>
    %cst_16 = arith.constant dense<0.000000e+00> : vector<8xf32>
    %37 = vector.multi_reduction <add>, %36, %cst_16 [1] : vector<8x8xf32> to vector<8xf32>
    %38 = vector.shape_cast %37 : vector<8xf32> to vector<8x1xf32>
    %39 = tpu.reciprocal %38 {approx = true} : vector<8x1xf32> -> vector<8x1xf32>
    %40 = vector.broadcast %39 : vector<8x1xf32> to vector<8x8xf32>
    %41 = arith.mulf %36, %40 : vector<8x8xf32>
    %42 = arith.truncf %41 : vector<8x8xf32> to vector<8x8xbf16>
    %cst_17 = arith.constant dense<0.000000e+00> : vector<8x8xf32>
    %43 = tpu.matmul %42, %30, %cst_17 {dimension_numbers = #tpu.dot_dimension_numbers<[1], [0], [0], [1], [0, 0, 1, 1], [], []>} : vector<8x8xbf16>, vector<8x8xbf16>, vector<8x8xf32> -> vector<8x8xf32>
    %c0_18 = arith.constant 0 : index
    %c0_19 = arith.constant 0 : index
    %c8 = arith.constant 8 : index
    %44 = vector.load %arg4[%c0_18, %c0_19, %c8] : memref<1x8x32xf32, #tpu.memory_space<vmem>>, vector<1x8x8xf32>
    %45 = vector.shape_cast %44 : vector<1x8x8xf32> to vector<8x8xf32>
    %46 = vector.shape_cast %43 : vector<8x8xf32> to vector<1x8x8xf32>
    tpu.vector_store %arg4[%c0_18, %c0_19, %c8], %46 {strides = array<i32>} : memref<1x8x32xf32, #tpu.memory_space<vmem>>, vector<1x8x8xf32>,
    %47 = vector.extract_strided_slice %2 {offsets = [0, 16], sizes = [8, 8], strides = [1, 1]} : vector<8x32xbf16> to vector<8x8xbf16>
    %48 = vector.extract_strided_slice %5 {offsets = [0, 16], sizes = [8, 8], strides = [1, 1]} : vector<8x32xbf16> to vector<8x8xbf16>
    %49 = vector.extract_strided_slice %8 {offsets = [0, 16], sizes = [8, 8], strides = [1, 1]} : vector<8x32xbf16> to vector<8x8xbf16>
    %cst_20 = arith.constant dense<0.000000e+00> : vector<8x8xf32>
    %50 = tpu.matmul %47, %48, %cst_20 {dimension_numbers = #tpu.dot_dimension_numbers<[1], [1], [0], [0], [0, 0, 1, 0], [], []>} : vector<8x8xbf16>, vector<8x8xbf16>, vector<8x8xf32> -> vector<8x8xf32>
    %cst_21 = arith.constant dense<0xFF800000> : vector<8xf32>
    %51 = vector.multi_reduction <maximumf>, %50, %cst_21 [1] : vector<8x8xf32> to vector<8xf32>
    %52 = vector.shape_cast %51 : vector<8xf32> to vector<8x1xf32>
    %53 = vector.broadcast %52 : vector<8x1xf32> to vector<8x8xf32>
    %54 = arith.subf %50, %53 : vector<8x8xf32>
    %55 = math.exp %54 : vector<8x8xf32>
    %cst_22 = arith.constant dense<0.000000e+00> : vector<8xf32>
    %56 = vector.multi_reduction <add>, %55, %cst_22 [1] : vector<8x8xf32> to vector<8xf32>
    %57 = vector.shape_cast %56 : vector<8xf32> to vector<8x1xf32>
    %58 = tpu.reciprocal %57 {approx = true} : vector<8x1xf32> -> vector<8x1xf32>
    %59 = vector.broadcast %58 : vector<8x1xf32> to vector<8x8xf32>
    %60 = arith.mulf %55, %59 : vector<8x8xf32>
    %61 = arith.truncf %60 : vector<8x8xf32> to vector<8x8xbf16>
    %cst_23 = arith.constant dense<0.000000e+00> : vector<8x8xf32>
    %62 = tpu.matmul %61, %49, %cst_23 {dimension_numbers = #tpu.dot_dimension_numbers<[1], [0], [0], [1], [0, 0, 1, 1], [], []>} : vector<8x8xbf16>, vector<8x8xbf16>, vector<8x8xf32> -> vector<8x8xf32>
    %c0_24 = arith.constant 0 : index
    %c0_25 = arith.constant 0 : index
    %c16 = arith.constant 16 : index
    %63 = vector.load %arg4[%c0_24, %c0_25, %c16] : memref<1x8x32xf32, #tpu.memory_space<vmem>>, vector<1x8x8xf32>
    %64 = vector.shape_cast %63 : vector<1x8x8xf32> to vector<8x8xf32>
    %65 = vector.shape_cast %62 : vector<8x8xf32> to vector<1x8x8xf32>
    tpu.vector_store %arg4[%c0_24, %c0_25, %c16], %65 {strides = array<i32>} : memref<1x8x32xf32, #tpu.memory_space<vmem>>, vector<1x8x8xf32>,
    %66 = vector.extract_strided_slice %2 {offsets = [0, 24], sizes = [8, 8], strides = [1, 1]} : vector<8x32xbf16> to vector<8x8xbf16>
    %67 = vector.extract_strided_slice %5 {offsets = [0, 24], sizes = [8, 8], strides = [1, 1]} : vector<8x32xbf16> to vector<8x8xbf16>
    %68 = vector.extract_strided_slice %8 {offsets = [0, 24], sizes = [8, 8], strides = [1, 1]} : vector<8x32xbf16> to vector<8x8xbf16>
    %cst_26 = arith.constant dense<0.000000e+00> : vector<8x8xf32>
    %69 = tpu.matmul %66, %67, %cst_26 {dimension_numbers = #tpu.dot_dimension_numbers<[1], [1], [0], [0], [0, 0, 1, 0], [], []>} : vector<8x8xbf16>, vector<8x8xbf16>, vector<8x8xf32> -> vector<8x8xf32>
    %cst_27 = arith.constant dense<0xFF800000> : vector<8xf32>
    %70 = vector.multi_reduction <maximumf>, %69, %cst_27 [1] : vector<8x8xf32> to vector<8xf32>
    %71 = vector.shape_cast %70 : vector<8xf32> to vector<8x1xf32>
    %72 = vector.broadcast %71 : vector<8x1xf32> to vector<8x8xf32>
    %73 = arith.subf %69, %72 : vector<8x8xf32>
    %74 = math.exp %73 : vector<8x8xf32>
    %cst_28 = arith.constant dense<0.000000e+00> : vector<8xf32>
    %75 = vector.multi_reduction <add>, %74, %cst_28 [1] : vector<8x8xf32> to vector<8xf32>
    %76 = vector.shape_cast %75 : vector<8xf32> to vector<8x1xf32>
    %77 = tpu.reciprocal %76 {approx = true} : vector<8x1xf32> -> vector<8x1xf32>
    %78 = vector.broadcast %77 : vector<8x1xf32> to vector<8x8xf32>
    %79 = arith.mulf %74, %78 : vector<8x8xf32>
    %80 = arith.truncf %79 : vector<8x8xf32> to vector<8x8xbf16>
    %cst_29 = arith.constant dense<0.000000e+00> : vector<8x8xf32>
    %81 = tpu.matmul %80, %68, %cst_29 {dimension_numbers = #tpu.dot_dimension_numbers<[1], [0], [0], [1], [0, 0, 1, 1], [], []>} : vector<8x8xbf16>, vector<8x8xbf16>, vector<8x8xf32> -> vector<8x8xf32>
    %c0_30 = arith.constant 0 : index
    %c0_31 = arith.constant 0 : index
    %c24 = arith.constant 24 : index
    %82 = vector.load %arg4[%c0_30, %c0_31, %c24] : memref<1x8x32xf32, #tpu.memory_space<vmem>>, vector<1x8x8xf32>
    %83 = vector.shape_cast %82 : vector<1x8x8xf32> to vector<8x8xf32>
    %84 = vector.shape_cast %81 : vector<8x8xf32> to vector<1x8x8xf32>
    tpu.vector_store %arg4[%c0_30, %c0_31, %c24], %84 {strides = array<i32>} : memref<1x8x32xf32, #tpu.memory_space<vmem>>, vector<1x8x8xf32>,
    return
  }
  func.func @transform_0(%arg0: i32) -> (i32, i32, i32) {
    %c0_i32 = arith.constant 0 : i32
    %c0_i32_0 = arith.constant 0 : i32
    %c0_i32_1 = arith.constant 0 : i32
    return %arg0, %c0_i32, %c0_i32_0 : i32, i32, i32
  }
  func.func @transform_1(%arg0: i32) -> (i32, i32, i32) {
    %c0_i32 = arith.constant 0 : i32
    %c0_i32_0 = arith.constant 0 : i32
    %c0_i32_1 = arith.constant 0 : i32
    return %arg0, %c0_i32, %c0_i32_0 : i32, i32, i32
  }
  func.func @transform_2(%arg0: i32) -> (i32, i32, i32) {
    %c0_i32 = arith.constant 0 : i32
    %c0_i32_0 = arith.constant 0 : i32
    %c0_i32_1 = arith.constant 0 : i32
    return %arg0, %c0_i32, %c0_i32_0 : i32, i32, i32
  }
  func.func @transform_3(%arg0: i32) -> (i32, i32, i32) {
    %c0_i32 = arith.constant 0 : i32
    %c0_i32_0 = arith.constant 0 : i32
    %c0_i32_1 = arith.constant 0 : i32
    return %arg0, %c0_i32, %c0_i32_0 : i32, i32, i32
  }
}

module attributes {stable_mosaic.version = 11 : i64} {
  func.func @kernel(%arg0: i32, %arg1: i32, %arg2: i32, %arg3: memref<16x32xf32, #tpu.memory_space<vmem>>, %arg4: memref<1x32xf32, #tpu.memory_space<vmem>>, %arg5: memref<32x64xbf16, #tpu.memory_space<vmem>>, %arg6: memref<16x64xf32, #tpu.memory_space<vmem>>, %arg7: memref<16x64xf32, #tpu.memory_space<vmem>>) attributes {dimension_semantics = [#tpu.dimension_semantics<parallel>, #tpu.dimension_semantics<parallel>, #tpu.dimension_semantics<arbitrary>], iteration_bounds = array<i64: 1, 1, 1>, scalar_prefetch = 0 : i64, scratch_operands = 1 : i64, tpu.core_type = #tpu.core_type<tc>, window_params = [{transform_indices = @transform_0, window_bounds = array<i64: 16, 32>}, {pipeline_mode = #tpu.pipeline_mode<synchronous>, transform_indices = @transform_1, window_bounds = array<i64: 1, 32>}, {transform_indices = @transform_2, window_bounds = array<i64: 32, 64>}, {transform_indices = @transform_3, window_bounds = array<i64: 16, 64>}]} {
    %c0_i32 = arith.constant 0 : i32
    %0 = arith.cmpi eq, %arg2, %c0_i32 : i32
    %1 = arith.extui %0 : i1 to i32
    %c0_i32_0 = arith.constant 0 : i32
    %2 = arith.cmpi ne, %1, %c0_i32_0 : i32
    scf.if %2 {
      %cst_15 = arith.constant 0.000000e+00 : f32
      %26 = vector.broadcast %cst_15 : f32 to vector<16x64xf32>
      %c0_16 = arith.constant 0 : index
      %c0_17 = arith.constant 0 : index
      %27 = vector.load %arg7[%c0_16, %c0_17] : memref<16x64xf32, #tpu.memory_space<vmem>>, vector<16x64xf32>
      tpu.vector_store %arg7[%c0_16, %c0_17], %26 {strides = array<i32>} : memref<16x64xf32, #tpu.memory_space<vmem>>, vector<16x64xf32>,
    } else {
    }
    %c0 = arith.constant 0 : index
    %c0_1 = arith.constant 0 : index
    %3 = vector.load %arg3[%c0, %c0_1] : memref<16x32xf32, #tpu.memory_space<vmem>>, vector<16x32xf32>
    %4 = arith.mulf %3, %3 : vector<16x32xf32>
    %cst = arith.constant dense<0.000000e+00> : vector<16xf32>
    %5 = vector.multi_reduction <add>, %4, %cst [1] : vector<16x32xf32> to vector<16xf32>
    %6 = vector.shape_cast %5 : vector<16xf32> to vector<16x1xf32>
    %cst_2 = arith.constant 3.200000e+01 : f32
    %7 = vector.broadcast %cst_2 : f32 to vector<16x1xf32>
    %8 = arith.divf %6, %7 : vector<16x1xf32>
    %cst_3 = arith.constant 9.99999997E-7 : f32
    %9 = vector.broadcast %cst_3 : f32 to vector<16x1xf32>
    %10 = arith.addf %8, %9 : vector<16x1xf32>
    %11 = math.rsqrt %10 : vector<16x1xf32>
    %12 = vector.broadcast %11 : vector<16x1xf32> to vector<16x32xf32>
    %13 = arith.mulf %3, %12 : vector<16x32xf32>
    %c0_4 = arith.constant 0 : index
    %c0_5 = arith.constant 0 : index
    %14 = vector.load %arg4[%c0_4, %c0_5] : memref<1x32xf32, #tpu.memory_space<vmem>>, vector<1x32xf32>
    %15 = vector.broadcast %14 : vector<1x32xf32> to vector<16x32xf32>
    %16 = arith.mulf %13, %15 : vector<16x32xf32>
    %c0_6 = arith.constant 0 : index
    %c0_7 = arith.constant 0 : index
    %17 = vector.load %arg7[%c0_6, %c0_7] : memref<16x64xf32, #tpu.memory_space<vmem>>, vector<16x64xf32>
    %18 = arith.truncf %16 : vector<16x32xf32> to vector<16x32xbf16>
    %c0_8 = arith.constant 0 : index
    %c0_9 = arith.constant 0 : index
    %19 = vector.load %arg5[%c0_8, %c0_9] : memref<32x64xbf16, #tpu.memory_space<vmem>>, vector<32x64xbf16>
    %cst_10 = arith.constant dense<0.000000e+00> : vector<16x64xf32>
    %20 = tpu.matmul %18, %19, %cst_10 {dimension_numbers = #tpu.dot_dimension_numbers<[1], [0], [0], [1], [0, 0, 1, 1], [], []>} : vector<16x32xbf16>, vector<32x64xbf16>, vector<16x64xf32> -> vector<16x64xf32>
    %21 = arith.addf %17, %20 : vector<16x64xf32>
    %c0_11 = arith.constant 0 : index
    %c0_12 = arith.constant 0 : index
    %22 = vector.load %arg7[%c0_11, %c0_12] : memref<16x64xf32, #tpu.memory_space<vmem>>, vector<16x64xf32>
    tpu.vector_store %arg7[%c0_11, %c0_12], %21 {strides = array<i32>} : memref<16x64xf32, #tpu.memory_space<vmem>>, vector<16x64xf32>,
    %c0_i32_13 = arith.constant 0 : i32
    %23 = arith.cmpi eq, %arg2, %c0_i32_13 : i32
    %24 = arith.extui %23 : i1 to i32
    %c0_i32_14 = arith.constant 0 : i32
    %25 = arith.cmpi ne, %24, %c0_i32_14 : i32
    scf.if %25 {
      %c0_15 = arith.constant 0 : index
      %c0_16 = arith.constant 0 : index
      %26 = vector.load %arg7[%c0_15, %c0_16] : memref<16x64xf32, #tpu.memory_space<vmem>>, vector<16x64xf32>
      %c0_17 = arith.constant 0 : index
      %c0_18 = arith.constant 0 : index
      %27 = vector.load %arg6[%c0_17, %c0_18] : memref<16x64xf32, #tpu.memory_space<vmem>>, vector<16x64xf32>
      tpu.vector_store %arg6[%c0_17, %c0_18], %26 {strides = array<i32>} : memref<16x64xf32, #tpu.memory_space<vmem>>, vector<16x64xf32>,
    } else {
    }
    return
  }
  func.func @transform_0(%arg0: i32, %arg1: i32, %arg2: i32) -> (i32, i32) {
    %c0_i32 = arith.constant 0 : i32
    return %arg0, %arg2 : i32, i32
  }
  func.func @transform_1(%arg0: i32, %arg1: i32, %arg2: i32) -> (i32, i32) {
    %c0_i32 = arith.constant 0 : i32
    %c0_i32_0 = arith.constant 0 : i32
    %c0_i32_1 = arith.constant 0 : i32
    return %c0_i32, %c0_i32_0 : i32, i32
  }
  func.func @transform_2(%arg0: i32, %arg1: i32, %arg2: i32) -> (i32, i32) {
    %c0_i32 = arith.constant 0 : i32
    return %arg2, %arg1 : i32, i32
  }
  func.func @transform_3(%arg0: i32, %arg1: i32, %arg2: i32) -> (i32, i32) {
    %c0_i32 = arith.constant 0 : i32
    return %arg0, %arg1 : i32, i32
  }
}

module attributes {stable_mosaic.version = 11 : i64} {
  func.func @kernel(%arg0: i32, %arg1: i32, %arg2: i32, %arg3: memref<16x64xf32, #tpu.memory_space<vmem>>, %arg4: memref<64x32xbf16, #tpu.memory_space<vmem>>, %arg5: memref<16x32xf32, #tpu.memory_space<vmem>>, %arg6: memref<16x32xf32, #tpu.memory_space<vmem>>, %arg7: memref<16x32xf32, #tpu.memory_space<vmem>>) attributes {dimension_semantics = [#tpu.dimension_semantics<parallel>, #tpu.dimension_semantics<parallel>, #tpu.dimension_semantics<arbitrary>], iteration_bounds = array<i64: 1, 1, 1>, scalar_prefetch = 0 : i64, scratch_operands = 1 : i64, tpu.core_type = #tpu.core_type<tc>, window_params = [{transform_indices = @transform_0, window_bounds = array<i64: 16, 64>}, {transform_indices = @transform_1, window_bounds = array<i64: 64, 32>}, {transform_indices = @transform_2, window_bounds = array<i64: 16, 32>}, {transform_indices = @transform_3, window_bounds = array<i64: 16, 32>}]} {
    %c0_i32 = arith.constant 0 : i32
    %0 = arith.cmpi eq, %arg2, %c0_i32 : i32
    %1 = arith.extui %0 : i1 to i32
    %c0_i32_0 = arith.constant 0 : i32
    %2 = arith.cmpi ne, %1, %c0_i32_0 : i32
    scf.if %2 {
      %cst_11 = arith.constant 0.000000e+00 : f32
      %15 = vector.broadcast %cst_11 : f32 to vector<16x32xf32>
      %c0_12 = arith.constant 0 : index
      %c0_13 = arith.constant 0 : index
      %16 = vector.load %arg7[%c0_12, %c0_13] : memref<16x32xf32, #tpu.memory_space<vmem>>, vector<16x32xf32>
      tpu.vector_store %arg7[%c0_12, %c0_13], %15 {strides = array<i32>} : memref<16x32xf32, #tpu.memory_space<vmem>>, vector<16x32xf32>,
    } else {
    }
    %c0 = arith.constant 0 : index
    %c0_1 = arith.constant 0 : index
    %3 = vector.load %arg3[%c0, %c0_1] : memref<16x64xf32, #tpu.memory_space<vmem>>, vector<16x64xf32>
    %cst = arith.constant 0.000000e+00 : f32
    %4 = vector.broadcast %cst : f32 to vector<16x64xf32>
    %5 = arith.maximumf %3, %4 : vector<16x64xf32>
    %c0_2 = arith.constant 0 : index
    %c0_3 = arith.constant 0 : index
    %6 = vector.load %arg7[%c0_2, %c0_3] : memref<16x32xf32, #tpu.memory_space<vmem>>, vector<16x32xf32>
    %7 = arith.truncf %5 : vector<16x64xf32> to vector<16x64xbf16>
    %c0_4 = arith.constant 0 : index
    %c0_5 = arith.constant 0 : index
    %8 = vector.load %arg4[%c0_4, %c0_5] : memref<64x32xbf16, #tpu.memory_space<vmem>>, vector<64x32xbf16>
    %cst_6 = arith.constant dense<0.000000e+00> : vector<16x32xf32>
    %9 = tpu.matmul %7, %8, %cst_6 {dimension_numbers = #tpu.dot_dimension_numbers<[1], [0], [0], [1], [0, 0, 1, 1], [], []>} : vector<16x64xbf16>, vector<64x32xbf16>, vector<16x32xf32> -> vector<16x32xf32>
    %10 = arith.addf %6, %9 : vector<16x32xf32>
    %c0_7 = arith.constant 0 : index
    %c0_8 = arith.constant 0 : index
    %11 = vector.load %arg7[%c0_7, %c0_8] : memref<16x32xf32, #tpu.memory_space<vmem>>, vector<16x32xf32>
    tpu.vector_store %arg7[%c0_7, %c0_8], %10 {strides = array<i32>} : memref<16x32xf32, #tpu.memory_space<vmem>>, vector<16x32xf32>,
    %c0_i32_9 = arith.constant 0 : i32
    %12 = arith.cmpi eq, %arg2, %c0_i32_9 : i32
    %13 = arith.extui %12 : i1 to i32
    %c0_i32_10 = arith.constant 0 : i32
    %14 = arith.cmpi ne, %13, %c0_i32_10 : i32
    scf.if %14 {
      %c0_11 = arith.constant 0 : index
      %c0_12 = arith.constant 0 : index
      %15 = vector.load %arg7[%c0_11, %c0_12] : memref<16x32xf32, #tpu.memory_space<vmem>>, vector<16x32xf32>
      %c0_13 = arith.constant 0 : index
      %c0_14 = arith.constant 0 : index
      %16 = vector.load %arg5[%c0_13, %c0_14] : memref<16x32xf32, #tpu.memory_space<vmem>>, vector<16x32xf32>
      %17 = arith.addf %15, %16 : vector<16x32xf32>
      %c0_15 = arith.constant 0 : index
      %c0_16 = arith.constant 0 : index
      %18 = vector.load %arg6[%c0_15, %c0_16] : memref<16x32xf32, #tpu.memory_space<vmem>>, vector<16x32xf32>
      tpu.vector_store %arg6[%c0_15, %c0_16], %17 {strides = array<i32>} : memref<16x32xf32, #tpu.memory_space<vmem>>, vector<16x32xf32>,
    } else {
    }
    return
  }
  func.func @transform_0(%arg0: i32, %arg1: i32, %arg2: i32) -> (i32, i32) {
    %c0_i32 = arith.constant 0 : i32
    return %arg0, %arg2 : i32, i32
  }
  func.func @transform_1(%arg0: i32, %arg1: i32, %arg2: i32) -> (i32, i32) {
    %c0_i32 = arith.constant 0 : i32
    return %arg2, %arg1 : i32, i32
  }
  func.func @transform_2(%arg0: i32, %arg1: i32, %arg2: i32) -> (i32, i32) {
    %c0_i32 = arith.constant 0 : i32
    return %arg0, %arg1 : i32, i32
  }
  func.func @transform_3(%arg0: i32, %arg1: i32, %arg2: i32) -> (i32, i32) {
    %c0_i32 = arith.constant 0 : i32
    return %arg0, %arg1 : i32, i32
  }
}

module attributes {stable_mosaic.version = 11 : i64} {
  func.func @kernel(%arg0: i32, %arg1: i32, %arg2: i32, %arg3: memref<16x32xf32, #tpu.memory_space<vmem>>, %arg4: memref<1x32xf32, #tpu.memory_space<vmem>>, %arg5: memref<32x128xbf16, #tpu.memory_space<vmem>>, %arg6: memref<16x128xf32, #tpu.memory_space<vmem>>, %arg7: memref<16x128xf32, #tpu.memory_space<vmem>>) attributes {dimension_semantics = [#tpu.dimension_semantics<parallel>, #tpu.dimension_semantics<parallel>, #tpu.dimension_semantics<arbitrary>], iteration_bounds = array<i64: 1, 1, 1>, scalar_prefetch = 0 : i64, scratch_operands = 1 : i64, tpu.core_type = #tpu.core_type<tc>, window_params = [{transform_indices = @transform_0, window_bounds = array<i64: 16, 32>}, {pipeline_mode = #tpu.pipeline_mode<synchronous>, transform_indices = @transform_1, window_bounds = array<i64: 1, 32>}, {transform_indices = @transform_2, window_bounds = array<i64: 32, 128>}, {transform_indices = @transform_3, window_bounds = array<i64: 16, 128>}]} {
    %c0_i32 = arith.constant 0 : i32
    %0 = arith.cmpi eq, %arg2, %c0_i32 : i32
    %1 = arith.extui %0 : i1 to i32
    %c0_i32_0 = arith.constant 0 : i32
    %2 = arith.cmpi ne, %1, %c0_i32_0 : i32
    scf.if %2 {
      %cst_16 = arith.constant 0.000000e+00 : f32
      %28 = vector.broadcast %cst_16 : f32 to vector<16x128xf32>
      %c0_17 = arith.constant 0 : index
      %c0_18 = arith.constant 0 : index
      %29 = vector.load %arg7[%c0_17, %c0_18] : memref<16x128xf32, #tpu.memory_space<vmem>>, vector<16x128xf32>
      tpu.vector_store %arg7[%c0_17, %c0_18], %28 {strides = array<i32>} : memref<16x128xf32, #tpu.memory_space<vmem>>, vector<16x128xf32>,
    } else {
    }
    %c0 = arith.constant 0 : index
    %c0_1 = arith.constant 0 : index
    %3 = vector.load %arg3[%c0, %c0_1] : memref<16x32xf32, #tpu.memory_space<vmem>>, vector<16x32xf32>
    %4 = arith.mulf %3, %3 : vector<16x32xf32>
    %cst = arith.constant dense<0.000000e+00> : vector<16xf32>
    %5 = vector.multi_reduction <add>, %4, %cst [1] : vector<16x32xf32> to vector<16xf32>
    %6 = vector.shape_cast %5 : vector<16xf32> to vector<16x1xf32>
    %cst_2 = arith.constant 3.200000e+01 : f32
    %7 = vector.broadcast %cst_2 : f32 to vector<16x1xf32>
    %8 = arith.divf %6, %7 : vector<16x1xf32>
    %cst_3 = arith.constant 9.99999997E-7 : f32
    %9 = vector.broadcast %cst_3 : f32 to vector<16x1xf32>
    %10 = arith.addf %8, %9 : vector<16x1xf32>
    %11 = math.rsqrt %10 : vector<16x1xf32>
    %12 = vector.broadcast %11 : vector<16x1xf32> to vector<16x32xf32>
    %13 = arith.mulf %3, %12 : vector<16x32xf32>
    %c0_4 = arith.constant 0 : index
    %c0_5 = arith.constant 0 : index
    %14 = vector.load %arg4[%c0_4, %c0_5] : memref<1x32xf32, #tpu.memory_space<vmem>>, vector<1x32xf32>
    %15 = vector.broadcast %14 : vector<1x32xf32> to vector<16x32xf32>
    %16 = arith.mulf %13, %15 : vector<16x32xf32>
    %cst_6 = arith.constant 0.176776692 : f32
    %17 = vector.broadcast %cst_6 : f32 to vector<16x32xf32>
    %18 = arith.mulf %16, %17 : vector<16x32xf32>
    %c0_7 = arith.constant 0 : index
    %c0_8 = arith.constant 0 : index
    %19 = vector.load %arg7[%c0_7, %c0_8] : memref<16x128xf32, #tpu.memory_space<vmem>>, vector<16x128xf32>
    %20 = arith.truncf %18 : vector<16x32xf32> to vector<16x32xbf16>
    %c0_9 = arith.constant 0 : index
    %c0_10 = arith.constant 0 : index
    %21 = vector.load %arg5[%c0_9, %c0_10] : memref<32x128xbf16, #tpu.memory_space<vmem>>, vector<32x128xbf16>
    %cst_11 = arith.constant dense<0.000000e+00> : vector<16x128xf32>
    %22 = tpu.matmul %20, %21, %cst_11 {dimension_numbers = #tpu.dot_dimension_numbers<[1], [0], [0], [1], [0, 0, 1, 1], [], []>} : vector<16x32xbf16>, vector<32x128xbf16>, vector<16x128xf32> -> vector<16x128xf32>
    %23 = arith.addf %19, %22 : vector<16x128xf32>
    %c0_12 = arith.constant 0 : index
    %c0_13 = arith.constant 0 : index
    %24 = vector.load %arg7[%c0_12, %c0_13] : memref<16x128xf32, #tpu.memory_space<vmem>>, vector<16x128xf32>
    tpu.vector_store %arg7[%c0_12, %c0_13], %23 {strides = array<i32>} : memref<16x128xf32, #tpu.memory_space<vmem>>, vector<16x128xf32>,
    %c0_i32_14 = arith.constant 0 : i32
    %25 = arith.cmpi eq, %arg2, %c0_i32_14 : i32
    %26 = arith.extui %25 : i1 to i32
    %c0_i32_15 = arith.constant 0 : i32
    %27 = arith.cmpi ne, %26, %c0_i32_15 : i32
    scf.if %27 {
      %c0_16 = arith.constant 0 : index
      %c0_17 = arith.constant 0 : index
      %28 = vector.load %arg7[%c0_16, %c0_17] : memref<16x128xf32, #tpu.memory_space<vmem>>, vector<16x128xf32>
      %c0_18 = arith.constant 0 : index
      %c0_19 = arith.constant 0 : index
      %29 = vector.load %arg6[%c0_18, %c0_19] : memref<16x128xf32, #tpu.memory_space<vmem>>, vector<16x128xf32>
      tpu.vector_store %arg6[%c0_18, %c0_19], %28 {strides = array<i32>} : memref<16x128xf32, #tpu.memory_space<vmem>>, vector<16x128xf32>,
    } else {
    }
    return
  }
  func.func @transform_0(%arg0: i32, %arg1: i32, %arg2: i32) -> (i32, i32) {
    %c0_i32 = arith.constant 0 : i32
    return %arg0, %arg2 : i32, i32
  }
  func.func @transform_1(%arg0: i32, %arg1: i32, %arg2: i32) -> (i32, i32) {
    %c0_i32 = arith.constant 0 : i32
    %c0_i32_0 = arith.constant 0 : i32
    %c0_i32_1 = arith.constant 0 : i32
    return %c0_i32, %c0_i32_0 : i32, i32
  }
  func.func @transform_2(%arg0: i32, %arg1: i32, %arg2: i32) -> (i32, i32) {
    %c0_i32 = arith.constant 0 : i32
    return %arg2, %arg1 : i32, i32
  }
  func.func @transform_3(%arg0: i32, %arg1: i32, %arg2: i32) -> (i32, i32) {
    %c0_i32 = arith.constant 0 : i32
    return %arg0, %arg1 : i32, i32
  }
}

</mosaic_0001>

<llo_original>
// kernel: _lambda_.23
$region0: #{_lambda_.23}
  #allocation0 [shape = 'u32[]', space=smem, size = 0x4, offset = 0x4, fixed_abs, tag = 'smem constant byte address 0x4 - core index']
  #allocation1 [shape = 'u32[144,128]{1,0:T(1,128)}', space=vmem, size = 0x12000, scoped, tag = 'internal scratch']
  #allocation2 [shape = 'f32[16,64]{1,0:T(8,128)}', space=vmem, size = 0x2000, scoped, tag = 'scratch operand']
  %s0 = inlined_call_operand.vmem [shape: f32[16,32], index: 0, kind: input, shape index: {}]
  %s1 = inlined_call_operand.vmem [shape: bf16[32,64], index: 1, kind: input, shape index: {}]
  %s2 = inlined_call_operand.vmem [shape: f32[16,64], index: 2, kind: output, shape index: {}]
  %s3 = sld [smem:[#allocation0]]
  $region26: #{_lambda_.23} parent=0
    _
  %s5 = ssub.s32 1, %s3
  %s6 = scalar_select 0, %s5, %s3
  // Predicated region
  $region2: #{_lambda_.23} parent=0 // pred_check
    _
  $region3: #{_lambda_.23} parent=0 // pred_check_branch
    %8 = sbr.rel (0) target = $region5
  $region4: #{_lambda_.23} parent=0 // pred_region
    _
  $region5: #{_lambda_.23} parent=0 // pred_fallthru
    _
  // Predicated region
  $region6: #{_lambda_.23} parent=0 // pred_check
    _
  $region7: #{_lambda_.23} parent=0 // pred_check_branch
    %10 = sbr.rel (0) target = $region9
  $region8: #{_lambda_.23} parent=0 // pred_region
    _
  $region9: #{_lambda_.23} parent=0 // pred_fallthru
    _
  %p12 = scmp.eq.s32.totalorder 0, 0
  // Predicated region
  $region10: #{_lambda_.23} parent=0 // pred_check
    %p13 = pneg %p12
  $region11: #{_lambda_.23} parent=0 // pred_check_branch
    %15 = sbr.rel (%p13) target = $region13
  $region12: #{_lambda_.23} parent=0 // pred_region
    %vm16 = vcmask 523264
    %17 = vst.msk [vmem:[#allocation2] sm:$0xff] %vm16, 0.0
    %18 = vst.msk [vmem:[#allocation2 + $0x8] sm:$0xff] %vm16, 0.0
  $region13: #{_lambda_.23} parent=0 // pred_fallthru
    _
  %v19 = vld [vmem:[%s0] sm:$0xff]
  %v20 = vld [vmem:[%s0 + $0x8] sm:$0xff]
  %v21 = vld [vmem:[#allocation2] sm:$0xff]
  %v22 = vld [vmem:[#allocation2 + $0x8] sm:$0xff]
  %v23 = vpack.c.bf16 %v20, %v19
  %v24 = vld [vmem:[%s1] sm:$0xf]
  %v25 = vld [vmem:[%s1 + $0x4] sm:$0xf]
  %v26 = vld [vmem:[%s1 + $0x8] sm:$0xf]
  %v27 = vld [vmem:[%s1 + $0xc] sm:$0xf]
  %v32 = vunpack.c.l.b16 %v24
  %v33 = vunpack.c.l.b16 %v25
  %v34 = vunpack.c.l.b16 %v26
  %v35 = vunpack.c.l.b16 %v27
  %v36 = vpack.c.b16 %v33, %v32
  %v37 = vpack.c.b16 %v35, %v34
  %vm40 = vcmask 261120
  %v42 = vsel %vm40, %v23, 0
  %44 = vmatprep.subr.bf16.mxu0 0
  %45 = vmatpush1.bf16.msra.mxu0 %v36
  %46 = vmatprep.subr.bf16.mxu0 0
  %47 = vmatpush1.bf16.msra.mxu0 %v37
  %48 = vmatprep.subr.bf16.mxu0 0
  %49 = vmatpush1.bf16.msra.mxu0 0
  %50 = vmatprep.subr.bf16.mxu0 0
  %51 = vmatpush1.bf16.msra.mxu0 0
  %52 = vmatprep.subr.bf16.mxu0 0
  %53 = vmatpush1.bf16.msra.mxu0 0
  %54 = vmatprep.subr.bf16.mxu0 0
  %55 = vmatpush1.bf16.msra.mxu0 0
  %56 = vmatprep.subr.bf16.mxu0 0
  %57 = vmatpush1.bf16.msra.mxu0 0
  %58 = vmatprep.subr.bf16.mxu0 0
  %59 = vmatpush1.bf16.msra.mxu0 0
  %60 = vmatprep.subr.bf16.mxu0 0
  %61 = vmatpush1.bf16.msra.mxu0 0
  %62 = vmatprep.subr.bf16.mxu0 0
  %63 = vmatpush1.bf16.msra.mxu0 0
  %64 = vmatprep.subr.bf16.mxu0 0
  %65 = vmatpush1.bf16.msra.mxu0 0
  %66 = vmatprep.subr.bf16.mxu0 0
  %67 = vmatpush1.bf16.msra.mxu0 0
  %68 = vmatprep.subr.bf16.mxu0 0
  %69 = vmatpush1.bf16.msra.mxu0 0
  %70 = vmatprep.subr.bf16.mxu0 0
  %71 = vmatpush1.bf16.msra.mxu0 0
  %72 = vmatprep.subr.bf16.mxu0 0
  %73 = vmatpush1.bf16.msra.mxu0 0
  %74 = vmatprep.subr.bf16.mxu0 0
  %75 = vmatpush1.bf16.msra.mxu0 0
  %76 = vmatprep.mubr.bf16.mxu0 0
  %77 = vmatmul.mubr.bf16.gmra.mrb[0].mxu0 %v42
  %v78 = vpop.f32.mrb[0].mxu0
  %v79 = vadd.f32 0.0, %v78
  %v80 = vpop.f32.mrb[0].mxu0
  %v81 = vpop.f32.mrb[0].mxu0
  %v82 = vadd.f32 0.0, %v81
  %v83 = vpop.f32.mrb[0].mxu0
  %84 = vdwg.mxu0
  %v85 = vadd.f32 %v21, %v79
  %v86 = vadd.f32 %v22, %v82
  %vm87 = vcmask 523264
  %88 = vst.msk [vmem:[#allocation2] sm:$0xff] %vm87, %v85
  %89 = vst.msk [vmem:[#allocation2 + $0x8] sm:$0xff] %vm87, %v86
  // Predicated region
  $region14: #{_lambda_.23} parent=0 // pred_check
    %p90 = pneg %p12
  $region15: #{_lambda_.23} parent=0 // pred_check_branch
    %92 = sbr.rel (%p90) target = $region17
  $region16: #{_lambda_.23} parent=0 // pred_region
    %v93 = vld [vmem:[#allocation2] sm:$0xff]
    %v94 = vld [vmem:[#allocation2 + $0x8] sm:$0xff]
    %95 = vst.msk [vmem:[%s2] sm:$0xff] %vm87, %v93
    %96 = vst.msk [vmem:[%s2 + $0x8] sm:$0xff] %vm87, %v94
  $region17: #{_lambda_.23} parent=0 // pred_fallthru
    _
  // Predicated region
  $region18: #{_lambda_.23} parent=0 // pred_check
    _
  $region19: #{_lambda_.23} parent=0 // pred_check_branch
    %98 = sbr.rel (0) target = $region21
  $region20: #{_lambda_.23} parent=0 // pred_region
    _
  $region21: #{_lambda_.23} parent=0 // pred_fallthru
    _
  // Predicated region
  $region22: #{_lambda_.23} parent=0 // pred_check
    _
  $region23: #{_lambda_.23} parent=0 // pred_check_branch
    %100 = sbr.rel (0) target = $region25
  $region24: #{_lambda_.23} parent=0 // pred_region
    _
  $region25: #{_lambda_.23} parent=0 // pred_fallthru
    _

// kernel: _lambda_.19
$region0: #{_lambda_.19}
  #allocation0 [shape = 'u32[]', space=smem, size = 0x4, offset = 0x4, fixed_abs, tag = 'smem constant byte address 0x4 - core index']
  #allocation1 [shape = 'u32[144,128]{1,0:T(1,128)}', space=vmem, size = 0x12000, scoped, tag = 'internal scratch']
  #allocation2 [shape = 'f32[16,96]{1,0:T(8,128)}', space=vmem, size = 0x2000, scoped, tag = 'scratch operand']
  %s0 = inlined_call_operand.vmem [shape: f32[16,32], index: 0, kind: input, shape index: {}]
  %s1 = inlined_call_operand.vmem [shape: f32[1,32], index: 1, kind: input, shape index: {}]
  %s2 = inlined_call_operand.vmem [shape: bf16[32,96], index: 2, kind: input, shape index: {}]
  %s3 = inlined_call_operand.vmem [shape: f32[16,96], index: 3, kind: output, shape index: {}]
  %s4 = sld [smem:[#allocation0]]
  $region30: #{_lambda_.19} parent=0
    _
  %s6 = ssub.s32 1, %s4
  %s7 = scalar_select 0, %s6, %s4
  // Predicated region
  $region2: #{_lambda_.19} parent=0 // pred_check
    _
  $region3: #{_lambda_.19} parent=0 // pred_check_branch
    %9 = sbr.rel (0) target = $region5
  $region4: #{_lambda_.19} parent=0 // pred_region
    _
  $region5: #{_lambda_.19} parent=0 // pred_fallthru
    _
  // Predicated region
  $region6: #{_lambda_.19} parent=0 // pred_check
    _
  $region7: #{_lambda_.19} parent=0 // pred_check_branch
    %11 = sbr.rel (0) target = $region9
  $region8: #{_lambda_.19} parent=0 // pred_region
    _
  $region9: #{_lambda_.19} parent=0 // pred_fallthru
    _
  // Predicated region
  $region10: #{_lambda_.19} parent=0 // pred_check
    _
  $region11: #{_lambda_.19} parent=0 // pred_check_branch
    %13 = sbr.rel (0) target = $region13
  $region12: #{_lambda_.19} parent=0 // pred_region
    _
  $region13: #{_lambda_.19} parent=0 // pred_fallthru
    _
  %p15 = scmp.eq.s32.totalorder 0, 0
  // Predicated region
  $region14: #{_lambda_.19} parent=0 // pred_check
    %p16 = pneg %p15
  $region15: #{_lambda_.19} parent=0 // pred_check_branch
    %18 = sbr.rel (%p16) target = $region17
  $region16: #{_lambda_.19} parent=0 // pred_region
    %vm19 = vcmask 785408
    %20 = vst.msk [vmem:[#allocation2] sm:$0xff] %vm19, 0.0
    %21 = vst.msk [vmem:[#allocation2 + $0x8] sm:$0xff] %vm19, 0.0
  $region17: #{_lambda_.19} parent=0 // pred_fallthru
    _
  %v22 = vld [vmem:[%s0] sm:$0xff]
  %v23 = vld [vmem:[%s0 + $0x8] sm:$0xff]
  %v24 = vmul.f32 %v22, %v22
  %v25 = vmul.f32 %v23, %v23
  %vm26 = vcmask 261120
  %v27 = vsel %vm26, %v24, 0.0
  %28 = vadd.xlane.f32.xlu0 %v27
  %v29 = vpop.xlane.xlu0 %28
  %v30 = vsel %vm26, %v25, 0.0
  %31 = vadd.xlane.f32.xlu0 %v30
  %v32 = vpop.xlane.xlu0 %31
  %v33 = vrcp.pop 32.0
  %v34 = vmul.f32 %v29, %v33
  %v35 = vmul.f32 %v32, %v33
  %v36 = vadd.f32 %v34, 1e-06
  %v37 = vadd.f32 %v35, 1e-06
  %v38 = vrsqrt.pop %v36
  %v39 = vrsqrt.pop %v37
  %v40 = vmul.f32 %v22, %v38
  %v41 = vmul.f32 %v23, %v39
  %v42 = vld [vmem:[%s1] sm:$0x1]
  %v44 = vlaneseq
  %v45 = vshrl.u32 %v44, 7
  %v46 = vsub.s32 0, %v45
  %v47 = vrot.slane %v42, %v46
  %v49 = vmul.f32 %v40, %v47
  %v50 = vmul.f32 %v41, %v47
  %v51 = vld [vmem:[#allocation2] sm:$0xff]
  %v52 = vld [vmem:[#allocation2 + $0x8] sm:$0xff]
  %v53 = vpack.c.bf16 %v50, %v49
  %v54 = vld [vmem:[%s2] sm:$0xf]
  %v55 = vld [vmem:[%s2 + $0x4] sm:$0xf]
  %v56 = vld [vmem:[%s2 + $0x8] sm:$0xf]
  %v57 = vld [vmem:[%s2 + $0xc] sm:$0xf]
  %v62 = vunpack.c.l.b16 %v54
  %v63 = vunpack.c.l.b16 %v55
  %v64 = vunpack.c.l.b16 %v56
  %v65 = vunpack.c.l.b16 %v57
  %v66 = vpack.c.b16 %v63, %v62
  %v67 = vpack.c.b16 %v65, %v64
  %v71 = vsel %vm26, %v53, 0
  %73 = vmatprep.subr.bf16.mxu0 0
  %74 = vmatpush1.bf16.msra.mxu0 %v66
  %75 = vmatprep.subr.bf16.mxu0 0
  %76 = vmatpush1.bf16.msra.mxu0 %v67
  %77 = vmatprep.subr.bf16.mxu0 0
  %78 = vmatpush1.bf16.msra.mxu0 0
  %79 = vmatprep.subr.bf16.mxu0 0
  %80 = vmatpush1.bf16.msra.mxu0 0
  %81 = vmatprep.subr.bf16.mxu0 0
  %82 = vmatpush1.bf16.msra.mxu0 0
  %83 = vmatprep.subr.bf16.mxu0 0
  %84 = vmatpush1.bf16.msra.mxu0 0
  %85 = vmatprep.subr.bf16.mxu0 0
  %86 = vmatpush1.bf16.msra.mxu0 0
  %87 = vmatprep.subr.bf16.mxu0 0
  %88 = vmatpush1.bf16.msra.mxu0 0
  %89 = vmatprep.subr.bf16.mxu0 0
  %90 = vmatpush1.bf16.msra.mxu0 0
  %91 = vmatprep.subr.bf16.mxu0 0
  %92 = vmatpush1.bf16.msra.mxu0 0
  %93 = vmatprep.subr.bf16.mxu0 0
  %94 = vmatpush1.bf16.msra.mxu0 0
  %95 = vmatprep.subr.bf16.mxu0 0
  %96 = vmatpush1.bf16.msra.mxu0 0
  %97 = vmatprep.subr.bf16.mxu0 0
  %98 = vmatpush1.bf16.msra.mxu0 0
  %99 = vmatprep.subr.bf16.mxu0 0
  %100 = vmatpush1.bf16.msra.mxu0 0
  %101 = vmatprep.subr.bf16.mxu0 0
  %102 = vmatpush1.bf16.msra.mxu0 0
  %103 = vmatprep.subr.bf16.mxu0 0
  %104 = vmatpush1.bf16.msra.mxu0 0
  %105 = vmatprep.mubr.bf16.mxu0 0
  %106 = vmatmul.mubr.bf16.gmra.mrb[0].mxu0 %v71
  %v107 = vpop.f32.mrb[0].mxu0
  %v108 = vadd.f32 0.0, %v107
  %v109 = vpop.f32.mrb[0].mxu0
  %v110 = vpop.f32.mrb[0].mxu0
  %v111 = vadd.f32 0.0, %v110
  %v112 = vpop.f32.mrb[0].mxu0
  %113 = vdwg.mxu0
  %v114 = vadd.f32 %v51, %v108
  %v115 = vadd.f32 %v52, %v111
  %vm116 = vcmask 785408
  %117 = vst.msk [vmem:[#allocation2] sm:$0xff] %vm116, %v114
  %118 = vst.msk [vmem:[#allocation2 + $0x8] sm:$0xff] %vm116, %v115
  // Predicated region
  $region18: #{_lambda_.19} parent=0 // pred_check
    %p119 = pneg %p15
  $region19: #{_lambda_.19} parent=0 // pred_check_branch
    %121 = sbr.rel (%p119) target = $region21
  $region20: #{_lambda_.19} parent=0 // pred_region
    %v122 = vld [vmem:[#allocation2] sm:$0xff]
    %v123 = vld [vmem:[#allocation2 + $0x8] sm:$0xff]
    %124 = vst.msk [vmem:[%s3] sm:$0xff] %vm116, %v122
    %125 = vst.msk [vmem:[%s3 + $0x8] sm:$0xff] %vm116, %v123
  $region21: #{_lambda_.19} parent=0 // pred_fallthru
    _
  // Predicated region
  $region22: #{_lambda_.19} parent=0 // pred_check
    _
  $region23: #{_lambda_.19} parent=0 // pred_check_branch
    %127 = sbr.rel (0) target = $region25
  $region24: #{_lambda_.19} parent=0 // pred_region
    _
  $region25: #{_lambda_.19} parent=0 // pred_fallthru
    _
  // Predicated region
  $region26: #{_lambda_.19} parent=0 // pred_check
    _
  $region27: #{_lambda_.19} parent=0 // pred_check_branch
    %129 = sbr.rel (0) target = $region29
  $region28: #{_lambda_.19} parent=0 // pred_region
    _
  $region29: #{_lambda_.19} parent=0 // pred_fallthru
    _

// kernel: _lambda_.21
$region0: #{_lambda_.21}
  #allocation0 [shape = 'u32[]', space=smem, size = 0x4, offset = 0x4, fixed_abs, tag = 'smem constant byte address 0x4 - core index']
  #allocation1 [shape = 'u32[144,128]{1,0:T(1,128)}', space=vmem, size = 0x12000, scoped, tag = 'internal scratch']
  #allocation2 [shape = 'f32[16,32]{1,0:T(8,128)}', space=vmem, size = 0x2000, scoped, tag = 'scratch operand']
  %s0 = inlined_call_operand.vmem [shape: f32[16,32], index: 0, kind: input, shape index: {}]
  %s1 = inlined_call_operand.vmem [shape: bf16[32,32], index: 1, kind: input, shape index: {}]
  %s2 = inlined_call_operand.vmem [shape: f32[16,32], index: 2, kind: input, shape index: {}]
  %s3 = inlined_call_operand.vmem [shape: f32[16,32], index: 3, kind: output, shape index: {}]
  %s4 = sld [smem:[#allocation0]]
  $region30: #{_lambda_.21} parent=0
    _
  %s6 = ssub.s32 1, %s4
  %s7 = scalar_select 0, %s6, %s4
  // Predicated region
  $region2: #{_lambda_.21} parent=0 // pred_check
    _
  $region3: #{_lambda_.21} parent=0 // pred_check_branch
    %9 = sbr.rel (0) target = $region5
  $region4: #{_lambda_.21} parent=0 // pred_region
    _
  $region5: #{_lambda_.21} parent=0 // pred_fallthru
    _
  // Predicated region
  $region6: #{_lambda_.21} parent=0 // pred_check
    _
  $region7: #{_lambda_.21} parent=0 // pred_check_branch
    %11 = sbr.rel (0) target = $region9
  $region8: #{_lambda_.21} parent=0 // pred_region
    _
  $region9: #{_lambda_.21} parent=0 // pred_fallthru
    _
  // Predicated region
  $region10: #{_lambda_.21} parent=0 // pred_check
    _
  $region11: #{_lambda_.21} parent=0 // pred_check_branch
    %13 = sbr.rel (0) target = $region13
  $region12: #{_lambda_.21} parent=0 // pred_region
    _
  $region13: #{_lambda_.21} parent=0 // pred_fallthru
    _
  %p15 = scmp.eq.s32.totalorder 0, 0
  // Predicated region
  $region14: #{_lambda_.21} parent=0 // pred_check
    %p16 = pneg %p15
  $region15: #{_lambda_.21} parent=0 // pred_check_branch
    %18 = sbr.rel (%p16) target = $region17
  $region16: #{_lambda_.21} parent=0 // pred_region
    %vm19 = vcmask 261120
    %20 = vst.msk [vmem:[#allocation2] sm:$0xff] %vm19, 0.0
    %21 = vst.msk [vmem:[#allocation2 + $0x8] sm:$0xff] %vm19, 0.0
  $region17: #{_lambda_.21} parent=0 // pred_fallthru
    _
  %v22 = vld [vmem:[%s0] sm:$0xff]
  %v23 = vld [vmem:[%s0 + $0x8] sm:$0xff]
  %v24 = vld [vmem:[#allocation2] sm:$0xff]
  %v25 = vld [vmem:[#allocation2 + $0x8] sm:$0xff]
  %v26 = vpack.c.bf16 %v23, %v22
  %v27 = vld [vmem:[%s1] sm:$0xf]
  %v28 = vld [vmem:[%s1 + $0x4] sm:$0xf]
  %v29 = vld [vmem:[%s1 + $0x8] sm:$0xf]
  %v30 = vld [vmem:[%s1 + $0xc] sm:$0xf]
  %v35 = vunpack.c.l.b16 %v27
  %v36 = vunpack.c.l.b16 %v28
  %v37 = vunpack.c.l.b16 %v29
  %v38 = vunpack.c.l.b16 %v30
  %v39 = vpack.c.b16 %v36, %v35
  %v40 = vpack.c.b16 %v38, %v37
  %vm43 = vcmask 261120
  %v45 = vsel %vm43, %v26, 0
  %47 = vmatprep.subr.bf16.mxu0 0
  %48 = vmatpush1.bf16.msra.mxu0 %v39
  %49 = vmatprep.subr.bf16.mxu0 0
  %50 = vmatpush1.bf16.msra.mxu0 %v40
  %51 = vmatprep.subr.bf16.mxu0 0
  %52 = vmatpush1.bf16.msra.mxu0 0
  %53 = vmatprep.subr.bf16.mxu0 0
  %54 = vmatpush1.bf16.msra.mxu0 0
  %55 = vmatprep.subr.bf16.mxu0 0
  %56 = vmatpush1.bf16.msra.mxu0 0
  %57 = vmatprep.subr.bf16.mxu0 0
  %58 = vmatpush1.bf16.msra.mxu0 0
  %59 = vmatprep.subr.bf16.mxu0 0
  %60 = vmatpush1.bf16.msra.mxu0 0
  %61 = vmatprep.subr.bf16.mxu0 0
  %62 = vmatpush1.bf16.msra.mxu0 0
  %63 = vmatprep.subr.bf16.mxu0 0
  %64 = vmatpush1.bf16.msra.mxu0 0
  %65 = vmatprep.subr.bf16.mxu0 0
  %66 = vmatpush1.bf16.msra.mxu0 0
  %67 = vmatprep.subr.bf16.mxu0 0
  %68 = vmatpush1.bf16.msra.mxu0 0
  %69 = vmatprep.subr.bf16.mxu0 0
  %70 = vmatpush1.bf16.msra.mxu0 0
  %71 = vmatprep.subr.bf16.mxu0 0
  %72 = vmatpush1.bf16.msra.mxu0 0
  %73 = vmatprep.subr.bf16.mxu0 0
  %74 = vmatpush1.bf16.msra.mxu0 0
  %75 = vmatprep.subr.bf16.mxu0 0
  %76 = vmatpush1.bf16.msra.mxu0 0
  %77 = vmatprep.subr.bf16.mxu0 0
  %78 = vmatpush1.bf16.msra.mxu0 0
  %79 = vmatprep.mubr.bf16.mxu0 0
  %80 = vmatmul.mubr.bf16.gmra.mrb[0].mxu0 %v45
  %v81 = vpop.f32.mrb[0].mxu0
  %v82 = vadd.f32 0.0, %v81
  %v83 = vpop.f32.mrb[0].mxu0
  %v84 = vpop.f32.mrb[0].mxu0
  %v85 = vadd.f32 0.0, %v84
  %v86 = vpop.f32.mrb[0].mxu0
  %87 = vdwg.mxu0
  %v88 = vadd.f32 %v24, %v82
  %v89 = vadd.f32 %v25, %v85
  %90 = vst.msk [vmem:[#allocation2] sm:$0xff] %vm43, %v88
  %91 = vst.msk [vmem:[#allocation2 + $0x8] sm:$0xff] %vm43, %v89
  // Predicated region
  $region18: #{_lambda_.21} parent=0 // pred_check
    %p92 = pneg %p15
  $region19: #{_lambda_.21} parent=0 // pred_check_branch
    %94 = sbr.rel (%p92) target = $region21
  $region20: #{_lambda_.21} parent=0 // pred_region
    %v95 = vld [vmem:[#allocation2] sm:$0xff]
    %v96 = vld [vmem:[#allocation2 + $0x8] sm:$0xff]
    %v97 = vld [vmem:[%s2] sm:$0xff]
    %v98 = vld [vmem:[%s2 + $0x8] sm:$0xff]
    %v99 = vadd.f32 %v95, %v97
    %v100 = vadd.f32 %v96, %v98
    %101 = vst.msk [vmem:[%s3] sm:$0xff] %vm43, %v99
    %102 = vst.msk [vmem:[%s3 + $0x8] sm:$0xff] %vm43, %v100
  $region21: #{_lambda_.21} parent=0 // pred_fallthru
    _
  // Predicated region
  $region22: #{_lambda_.21} parent=0 // pred_check
    _
  $region23: #{_lambda_.21} parent=0 // pred_check_branch
    %104 = sbr.rel (0) target = $region25
  $region24: #{_lambda_.21} parent=0 // pred_region
    _
  $region25: #{_lambda_.21} parent=0 // pred_fallthru
    _
  // Predicated region
  $region26: #{_lambda_.21} parent=0 // pred_check
    _
  $region27: #{_lambda_.21} parent=0 // pred_check_branch
    %106 = sbr.rel (0) target = $region29
  $region28: #{_lambda_.21} parent=0 // pred_region
    _
  $region29: #{_lambda_.21} parent=0 // pred_fallthru
    _

// kernel: _lambda_.20
$region0: #{_lambda_.20}
  #allocation0 [shape = 'u32[]', space=smem, size = 0x4, offset = 0x4, fixed_abs, tag = 'smem constant byte address 0x4 - core index']
  #allocation1 [shape = 'u32[144,128]{1,0:T(1,128)}', space=vmem, size = 0x12000, scoped, tag = 'internal scratch']
  %s0 = inlined_call_operand.vmem [shape: f32[2,8,32], index: 0, kind: input, shape index: {}]
  %s1 = inlined_call_operand.vmem [shape: f32[2,8,32], index: 1, kind: input, shape index: {}]
  %s2 = inlined_call_operand.vmem [shape: f32[2,8,32], index: 2, kind: input, shape index: {}]
  %s3 = inlined_call_operand.vmem [shape: f32[4,8,8], index: 3, kind: input, shape index: {}]
  %s4 = inlined_call_operand.vmem [shape: f32[2,8,32], index: 4, kind: output, shape index: {}]
  %s5 = sld [smem:[#allocation0]]
  $region49: #{_lambda_.20} parent=0
    _
  %s7 = ssub.s32 1, %s5
  %s8 = scalar_select 0, %s7, %s5
  loop: start=0, step=1, limit=4
  $region2: #{_lambda_.20} parent=0 // loop_pre_header
    _
  $region3: #{_lambda_.20} parent=0 // loop_header
    %s10 = sphi 0, %s14
    %p11 = scmp.ge.s32.totalorder %s10, 4
    %s20 = sphi 0, %s22
    %s23 = sphi 0, %s20
    %s24 = sphi 0, %s23
    %s40 = sphi 0, %s24
    %s46 = sphi 0, %s48
    %s49 = sphi 0, %s46
    %s50 = sphi 0, %s49
    %s66 = sphi 0, %s50
    %s72 = sphi 0, %s74
    %s75 = sphi 0, %s72
    %s76 = sphi 0, %s75
    %s92 = sphi 0, %s76
    %s96 = sphi 0, %s96
    %s98 = sphi 0, %s96
    %s99 = sphi 0, %s98
    %s113 = sphi 0, %s99
    %s119 = sphi 0, %s121
    %s122 = sphi 0, %s119
    %s123 = sphi 0, %s122
    %s139 = sphi 0, %s123
  $region4: #{_lambda_.20} parent=0 // loop_header_branch
    %13 = sbr.rel (%p11) target = $region8
  $region5: #{_lambda_.20} parent=0 // loop_body
    %s15 = ssub.s32 %s10, 1
    %s16 = ssub.s32 %s10, 2
    %s17 = sadd.s32 %s10, 1
    %s18 = ssub.s32 %s10, %s17
    %p19 = scmp.eq.s32.totalorder %s18, 0
    %s21 = sadd.s32 %s20, 1
    %s22 = scalar_select %p19, %s20, %s21
    %p25 = pneg %p19
    %p26 = scmp.eq.s32.totalorder %s10, 1
    %p27 = por %p25, %p26
    %p28 = scmp.ne.s32.totalorder %s20, %s23
    %p29 = scmp.eq.s32.totalorder %s10, 0
    %p30 = por %p28, %p29
    %p31 = scmp.ne.s32.totalorder %s20, %s23
    %p32 = scmp.eq.s32.totalorder %s15, 1
    %p33 = por %p31, %p32
    %p34 = scmp.ne.s32.totalorder %s23, %s24
    %p35 = scmp.eq.s32.totalorder %s15, 0
    %p36 = por %p34, %p35
    %p37 = scmp.ne.s32.totalorder %s23, %s24
    %p38 = scmp.eq.s32.totalorder %s16, 1
    %p39 = por %p37, %p38
    %p41 = scmp.ne.s32.totalorder %s24, %s40
    %p42 = scmp.eq.s32.totalorder %s16, 0
    %p43 = por %p41, %p42
    %s44 = ssub.s32 %s10, %s17
    %p45 = scmp.eq.s32.totalorder %s44, 0
    %s47 = sadd.s32 %s46, 1
    %s48 = scalar_select %p45, %s46, %s47
    %p51 = pneg %p45
    %p52 = scmp.eq.s32.totalorder %s10, 1
    %p53 = por %p51, %p52
    %p54 = scmp.ne.s32.totalorder %s46, %s49
    %p55 = scmp.eq.s32.totalorder %s10, 0
    %p56 = por %p54, %p55
    %p57 = scmp.ne.s32.totalorder %s46, %s49
    %p58 = scmp.eq.s32.totalorder %s15, 1
    %p59 = por %p57, %p58
    %p60 = scmp.ne.s32.totalorder %s49, %s50
    %p61 = scmp.eq.s32.totalorder %s15, 0
    %p62 = por %p60, %p61
    %p63 = scmp.ne.s32.totalorder %s49, %s50
    %p64 = scmp.eq.s32.totalorder %s16, 1
    %p65 = por %p63, %p64
    %p67 = scmp.ne.s32.totalorder %s50, %s66
    %p68 = scmp.eq.s32.totalorder %s16, 0
    %p69 = por %p67, %p68
    %s70 = ssub.s32 %s10, %s17
    %p71 = scmp.eq.s32.totalorder %s70, 0
    %s73 = sadd.s32 %s72, 1
    %s74 = scalar_select %p71, %s72, %s73
    %p77 = pneg %p71
    %p78 = scmp.eq.s32.totalorder %s10, 1
    %p79 = por %p77, %p78
    %p80 = scmp.ne.s32.totalorder %s72, %s75
    %p81 = scmp.eq.s32.totalorder %s10, 0
    %p82 = por %p80, %p81
    %p83 = scmp.ne.s32.totalorder %s72, %s75
    %p84 = scmp.eq.s32.totalorder %s15, 1
    %p85 = por %p83, %p84
    %p86 = scmp.ne.s32.totalorder %s75, %s76
    %p87 = scmp.eq.s32.totalorder %s15, 0
    %p88 = por %p86, %p87
    %p89 = scmp.ne.s32.totalorder %s75, %s76
    %p90 = scmp.eq.s32.totalorder %s16, 1
    %p91 = por %p89, %p90
    %p93 = scmp.ne.s32.totalorder %s76, %s92
    %p94 = scmp.eq.s32.totalorder %s16, 0
    %p95 = por %p93, %p94
    %s97 = sadd.s32 %s96, 1
    %p100 = scmp.eq.s32.totalorder %s10, 1
    %p101 = scmp.ne.s32.totalorder %s96, %s98
    %p102 = scmp.eq.s32.totalorder %s10, 0
    %p103 = por %p101, %p102
    %p104 = scmp.ne.s32.totalorder %s96, %s98
    %p105 = scmp.eq.s32.totalorder %s15, 1
    %p106 = por %p104, %p105
    %p107 = scmp.ne.s32.totalorder %s98, %s99
    %p108 = scmp.eq.s32.totalorder %s15, 0
    %p109 = por %p107, %p108
    %p110 = scmp.ne.s32.totalorder %s98, %s99
    %p111 = scmp.eq.s32.totalorder %s16, 1
    %p112 = por %p110, %p111
    %p114 = scmp.ne.s32.totalorder %s99, %s113
    %p115 = scmp.eq.s32.totalorder %s16, 0
    %p116 = por %p114, %p115
    %s117 = ssub.s32 %s10, %s17
    %p118 = scmp.eq.s32.totalorder %s117, 0
    %s120 = sadd.s32 %s119, 1
    %s121 = scalar_select %p118, %s119, %s120
    %p124 = pneg %p118
    %p125 = scmp.eq.s32.totalorder %s10, 1
    %p126 = por %p124, %p125
    %p127 = scmp.ne.s32.totalorder %s119, %s122
    %p128 = scmp.eq.s32.totalorder %s10, 0
    %p129 = por %p127, %p128
    %p130 = scmp.ne.s32.totalorder %s119, %s122
    %p131 = scmp.eq.s32.totalorder %s15, 1
    %p132 = por %p130, %p131
    %p133 = scmp.ne.s32.totalorder %s122, %s123
    %p134 = scmp.eq.s32.totalorder %s15, 0
    %p135 = por %p133, %p134
    %p136 = scmp.ne.s32.totalorder %s122, %s123
    %p137 = scmp.eq.s32.totalorder %s16, 1
    %p138 = por %p136, %p137
    %p140 = scmp.ne.s32.totalorder %s123, %s139
    %p141 = scmp.eq.s32.totalorder %s16, 0
    %p142 = por %p140, %p141
    %p143 = scmp.le.s32.totalorder 1, %s10
    %p144 = scmp.lt.s32.totalorder %s10, 3
    %p145 = pnand %p143, %p144
    %p146 = pneg %p145
    // Predicated region
    $region9: #{_lambda_.20} parent=5 // pred_check
      _
    $region10: #{_lambda_.20} parent=5 // pred_check_branch
      %148 = sbr.rel (%p145) target = $region12
    $region11: #{_lambda_.20} parent=5 // pred_region
      %s149 = ssub.s32 %s10, 1
      // Predicated region
      $region13: #{_lambda_.20} parent=11 // pred_check
        %p150 = pneg %p109
      $region14: #{_lambda_.20} parent=11 // pred_check_branch
        %152 = sbr.rel (%p150) target = $region16
      $region15: #{_lambda_.20} parent=11 // pred_region
        _
      $region16: #{_lambda_.20} parent=11 // pred_fallthru
        _
    $region12: #{_lambda_.20} parent=5 // pred_fallthru
      _
    %p153 = scmp.lt.s32.totalorder %s10, 2
    // Predicated region
    $region17: #{_lambda_.20} parent=5 // pred_check
      %p154 = pneg %p153
    $region18: #{_lambda_.20} parent=5 // pred_check_branch
      %156 = sbr.rel (%p154) target = $region20
    $region19: #{_lambda_.20} parent=5 // pred_region
      // Predicated region
      $region21: #{_lambda_.20} parent=19 // pred_check
        %p157 = pneg %p30
      $region22: #{_lambda_.20} parent=19 // pred_check_branch
        %159 = sbr.rel (%p157) target = $region24
      $region23: #{_lambda_.20} parent=19 // pred_region
        %p160 = scmp.lt.s32.totalorder %s10, 1
        %s161 = scalar_select %p160, %s10, 1
        %s162 = smul.addr %s161, 8
        %s163 = scalar_lea.vmem %s0, %s162
      $region24: #{_lambda_.20} parent=19 // pred_fallthru
        _
      // Predicated region
      $region25: #{_lambda_.20} parent=19 // pred_check
        %p164 = pneg %p56
      $region26: #{_lambda_.20} parent=19 // pred_check_branch
        %166 = sbr.rel (%p164) target = $region28
      $region27: #{_lambda_.20} parent=19 // pred_region
        %p167 = scmp.lt.s32.totalorder %s10, 1
        %s168 = scalar_select %p167, %s10, 1
        %s169 = smul.addr %s168, 8
        %s170 = scalar_lea.vmem %s1, %s169
      $region28: #{_lambda_.20} parent=19 // pred_fallthru
        _
      // Predicated region
      $region29: #{_lambda_.20} parent=19 // pred_check
        %p171 = pneg %p82
      $region30: #{_lambda_.20} parent=19 // pred_check_branch
        %173 = sbr.rel (%p171) target = $region32
      $region31: #{_lambda_.20} parent=19 // pred_region
        %p174 = scmp.lt.s32.totalorder %s10, 1
        %s175 = scalar_select %p174, %s10, 1
        %s176 = smul.addr %s175, 8
        %s177 = scalar_lea.vmem %s2, %s176
      $region32: #{_lambda_.20} parent=19 // pred_fallthru
        _
    $region20: #{_lambda_.20} parent=5 // pred_fallthru
      _
    %p178 = scmp.le.s32.totalorder 1, %s10
    %p179 = scmp.lt.s32.totalorder %s10, 3
    %p180 = pnand %p178, %p179
    %p181 = pneg %p180
    // Predicated region
    $region33: #{_lambda_.20} parent=5 // pred_check
      _
    $region34: #{_lambda_.20} parent=5 // pred_check_branch
      %183 = sbr.rel (%p180) target = $region36
    $region35: #{_lambda_.20} parent=5 // pred_region
      %s184 = ssub.s32 %s10, 1
      %p185 = scmp.lt.s32.totalorder %s15, 1
      %s186 = scalar_select %p185, %s15, 1
      %s187 = smul.addr %s186, 8
      %s188 = scalar_lea.vmem %s0, %s187
      %p189 = pneg %p36
      %p190 = pneg %p33
      %p191 = scmp.lt.s32.totalorder %s15, 1
      %s192 = scalar_select %p191, %s15, 1
      %s193 = smul.addr %s192, 8
      %s194 = scalar_lea.vmem %s1, %s193
      %p195 = pneg %p62
      %p196 = pneg %p59
      %p197 = scmp.lt.s32.totalorder %s15, 1
      %s198 = scalar_select %p197, %s15, 1
      %s199 = smul.addr %s198, 8
      %s200 = scalar_lea.vmem %s2, %s199
      %p201 = pneg %p88
      %p202 = pneg %p85
      %p203 = pneg %p109
      %p204 = pneg %p106
      %p205 = pneg %p135
      %p206 = pneg %p132
      %p207 = scmp.lt.s32.totalorder %s15, 1
      %s208 = scalar_select %p207, %s15, 1
      %s209 = smul.addr %s208, 8
      %s210 = scalar_lea.vmem %s4, %s209
      %p211 = scmp.lt.s32.totalorder %s15, 1
      %s212 = scalar_select %p211, %s15, 1
      %s213 = smul.addr %s212, 8
      %s214 = scalar_lea.vmem %s0, %s213
      %p215 = scmp.lt.s32.totalorder %s15, 1
      %s216 = scalar_select %p215, %s15, 1
      %s217 = smul.addr %s216, 8
      %s218 = scalar_lea.vmem %s1, %s217
      %p219 = scmp.lt.s32.totalorder %s15, 1
      %s220 = scalar_select %p219, %s15, 1
      %s221 = smul.addr %s220, 8
      %s222 = scalar_lea.vmem %s2, %s221
      %p223 = scmp.lt.s32.totalorder %s15, 1
      %s224 = scalar_select %p223, %s15, 1
      %s225 = smul.addr %s224, 8
      %s226 = scalar_lea.vmem %s4, %s225
      %v228 = vld [vmem:[%s214] sm:$0xff]
      %v229 = vpack.c.bf16 %v228, %v228
      %v230 = vld [vmem:[%s218] sm:$0xff]
      %v231 = vpack.c.bf16 %v230, %v230
      %v232 = vld [vmem:[%s222] sm:$0xff]
      %v233 = vpack.c.bf16 %v232, %v232
      %v234 = vld [vmem:[%s3] sm:$0xff]
      %vm235 = vcmask 64512
      %v237 = vsel %vm235, %v229, 0
      %v240 = vsel %vm235, %v231, 0
      %242 = vmatprep.subr.bf16.mxu0 0
      %243 = vmatpush1.bf16.xpose.msra.mxu0 %v240
      %244 = vmatprep.subr.bf16.mxu0 0
      %245 = vmatpush1.bf16.xpose.msra.mxu0 0
      %246 = vmatprep.subr.bf16.mxu0 0
      %247 = vmatpush1.bf16.xpose.msra.mxu0 0
      %248 = vmatprep.subr.bf16.mxu0 0
      %249 = vmatpush1.bf16.xpose.msra.mxu0 0
      %250 = vmatprep.subr.bf16.mxu0 0
      %251 = vmatpush1.bf16.xpose.msra.mxu0 0
      %252 = vmatprep.subr.bf16.mxu0 0
      %253 = vmatpush1.bf16.xpose.msra.mxu0 0
      %254 = vmatprep.subr.bf16.mxu0 0
      %255 = vmatpush1.bf16.xpose.msra.mxu0 0
      %256 = vmatprep.subr.bf16.mxu0 0
      %257 = vmatpush1.bf16.xpose.msra.mxu0 0
      %258 = vmatprep.subr.bf16.mxu0 0
      %259 = vmatpush1.bf16.xpose.msra.mxu0 0
      %260 = vmatprep.subr.bf16.mxu0 0
      %261 = vmatpush1.bf16.xpose.msra.mxu0 0
      %262 = vmatprep.subr.bf16.mxu0 0
      %263 = vmatpush1.bf16.xpose.msra.mxu0 0
      %264 = vmatprep.subr.bf16.mxu0 0
      %265 = vmatpush1.bf16.xpose.msra.mxu0 0
      %266 = vmatprep.subr.bf16.mxu0 0
      %267 = vmatpush1.bf16.xpose.msra.mxu0 0
      %268 = vmatprep.subr.bf16.mxu0 0
      %269 = vmatpush1.bf16.xpose.msra.mxu0 0
      %270 = vmatprep.subr.bf16.mxu0 0
      %271 = vmatpush1.bf16.xpose.msra.mxu0 0
      %272 = vmatprep.subr.bf16.mxu0 0
      %273 = vmatpush1.bf16.xpose.msra.mxu0 0
      %274 = vmatprep.mubr.bf16.mxu0 0
      %275 = vmatmul.mubr.bf16.gmra.mrb[0].mxu0 %v237
      %v276 = vpop.f32.mrb[0].mxu0
      %v277 = vadd.f32 %v234, %v276
      %v278 = vpop.f32.mrb[0].mxu0
      %v279 = vpop.f32.mrb[0].mxu0
      %v280 = vpop.f32.mrb[0].mxu0
      %281 = vdwg.mxu0
      %v282 = vsel %vm235, %v277, -inf
      %283 = vmax.xlane.f32.xlu0 %v282
      %v284 = vpop.xlane.xlu0 %283
      %v285 = vsub.f32 %v277, %v284
      %v286 = vmul.f32 %v285, 1.442695
      %v287 = vpow.pop %v286
      %v288 = vsel %vm235, %v287, 0.0
      %289 = vadd.xlane.f32.xlu0 %v288
      %v290 = vpop.xlane.xlu0 %289
      %v291 = vrcp.pop %v290
      %v292 = vmul.f32 %v287, %v291
      %v293 = vpack.c.bf16 %v292, %v292
      %v295 = vsel %vm235, %v293, 0
      %vm297 = vcmask 1043456
      %v299 = vsel %vm297, %v233, 0
      %301 = vmatprep.subr.bf16.mxu0 0
      %302 = vmatpush1.bf16.msra.mxu0 %v299
      %303 = vmatprep.subr.bf16.mxu0 0
      %304 = vmatpush1.bf16.msra.mxu0 0
      %305 = vmatprep.subr.bf16.mxu0 0
      %306 = vmatpush1.bf16.msra.mxu0 0
      %307 = vmatprep.subr.bf16.mxu0 0
      %308 = vmatpush1.bf16.msra.mxu0 0
      %309 = vmatprep.subr.bf16.mxu0 0
      %310 = vmatpush1.bf16.msra.mxu0 0
      %311 = vmatprep.subr.bf16.mxu0 0
      %312 = vmatpush1.bf16.msra.mxu0 0
      %313 = vmatprep.subr.bf16.mxu0 0
      %314 = vmatpush1.bf16.msra.mxu0 0
      %315 = vmatprep.subr.bf16.mxu0 0
      %316 = vmatpush1.bf16.msra.mxu0 0
      %317 = vmatprep.subr.bf16.mxu0 0
      %318 = vmatpush1.bf16.msra.mxu0 0
      %319 = vmatprep.subr.bf16.mxu0 0
      %320 = vmatpush1.bf16.msra.mxu0 0
      %321 = vmatprep.subr.bf16.mxu0 0
      %322 = vmatpush1.bf16.msra.mxu0 0
      %323 = vmatprep.subr.bf16.mxu0 0
      %324 = vmatpush1.bf16.msra.mxu0 0
      %325 = vmatprep.subr.bf16.mxu0 0
      %326 = vmatpush1.bf16.msra.mxu0 0
      %327 = vmatprep.subr.bf16.mxu0 0
      %328 = vmatpush1.bf16.msra.mxu0 0
      %329 = vmatprep.subr.bf16.mxu0 0
      %330 = vmatpush1.bf16.msra.mxu0 0
      %331 = vmatprep.subr.bf16.mxu0 0
      %332 = vmatpush1.bf16.msra.mxu0 0
      %333 = vmatprep.mubr.bf16.mxu0 0
      %334 = vmatmul.mubr.bf16.gmra.mrb[0].mxu0 %v295
      %v335 = vpop.f32.mrb[0].mxu0
      %v336 = vadd.f32 0.0, %v335
      %v337 = vpop.f32.mrb[0].mxu0
      %v338 = vpop.f32.mrb[0].mxu0
      %v339 = vpop.f32.mrb[0].mxu0
      %340 = vdwg.mxu0
      %341 = vst.msk [vmem:[%s226] sm:$0xff] %vm235, %v336
      %s342 = scalar_lea.vmem %s3, 8
      %v343 = vld [vmem:[%s342] sm:$0xff]
      %345 = vrot.lane.b32.xlu0 %v229, 120
      %v346 = vpop.permute.xlu0 %345
      %348 = vrot.lane.b32.xlu0 %v231, 120
      %v349 = vpop.permute.xlu0 %348
      %v351 = vsel %vm235, %v346, 0
      %v354 = vsel %vm235, %v349, 0
      %356 = vmatprep.subr.bf16.mxu0 0
      %357 = vmatpush1.bf16.xpose.msra.mxu0 %v354
      %358 = vmatprep.subr.bf16.mxu0 0
      %359 = vmatpush1.bf16.xpose.msra.mxu0 0
      %360 = vmatprep.subr.bf16.mxu0 0
      %361 = vmatpush1.bf16.xpose.msra.mxu0 0
      %362 = vmatprep.subr.bf16.mxu0 0
      %363 = vmatpush1.bf16.xpose.msra.mxu0 0
      %364 = vmatprep.subr.bf16.mxu0 0
      %365 = vmatpush1.bf16.xpose.msra.mxu0 0
      %366 = vmatprep.subr.bf16.mxu0 0
      %367 = vmatpush1.bf16.xpose.msra.mxu0 0
      %368 = vmatprep.subr.bf16.mxu0 0
      %369 = vmatpush1.bf16.xpose.msra.mxu0 0
      %370 = vmatprep.subr.bf16.mxu0 0
      %371 = vmatpush1.bf16.xpose.msra.mxu0 0
      %372 = vmatprep.subr.bf16.mxu0 0
      %373 = vmatpush1.bf16.xpose.msra.mxu0 0
      %374 = vmatprep.subr.bf16.mxu0 0
      %375 = vmatpush1.bf16.xpose.msra.mxu0 0
      %376 = vmatprep.subr.bf16.mxu0 0
      %377 = vmatpush1.bf16.xpose.msra.mxu0 0
      %378 = vmatprep.subr.bf16.mxu0 0
      %379 = vmatpush1.bf16.xpose.msra.mxu0 0
      %380 = vmatprep.subr.bf16.mxu0 0
      %381 = vmatpush1.bf16.xpose.msra.mxu0 0
      %382 = vmatprep.subr.bf16.mxu0 0
      %383 = vmatpush1.bf16.xpose.msra.mxu0 0
      %384 = vmatprep.subr.bf16.mxu0 0
      %385 = vmatpush1.bf16.xpose.msra.mxu0 0
      %386 = vmatprep.subr.bf16.mxu0 0
      %387 = vmatpush1.bf16.xpose.msra.mxu0 0
      %388 = vmatprep.mubr.bf16.mxu0 0
      %389 = vmatmul.mubr.bf16.gmra.mrb[0].mxu0 %v351
      %v390 = vpop.f32.mrb[0].mxu0
      %v391 = vadd.f32 %v343, %v390
      %v392 = vpop.f32.mrb[0].mxu0
      %v393 = vpop.f32.mrb[0].mxu0
      %v394 = vpop.f32.mrb[0].mxu0
      %395 = vdwg.mxu0
      %v396 = vsel %vm235, %v391, -inf
      %397 = vmax.xlane.f32.xlu0 %v396
      %v398 = vpop.xlane.xlu0 %397
      %v399 = vsub.f32 %v391, %v398
      %v400 = vmul.f32 %v399, 1.442695
      %v401 = vpow.pop %v400
      %v402 = vsel %vm235, %v401, 0.0
      %403 = vadd.xlane.f32.xlu0 %v402
      %v404 = vpop.xlane.xlu0 %403
      %v405 = vrcp.pop %v404
      %v406 = vmul.f32 %v401, %v405
      %v407 = vpack.c.bf16 %v406, %v406
      %409 = vrot.lane.b32.xlu0 %v233, 120
      %v410 = vpop.permute.xlu0 %409
      %v412 = vsel %vm235, %v407, 0
      %v415 = vsel %vm297, %v410, 0
      %417 = vmatprep.subr.bf16.mxu0 0
      %418 = vmatpush1.bf16.msra.mxu0 %v415
      %419 = vmatprep.subr.bf16.mxu0 0
      %420 = vmatpush1.bf16.msra.mxu0 0
      %421 = vmatprep.subr.bf16.mxu0 0
      %422 = vmatpush1.bf16.msra.mxu0 0
      %423 = vmatprep.subr.bf16.mxu0 0
      %424 = vmatpush1.bf16.msra.mxu0 0
      %425 = vmatprep.subr.bf16.mxu0 0
      %426 = vmatpush1.bf16.msra.mxu0 0
      %427 = vmatprep.subr.bf16.mxu0 0
      %428 = vmatpush1.bf16.msra.mxu0 0
      %429 = vmatprep.subr.bf16.mxu0 0
      %430 = vmatpush1.bf16.msra.mxu0 0
      %431 = vmatprep.subr.bf16.mxu0 0
      %432 = vmatpush1.bf16.msra.mxu0 0
      %433 = vmatprep.subr.bf16.mxu0 0
      %434 = vmatpush1.bf16.msra.mxu0 0
      %435 = vmatprep.subr.bf16.mxu0 0
      %436 = vmatpush1.bf16.msra.mxu0 0
      %437 = vmatprep.subr.bf16.mxu0 0
      %438 = vmatpush1.bf16.msra.mxu0 0
      %439 = vmatprep.subr.bf16.mxu0 0
      %440 = vmatpush1.bf16.msra.mxu0 0
      %441 = vmatprep.subr.bf16.mxu0 0
      %442 = vmatpush1.bf16.msra.mxu0 0
      %443 = vmatprep.subr.bf16.mxu0 0
      %444 = vmatpush1.bf16.msra.mxu0 0
      %445 = vmatprep.subr.bf16.mxu0 0
      %446 = vmatpush1.bf16.msra.mxu0 0
      %447 = vmatprep.subr.bf16.mxu0 0
      %448 = vmatpush1.bf16.msra.mxu0 0
      %449 = vmatprep.mubr.bf16.mxu0 0
      %450 = vmatmul.mubr.bf16.gmra.mrb[0].mxu0 %v412
      %v451 = vpop.f32.mrb[0].mxu0
      %v452 = vadd.f32 0.0, %v451
      %v453 = vpop.f32.mrb[0].mxu0
      %v454 = vpop.f32.mrb[0].mxu0
      %v455 = vpop.f32.mrb[0].mxu0
      %456 = vdwg.mxu0
      %458 = vrot.lane.b32.xlu0 %v452, 8
      %v459 = vpop.permute.xlu0 %458
      %vm461 = vcmask 130112
      %462 = vst.msk [vmem:[%s226] sm:$0xff] %vm461, %v459
      %s463 = scalar_lea.vmem %s3, 16
      %v464 = vld [vmem:[%s463] sm:$0xff]
      %465 = vrot.lane.b32.xlu0 %v229, 112
      %v466 = vpop.permute.xlu0 %465
      %467 = vrot.lane.b32.xlu0 %v231, 112
      %v468 = vpop.permute.xlu0 %467
      %v470 = vsel %vm235, %v466, 0
      %v473 = vsel %vm235, %v468, 0
      %475 = vmatprep.subr.bf16.mxu0 0
      %476 = vmatpush1.bf16.xpose.msra.mxu0 %v473
      %477 = vmatprep.subr.bf16.mxu0 0
      %478 = vmatpush1.bf16.xpose.msra.mxu0 0
      %479 = vmatprep.subr.bf16.mxu0 0
      %480 = vmatpush1.bf16.xpose.msra.mxu0 0
      %481 = vmatprep.subr.bf16.mxu0 0
      %482 = vmatpush1.bf16.xpose.msra.mxu0 0
      %483 = vmatprep.subr.bf16.mxu0 0
      %484 = vmatpush1.bf16.xpose.msra.mxu0 0
      %485 = vmatprep.subr.bf16.mxu0 0
      %486 = vmatpush1.bf16.xpose.msra.mxu0 0
      %487 = vmatprep.subr.bf16.mxu0 0
      %488 = vmatpush1.bf16.xpose.msra.mxu0 0
      %489 = vmatprep.subr.bf16.mxu0 0
      %490 = vmatpush1.bf16.xpose.msra.mxu0 0
      %491 = vmatprep.subr.bf16.mxu0 0
      %492 = vmatpush1.bf16.xpose.msra.mxu0 0
      %493 = vmatprep.subr.bf16.mxu0 0
      %494 = vmatpush1.bf16.xpose.msra.mxu0 0
      %495 = vmatprep.subr.bf16.mxu0 0
      %496 = vmatpush1.bf16.xpose.msra.mxu0 0
      %497 = vmatprep.subr.bf16.mxu0 0
      %498 = vmatpush1.bf16.xpose.msra.mxu0 0
      %499 = vmatprep.subr.bf16.mxu0 0
      %500 = vmatpush1.bf16.xpose.msra.mxu0 0
      %501 = vmatprep.subr.bf16.mxu0 0
      %502 = vmatpush1.bf16.xpose.msra.mxu0 0
      %503 = vmatprep.subr.bf16.mxu0 0
      %504 = vmatpush1.bf16.xpose.msra.mxu0 0
      %505 = vmatprep.subr.bf16.mxu0 0
      %506 = vmatpush1.bf16.xpose.msra.mxu0 0
      %507 = vmatprep.mubr.bf16.mxu0 0
      %508 = vmatmul.mubr.bf16.gmra.mrb[0].mxu0 %v470
      %v509 = vpop.f32.mrb[0].mxu0
      %v510 = vadd.f32 %v464, %v509
      %v511 = vpop.f32.mrb[0].mxu0
      %v512 = vpop.f32.mrb[0].mxu0
      %v513 = vpop.f32.mrb[0].mxu0
      %514 = vdwg.mxu0
      %v515 = vsel %vm235, %v510, -inf
      %516 = vmax.xlane.f32.xlu0 %v515
      %v517 = vpop.xlane.xlu0 %516
      %v518 = vsub.f32 %v510, %v517
      %v519 = vmul.f32 %v518, 1.442695
      %v520 = vpow.pop %v519
      %v521 = vsel %vm235, %v520, 0.0
      %522 = vadd.xlane.f32.xlu0 %v521
      %v523 = vpop.xlane.xlu0 %522
      %v524 = vrcp.pop %v523
      %v525 = vmul.f32 %v520, %v524
      %v526 = vpack.c.bf16 %v525, %v525
      %527 = vrot.lane.b32.xlu0 %v233, 112
      %v528 = vpop.permute.xlu0 %527
      %v530 = vsel %vm235, %v526, 0
      %v533 = vsel %vm297, %v528, 0
      %535 = vmatprep.subr.bf16.mxu0 0
      %536 = vmatpush1.bf16.msra.mxu0 %v533
      %537 = vmatprep.subr.bf16.mxu0 0
      %538 = vmatpush1.bf16.msra.mxu0 0
      %539 = vmatprep.subr.bf16.mxu0 0
      %540 = vmatpush1.bf16.msra.mxu0 0
      %541 = vmatprep.subr.bf16.mxu0 0
      %542 = vmatpush1.bf16.msra.mxu0 0
      %543 = vmatprep.subr.bf16.mxu0 0
      %544 = vmatpush1.bf16.msra.mxu0 0
      %545 = vmatprep.subr.bf16.mxu0 0
      %546 = vmatpush1.bf16.msra.mxu0 0
      %547 = vmatprep.subr.bf16.mxu0 0
      %548 = vmatpush1.bf16.msra.mxu0 0
      %549 = vmatprep.subr.bf16.mxu0 0
      %550 = vmatpush1.bf16.msra.mxu0 0
      %551 = vmatprep.subr.bf16.mxu0 0
      %552 = vmatpush1.bf16.msra.mxu0 0
      %553 = vmatprep.subr.bf16.mxu0 0
      %554 = vmatpush1.bf16.msra.mxu0 0
      %555 = vmatprep.subr.bf16.mxu0 0
      %556 = vmatpush1.bf16.msra.mxu0 0
      %557 = vmatprep.subr.bf16.mxu0 0
      %558 = vmatpush1.bf16.msra.mxu0 0
      %559 = vmatprep.subr.bf16.mxu0 0
      %560 = vmatpush1.bf16.msra.mxu0 0
      %561 = vmatprep.subr.bf16.mxu0 0
      %562 = vmatpush1.bf16.msra.mxu0 0
      %563 = vmatprep.subr.bf16.mxu0 0
      %564 = vmatpush1.bf16.msra.mxu0 0
      %565 = vmatprep.subr.bf16.mxu0 0
      %566 = vmatpush1.bf16.msra.mxu0 0
      %567 = vmatprep.mubr.bf16.mxu0 0
      %568 = vmatmul.mubr.bf16.gmra.mrb[0].mxu0 %v530
      %v569 = vpop.f32.mrb[0].mxu0
      %v570 = vadd.f32 0.0, %v569
      %v571 = vpop.f32.mrb[0].mxu0
      %v572 = vpop.f32.mrb[0].mxu0
      %v573 = vpop.f32.mrb[0].mxu0
      %574 = vdwg.mxu0
      %576 = vrot.lane.b32.xlu0 %v570, 16
      %v577 = vpop.permute.xlu0 %576
      %vm579 = vcmask 195712
      %580 = vst.msk [vmem:[%s226] sm:$0xff] %vm579, %v577
      %s581 = scalar_lea.vmem %s3, 24
      %v582 = vld [vmem:[%s581] sm:$0xff]
      %583 = vrot.lane.b32.xlu0 %v229, 104
      %v584 = vpop.permute.xlu0 %583
      %585 = vrot.lane.b32.xlu0 %v231, 104
      %v586 = vpop.permute.xlu0 %585
      %v588 = vsel %vm235, %v584, 0
      %v591 = vsel %vm235, %v586, 0
      %593 = vmatprep.subr.bf16.mxu0 0
      %594 = vmatpush1.bf16.xpose.msra.mxu0 %v591
      %595 = vmatprep.subr.bf16.mxu0 0
      %596 = vmatpush1.bf16.xpose.msra.mxu0 0
      %597 = vmatprep.subr.bf16.mxu0 0
      %598 = vmatpush1.bf16.xpose.msra.mxu0 0
      %599 = vmatprep.subr.bf16.mxu0 0
      %600 = vmatpush1.bf16.xpose.msra.mxu0 0
      %601 = vmatprep.subr.bf16.mxu0 0
      %602 = vmatpush1.bf16.xpose.msra.mxu0 0
      %603 = vmatprep.subr.bf16.mxu0 0
      %604 = vmatpush1.bf16.xpose.msra.mxu0 0
      %605 = vmatprep.subr.bf16.mxu0 0
      %606 = vmatpush1.bf16.xpose.msra.mxu0 0
      %607 = vmatprep.subr.bf16.mxu0 0
      %608 = vmatpush1.bf16.xpose.msra.mxu0 0
      %609 = vmatprep.subr.bf16.mxu0 0
      %610 = vmatpush1.bf16.xpose.msra.mxu0 0
      %611 = vmatprep.subr.bf16.mxu0 0
      %612 = vmatpush1.bf16.xpose.msra.mxu0 0
      %613 = vmatprep.subr.bf16.mxu0 0
      %614 = vmatpush1.bf16.xpose.msra.mxu0 0
      %615 = vmatprep.subr.bf16.mxu0 0
      %616 = vmatpush1.bf16.xpose.msra.mxu0 0
      %617 = vmatprep.subr.bf16.mxu0 0
      %618 = vmatpush1.bf16.xpose.msra.mxu0 0
      %619 = vmatprep.subr.bf16.mxu0 0
      %620 = vmatpush1.bf16.xpose.msra.mxu0 0
      %621 = vmatprep.subr.bf16.mxu0 0
      %622 = vmatpush1.bf16.xpose.msra.mxu0 0
      %623 = vmatprep.subr.bf16.mxu0 0
      %624 = vmatpush1.bf16.xpose.msra.mxu0 0
      %625 = vmatprep.mubr.bf16.mxu0 0
      %626 = vmatmul.mubr.bf16.gmra.mrb[0].mxu0 %v588
      %v627 = vpop.f32.mrb[0].mxu0
      %v628 = vadd.f32 %v582, %v627
      %v629 = vpop.f32.mrb[0].mxu0
      %v630 = vpop.f32.mrb[0].mxu0
      %v631 = vpop.f32.mrb[0].mxu0
      %632 = vdwg.mxu0
      %v633 = vsel %vm235, %v628, -inf
      %634 = vmax.xlane.f32.xlu0 %v633
      %v635 = vpop.xlane.xlu0 %634
      %v636 = vsub.f32 %v628, %v635
      %v637 = vmul.f32 %v636, 1.442695
      %v638 = vpow.pop %v637
      %v639 = vsel %vm235, %v638, 0.0
      %640 = vadd.xlane.f32.xlu0 %v639
      %v641 = vpop.xlane.xlu0 %640
      %v642 = vrcp.pop %v641
      %v643 = vmul.f32 %v638, %v642
      %v644 = vpack.c.bf16 %v643, %v643
      %645 = vrot.lane.b32.xlu0 %v233, 104
      %v646 = vpop.permute.xlu0 %645
      %v648 = vsel %vm235, %v644, 0
      %v651 = vsel %vm297, %v646, 0
      %653 = vmatprep.subr.bf16.mxu0 0
      %654 = vmatpush1.bf16.msra.mxu0 %v651
      %655 = vmatprep.subr.bf16.mxu0 0
      %656 = vmatpush1.bf16.msra.mxu0 0
      %657 = vmatprep.subr.bf16.mxu0 0
      %658 = vmatpush1.bf16.msra.mxu0 0
      %659 = vmatprep.subr.bf16.mxu0 0
      %660 = vmatpush1.bf16.msra.mxu0 0
      %661 = vmatprep.subr.bf16.mxu0 0
      %662 = vmatpush1.bf16.msra.mxu0 0
      %663 = vmatprep.subr.bf16.mxu0 0
      %664 = vmatpush1.bf16.msra.mxu0 0
      %665 = vmatprep.subr.bf16.mxu0 0
      %666 = vmatpush1.bf16.msra.mxu0 0
      %667 = vmatprep.subr.bf16.mxu0 0
      %668 = vmatpush1.bf16.msra.mxu0 0
      %669 = vmatprep.subr.bf16.mxu0 0
      %670 = vmatpush1.bf16.msra.mxu0 0
      %671 = vmatprep.subr.bf16.mxu0 0
      %672 = vmatpush1.bf16.msra.mxu0 0
      %673 = vmatprep.subr.bf16.mxu0 0
      %674 = vmatpush1.bf16.msra.mxu0 0
      %675 = vmatprep.subr.bf16.mxu0 0
      %676 = vmatpush1.bf16.msra.mxu0 0
      %677 = vmatprep.subr.bf16.mxu0 0
      %678 = vmatpush1.bf16.msra.mxu0 0
      %679 = vmatprep.subr.bf16.mxu0 0
      %680 = vmatpush1.bf16.msra.mxu0 0
      %681 = vmatprep.subr.bf16.mxu0 0
      %682 = vmatpush1.bf16.msra.mxu0 0
      %683 = vmatprep.subr.bf16.mxu0 0
      %684 = vmatpush1.bf16.msra.mxu0 0
      %685 = vmatprep.mubr.bf16.mxu0 0
      %686 = vmatmul.mubr.bf16.gmra.mrb[0].mxu0 %v648
      %v687 = vpop.f32.mrb[0].mxu0
      %v688 = vadd.f32 0.0, %v687
      %v689 = vpop.f32.mrb[0].mxu0
      %v690 = vpop.f32.mrb[0].mxu0
      %v691 = vpop.f32.mrb[0].mxu0
      %692 = vdwg.mxu0
      %694 = vrot.lane.b32.xlu0 %v688, 24
      %v695 = vpop.permute.xlu0 %694
      %vm697 = vcmask 261312
      %698 = vst.msk [vmem:[%s226] sm:$0xff] %vm697, %v695
      %p699 = scmp.lt.s32.totalorder %s15, 1
      %s700 = scalar_select %p699, %s15, 1
      %s701 = smul.addr %s700, 8
      %s702 = scalar_lea.vmem %s4, %s701
      // Predicated region
      $region37: #{_lambda_.20} parent=35 // pred_check
        %p703 = pneg %p132
      $region38: #{_lambda_.20} parent=35 // pred_check_branch
        %705 = sbr.rel (%p703) target = $region40
      $region39: #{_lambda_.20} parent=35 // pred_region
        _
      $region40: #{_lambda_.20} parent=35 // pred_fallthru
        _
    $region36: #{_lambda_.20} parent=5 // pred_fallthru
      _
    %p706 = scmp.le.s32.totalorder 2, %s10
    // Predicated region
    $region41: #{_lambda_.20} parent=5 // pred_check
      %p707 = pneg %p706
    $region42: #{_lambda_.20} parent=5 // pred_check_branch
      %709 = sbr.rel (%p707) target = $region44
    $region43: #{_lambda_.20} parent=5 // pred_region
      %s710 = ssub.s32 %s10, 2
      // Predicated region
      $region45: #{_lambda_.20} parent=43 // pred_check
        %p711 = pneg %p138
      $region46: #{_lambda_.20} parent=43 // pred_check_branch
        %713 = sbr.rel (%p711) target = $region48
      $region47: #{_lambda_.20} parent=43 // pred_region
        %p714 = scmp.lt.s32.totalorder %s16, 1
        %s715 = scalar_select %p714, %s16, 1
        %s716 = smul.addr %s715, 8
        %s717 = scalar_lea.vmem %s4, %s716
      $region48: #{_lambda_.20} parent=43 // pred_fallthru
        _
    $region44: #{_lambda_.20} parent=5 // pred_fallthru
      _
  $region6: #{_lambda_.20} parent=0 // loop_footer
    %s14 = sadd.s32 1, %s10
  $region7: #{_lambda_.20} parent=0 // loop_footer_branch
    %9 = sbr.rel target = $region3
  $region8: #{_lambda_.20} parent=0 // loop_exit
    _

// kernel: _lambda_.22
$region0: #{_lambda_.22}
  #allocation0 [shape = 'u32[]', space=smem, size = 0x4, offset = 0x4, fixed_abs, tag = 'smem constant byte address 0x4 - core index']
  #allocation1 [shape = 'u32[144,128]{1,0:T(1,128)}', space=vmem, size = 0x12000, scoped, tag = 'internal scratch']
  #allocation2 [shape = 'f32[16,32]{1,0:T(8,128)}', space=vmem, size = 0x2000, scoped, tag = 'scratch operand']
  %s0 = inlined_call_operand.vmem [shape: f32[16,32], index: 0, kind: input, shape index: {}]
  %s1 = inlined_call_operand.vmem [shape: f32[1,32], index: 1, kind: input, shape index: {}]
  %s2 = inlined_call_operand.vmem [shape: bf16[32,32], index: 2, kind: input, shape index: {}]
  %s3 = inlined_call_operand.vmem [shape: f32[16,32], index: 3, kind: output, shape index: {}]
  %s4 = sld [smem:[#allocation0]]
  $region30: #{_lambda_.22} parent=0
    _
  %s6 = ssub.s32 1, %s4
  %s7 = scalar_select 0, %s6, %s4
  // Predicated region
  $region2: #{_lambda_.22} parent=0 // pred_check
    _
  $region3: #{_lambda_.22} parent=0 // pred_check_branch
    %9 = sbr.rel (0) target = $region5
  $region4: #{_lambda_.22} parent=0 // pred_region
    _
  $region5: #{_lambda_.22} parent=0 // pred_fallthru
    _
  // Predicated region
  $region6: #{_lambda_.22} parent=0 // pred_check
    _
  $region7: #{_lambda_.22} parent=0 // pred_check_branch
    %11 = sbr.rel (0) target = $region9
  $region8: #{_lambda_.22} parent=0 // pred_region
    _
  $region9: #{_lambda_.22} parent=0 // pred_fallthru
    _
  // Predicated region
  $region10: #{_lambda_.22} parent=0 // pred_check
    _
  $region11: #{_lambda_.22} parent=0 // pred_check_branch
    %13 = sbr.rel (0) target = $region13
  $region12: #{_lambda_.22} parent=0 // pred_region
    _
  $region13: #{_lambda_.22} parent=0 // pred_fallthru
    _
  %p15 = scmp.eq.s32.totalorder 0, 0
  // Predicated region
  $region14: #{_lambda_.22} parent=0 // pred_check
    %p16 = pneg %p15
  $region15: #{_lambda_.22} parent=0 // pred_check_branch
    %18 = sbr.rel (%p16) target = $region17
  $region16: #{_lambda_.22} parent=0 // pred_region
    %vm19 = vcmask 261120
    %20 = vst.msk [vmem:[#allocation2] sm:$0xff] %vm19, 0.0
    %21 = vst.msk [vmem:[#allocation2 + $0x8] sm:$0xff] %vm19, 0.0
  $region17: #{_lambda_.22} parent=0 // pred_fallthru
    _
  %v22 = vld [vmem:[%s0] sm:$0xff]
  %v23 = vld [vmem:[%s0 + $0x8] sm:$0xff]
  %v24 = vmul.f32 %v22, %v22
  %v25 = vmul.f32 %v23, %v23
  %vm26 = vcmask 261120
  %v27 = vsel %vm26, %v24, 0.0
  %28 = vadd.xlane.f32.xlu0 %v27
  %v29 = vpop.xlane.xlu0 %28
  %v30 = vsel %vm26, %v25, 0.0
  %31 = vadd.xlane.f32.xlu0 %v30
  %v32 = vpop.xlane.xlu0 %31
  %v33 = vrcp.pop 32.0
  %v34 = vmul.f32 %v29, %v33
  %v35 = vmul.f32 %v32, %v33
  %v36 = vadd.f32 %v34, 1e-06
  %v37 = vadd.f32 %v35, 1e-06
  %v38 = vrsqrt.pop %v36
  %v39 = vrsqrt.pop %v37
  %v40 = vmul.f32 %v22, %v38
  %v41 = vmul.f32 %v23, %v39
  %v42 = vld [vmem:[%s1] sm:$0x1]
  %v44 = vlaneseq
  %v45 = vshrl.u32 %v44, 7
  %v46 = vsub.s32 0, %v45
  %v47 = vrot.slane %v42, %v46
  %v49 = vmul.f32 %v40, %v47
  %v50 = vmul.f32 %v41, %v47
  %v51 = vld [vmem:[#allocation2] sm:$0xff]
  %v52 = vld [vmem:[#allocation2 + $0x8] sm:$0xff]
  %v53 = vpack.c.bf16 %v50, %v49
  %v54 = vld [vmem:[%s2] sm:$0xf]
  %v55 = vld [vmem:[%s2 + $0x4] sm:$0xf]
  %v56 = vld [vmem:[%s2 + $0x8] sm:$0xf]
  %v57 = vld [vmem:[%s2 + $0xc] sm:$0xf]
  %v62 = vunpack.c.l.b16 %v54
  %v63 = vunpack.c.l.b16 %v55
  %v64 = vunpack.c.l.b16 %v56
  %v65 = vunpack.c.l.b16 %v57
  %v66 = vpack.c.b16 %v63, %v62
  %v67 = vpack.c.b16 %v65, %v64
  %v71 = vsel %vm26, %v53, 0
  %73 = vmatprep.subr.bf16.mxu0 0
  %74 = vmatpush1.bf16.msra.mxu0 %v66
  %75 = vmatprep.subr.bf16.mxu0 0
  %76 = vmatpush1.bf16.msra.mxu0 %v67
  %77 = vmatprep.subr.bf16.mxu0 0
  %78 = vmatpush1.bf16.msra.mxu0 0
  %79 = vmatprep.subr.bf16.mxu0 0
  %80 = vmatpush1.bf16.msra.mxu0 0
  %81 = vmatprep.subr.bf16.mxu0 0
  %82 = vmatpush1.bf16.msra.mxu0 0
  %83 = vmatprep.subr.bf16.mxu0 0
  %84 = vmatpush1.bf16.msra.mxu0 0
  %85 = vmatprep.subr.bf16.mxu0 0
  %86 = vmatpush1.bf16.msra.mxu0 0
  %87 = vmatprep.subr.bf16.mxu0 0
  %88 = vmatpush1.bf16.msra.mxu0 0
  %89 = vmatprep.subr.bf16.mxu0 0
  %90 = vmatpush1.bf16.msra.mxu0 0
  %91 = vmatprep.subr.bf16.mxu0 0
  %92 = vmatpush1.bf16.msra.mxu0 0
  %93 = vmatprep.subr.bf16.mxu0 0
  %94 = vmatpush1.bf16.msra.mxu0 0
  %95 = vmatprep.subr.bf16.mxu0 0
  %96 = vmatpush1.bf16.msra.mxu0 0
  %97 = vmatprep.subr.bf16.mxu0 0
  %98 = vmatpush1.bf16.msra.mxu0 0
  %99 = vmatprep.subr.bf16.mxu0 0
  %100 = vmatpush1.bf16.msra.mxu0 0
  %101 = vmatprep.subr.bf16.mxu0 0
  %102 = vmatpush1.bf16.msra.mxu0 0
  %103 = vmatprep.subr.bf16.mxu0 0
  %104 = vmatpush1.bf16.msra.mxu0 0
  %105 = vmatprep.mubr.bf16.mxu0 0
  %106 = vmatmul.mubr.bf16.gmra.mrb[0].mxu0 %v71
  %v107 = vpop.f32.mrb[0].mxu0
  %v108 = vadd.f32 0.0, %v107
  %v109 = vpop.f32.mrb[0].mxu0
  %v110 = vpop.f32.mrb[0].mxu0
  %v111 = vadd.f32 0.0, %v110
  %v112 = vpop.f32.mrb[0].mxu0
  %113 = vdwg.mxu0
  %v114 = vadd.f32 %v51, %v108
  %v115 = vadd.f32 %v52, %v111
  %116 = vst.msk [vmem:[#allocation2] sm:$0xff] %vm26, %v114
  %117 = vst.msk [vmem:[#allocation2 + $0x8] sm:$0xff] %vm26, %v115
  // Predicated region
  $region18: #{_lambda_.22} parent=0 // pred_check
    %p118 = pneg %p15
  $region19: #{_lambda_.22} parent=0 // pred_check_branch
    %120 = sbr.rel (%p118) target = $region21
  $region20: #{_lambda_.22} parent=0 // pred_region
    %v121 = vld [vmem:[#allocation2] sm:$0xff]
    %v122 = vld [vmem:[#allocation2 + $0x8] sm:$0xff]
    %123 = vst.msk [vmem:[%s3] sm:$0xff] %vm26, %v121
    %124 = vst.msk [vmem:[%s3 + $0x8] sm:$0xff] %vm26, %v122
  $region21: #{_lambda_.22} parent=0 // pred_fallthru
    _
  // Predicated region
  $region22: #{_lambda_.22} parent=0 // pred_check
    _
  $region23: #{_lambda_.22} parent=0 // pred_check_branch
    %126 = sbr.rel (0) target = $region25
  $region24: #{_lambda_.22} parent=0 // pred_region
    _
  $region25: #{_lambda_.22} parent=0 // pred_fallthru
    _
  // Predicated region
  $region26: #{_lambda_.22} parent=0 // pred_check
    _
  $region27: #{_lambda_.22} parent=0 // pred_check_branch
    %128 = sbr.rel (0) target = $region29
  $region28: #{_lambda_.22} parent=0 // pred_region
    _
  $region29: #{_lambda_.22} parent=0 // pred_fallthru
    _

// kernel: _lambda_.26
$region0: #{_lambda_.26}
  #allocation0 [shape = 'u32[]', space=smem, size = 0x4, offset = 0x4, fixed_abs, tag = 'smem constant byte address 0x4 - core index']
  #allocation1 [shape = 'u32[144,128]{1,0:T(1,128)}', space=vmem, size = 0x12000, scoped, tag = 'internal scratch']
  #allocation2 [shape = 'f32[16,64]{1,0:T(8,128)}', space=vmem, size = 0x2000, scoped, tag = 'scratch operand']
  %s0 = inlined_call_operand.vmem [shape: f32[16,32], index: 0, kind: input, shape index: {}]
  %s1 = inlined_call_operand.vmem [shape: f32[1,32], index: 1, kind: input, shape index: {}]
  %s2 = inlined_call_operand.vmem [shape: bf16[32,64], index: 2, kind: input, shape index: {}]
  %s3 = inlined_call_operand.vmem [shape: f32[16,64], index: 3, kind: output, shape index: {}]
  %s4 = sld [smem:[#allocation0]]
  $region30: #{_lambda_.26} parent=0
    _
  %s6 = ssub.s32 1, %s4
  %s7 = scalar_select 0, %s6, %s4
  // Predicated region
  $region2: #{_lambda_.26} parent=0 // pred_check
    _
  $region3: #{_lambda_.26} parent=0 // pred_check_branch
    %9 = sbr.rel (0) target = $region5
  $region4: #{_lambda_.26} parent=0 // pred_region
    _
  $region5: #{_lambda_.26} parent=0 // pred_fallthru
    _
  // Predicated region
  $region6: #{_lambda_.26} parent=0 // pred_check
    _
  $region7: #{_lambda_.26} parent=0 // pred_check_branch
    %11 = sbr.rel (0) target = $region9
  $region8: #{_lambda_.26} parent=0 // pred_region
    _
  $region9: #{_lambda_.26} parent=0 // pred_fallthru
    _
  // Predicated region
  $region10: #{_lambda_.26} parent=0 // pred_check
    _
  $region11: #{_lambda_.26} parent=0 // pred_check_branch
    %13 = sbr.rel (0) target = $region13
  $region12: #{_lambda_.26} parent=0 // pred_region
    _
  $region13: #{_lambda_.26} parent=0 // pred_fallthru
    _
  %p15 = scmp.eq.s32.totalorder 0, 0
  // Predicated region
  $region14: #{_lambda_.26} parent=0 // pred_check
    %p16 = pneg %p15
  $region15: #{_lambda_.26} parent=0 // pred_check_branch
    %18 = sbr.rel (%p16) target = $region17
  $region16: #{_lambda_.26} parent=0 // pred_region
    %vm19 = vcmask 523264
    %20 = vst.msk [vmem:[#allocation2] sm:$0xff] %vm19, 0.0
    %21 = vst.msk [vmem:[#allocation2 + $0x8] sm:$0xff] %vm19, 0.0
  $region17: #{_lambda_.26} parent=0 // pred_fallthru
    _
  %v22 = vld [vmem:[%s0] sm:$0xff]
  %v23 = vld [vmem:[%s0 + $0x8] sm:$0xff]
  %v24 = vmul.f32 %v22, %v22
  %v25 = vmul.f32 %v23, %v23
  %vm26 = vcmask 261120
  %v27 = vsel %vm26, %v24, 0.0
  %28 = vadd.xlane.f32.xlu0 %v27
  %v29 = vpop.xlane.xlu0 %28
  %v30 = vsel %vm26, %v25, 0.0
  %31 = vadd.xlane.f32.xlu0 %v30
  %v32 = vpop.xlane.xlu0 %31
  %v33 = vrcp.pop 32.0
  %v34 = vmul.f32 %v29, %v33
  %v35 = vmul.f32 %v32, %v33
  %v36 = vadd.f32 %v34, 1e-06
  %v37 = vadd.f32 %v35, 1e-06
  %v38 = vrsqrt.pop %v36
  %v39 = vrsqrt.pop %v37
  %v40 = vmul.f32 %v22, %v38
  %v41 = vmul.f32 %v23, %v39
  %v42 = vld [vmem:[%s1] sm:$0x1]
  %v44 = vlaneseq
  %v45 = vshrl.u32 %v44, 7
  %v46 = vsub.s32 0, %v45
  %v47 = vrot.slane %v42, %v46
  %v49 = vmul.f32 %v40, %v47
  %v50 = vmul.f32 %v41, %v47
  %v51 = vld [vmem:[#allocation2] sm:$0xff]
  %v52 = vld [vmem:[#allocation2 + $0x8] sm:$0xff]
  %v53 = vpack.c.bf16 %v50, %v49
  %v54 = vld [vmem:[%s2] sm:$0xf]
  %v55 = vld [vmem:[%s2 + $0x4] sm:$0xf]
  %v56 = vld [vmem:[%s2 + $0x8] sm:$0xf]
  %v57 = vld [vmem:[%s2 + $0xc] sm:$0xf]
  %v62 = vunpack.c.l.b16 %v54
  %v63 = vunpack.c.l.b16 %v55
  %v64 = vunpack.c.l.b16 %v56
  %v65 = vunpack.c.l.b16 %v57
  %v66 = vpack.c.b16 %v63, %v62
  %v67 = vpack.c.b16 %v65, %v64
  %v71 = vsel %vm26, %v53, 0
  %73 = vmatprep.subr.bf16.mxu0 0
  %74 = vmatpush1.bf16.msra.mxu0 %v66
  %75 = vmatprep.subr.bf16.mxu0 0
  %76 = vmatpush1.bf16.msra.mxu0 %v67
  %77 = vmatprep.subr.bf16.mxu0 0
  %78 = vmatpush1.bf16.msra.mxu0 0
  %79 = vmatprep.subr.bf16.mxu0 0
  %80 = vmatpush1.bf16.msra.mxu0 0
  %81 = vmatprep.subr.bf16.mxu0 0
  %82 = vmatpush1.bf16.msra.mxu0 0
  %83 = vmatprep.subr.bf16.mxu0 0
  %84 = vmatpush1.bf16.msra.mxu0 0
  %85 = vmatprep.subr.bf16.mxu0 0
  %86 = vmatpush1.bf16.msra.mxu0 0
  %87 = vmatprep.subr.bf16.mxu0 0
  %88 = vmatpush1.bf16.msra.mxu0 0
  %89 = vmatprep.subr.bf16.mxu0 0
  %90 = vmatpush1.bf16.msra.mxu0 0
  %91 = vmatprep.subr.bf16.mxu0 0
  %92 = vmatpush1.bf16.msra.mxu0 0
  %93 = vmatprep.subr.bf16.mxu0 0
  %94 = vmatpush1.bf16.msra.mxu0 0
  %95 = vmatprep.subr.bf16.mxu0 0
  %96 = vmatpush1.bf16.msra.mxu0 0
  %97 = vmatprep.subr.bf16.mxu0 0
  %98 = vmatpush1.bf16.msra.mxu0 0
  %99 = vmatprep.subr.bf16.mxu0 0
  %100 = vmatpush1.bf16.msra.mxu0 0
  %101 = vmatprep.subr.bf16.mxu0 0
  %102 = vmatpush1.bf16.msra.mxu0 0
  %103 = vmatprep.subr.bf16.mxu0 0
  %104 = vmatpush1.bf16.msra.mxu0 0
  %105 = vmatprep.mubr.bf16.mxu0 0
  %106 = vmatmul.mubr.bf16.gmra.mrb[0].mxu0 %v71
  %v107 = vpop.f32.mrb[0].mxu0
  %v108 = vadd.f32 0.0, %v107
  %v109 = vpop.f32.mrb[0].mxu0
  %v110 = vpop.f32.mrb[0].mxu0
  %v111 = vadd.f32 0.0, %v110
  %v112 = vpop.f32.mrb[0].mxu0
  %113 = vdwg.mxu0
  %v114 = vadd.f32 %v51, %v108
  %v115 = vadd.f32 %v52, %v111
  %vm116 = vcmask 523264
  %117 = vst.msk [vmem:[#allocation2] sm:$0xff] %vm116, %v114
  %118 = vst.msk [vmem:[#allocation2 + $0x8] sm:$0xff] %vm116, %v115
  // Predicated region
  $region18: #{_lambda_.26} parent=0 // pred_check
    %p119 = pneg %p15
  $region19: #{_lambda_.26} parent=0 // pred_check_branch
    %121 = sbr.rel (%p119) target = $region21
  $region20: #{_lambda_.26} parent=0 // pred_region
    %v122 = vld [vmem:[#allocation2] sm:$0xff]
    %v123 = vld [vmem:[#allocation2 + $0x8] sm:$0xff]
    %124 = vst.msk [vmem:[%s3] sm:$0xff] %vm116, %v122
    %125 = vst.msk [vmem:[%s3 + $0x8] sm:$0xff] %vm116, %v123
  $region21: #{_lambda_.26} parent=0 // pred_fallthru
    _
  // Predicated region
  $region22: #{_lambda_.26} parent=0 // pred_check
    _
  $region23: #{_lambda_.26} parent=0 // pred_check_branch
    %127 = sbr.rel (0) target = $region25
  $region24: #{_lambda_.26} parent=0 // pred_region
    _
  $region25: #{_lambda_.26} parent=0 // pred_fallthru
    _
  // Predicated region
  $region26: #{_lambda_.26} parent=0 // pred_check
    _
  $region27: #{_lambda_.26} parent=0 // pred_check_branch
    %129 = sbr.rel (0) target = $region29
  $region28: #{_lambda_.26} parent=0 // pred_region
    _
  $region29: #{_lambda_.26} parent=0 // pred_fallthru
    _

// kernel: _lambda_.24
$region0: #{_lambda_.24}
  #allocation0 [shape = 'u32[]', space=smem, size = 0x4, offset = 0x4, fixed_abs, tag = 'smem constant byte address 0x4 - core index']
  #allocation1 [shape = 'u32[144,128]{1,0:T(1,128)}', space=vmem, size = 0x12000, scoped, tag = 'internal scratch']
  %s0 = inlined_call_operand.vmem [shape: f32[2,8,32], index: 0, kind: input, shape index: {}]
  %s1 = inlined_call_operand.vmem [shape: f32[2,8,32], index: 1, kind: input, shape index: {}]
  %s2 = inlined_call_operand.vmem [shape: f32[2,8,32], index: 2, kind: input, shape index: {}]
  %s3 = inlined_call_operand.vmem [shape: f32[2,8,32], index: 3, kind: output, shape index: {}]
  %s4 = sld [smem:[#allocation0]]
  $region45: #{_lambda_.24} parent=0
    _
  %s6 = ssub.s32 1, %s4
  %s7 = scalar_select 0, %s6, %s4
  loop: start=0, step=1, limit=4
  $region2: #{_lambda_.24} parent=0 // loop_pre_header
    _
  $region3: #{_lambda_.24} parent=0 // loop_header
    %s9 = sphi 0, %s13
    %p10 = scmp.ge.s32.totalorder %s9, 4
    %s19 = sphi 0, %s21
    %s22 = sphi 0, %s19
    %s23 = sphi 0, %s22
    %s39 = sphi 0, %s23
    %s45 = sphi 0, %s47
    %s48 = sphi 0, %s45
    %s49 = sphi 0, %s48
    %s65 = sphi 0, %s49
    %s71 = sphi 0, %s73
    %s74 = sphi 0, %s71
    %s75 = sphi 0, %s74
    %s91 = sphi 0, %s75
    %s97 = sphi 0, %s99
    %s100 = sphi 0, %s97
    %s101 = sphi 0, %s100
    %s117 = sphi 0, %s101
  $region4: #{_lambda_.24} parent=0 // loop_header_branch
    %12 = sbr.rel (%p10) target = $region8
  $region5: #{_lambda_.24} parent=0 // loop_body
    %s14 = ssub.s32 %s9, 1
    %s15 = ssub.s32 %s9, 2
    %s16 = sadd.s32 %s9, 1
    %s17 = ssub.s32 %s9, %s16
    %p18 = scmp.eq.s32.totalorder %s17, 0
    %s20 = sadd.s32 %s19, 1
    %s21 = scalar_select %p18, %s19, %s20
    %p24 = pneg %p18
    %p25 = scmp.eq.s32.totalorder %s9, 1
    %p26 = por %p24, %p25
    %p27 = scmp.ne.s32.totalorder %s19, %s22
    %p28 = scmp.eq.s32.totalorder %s9, 0
    %p29 = por %p27, %p28
    %p30 = scmp.ne.s32.totalorder %s19, %s22
    %p31 = scmp.eq.s32.totalorder %s14, 1
    %p32 = por %p30, %p31
    %p33 = scmp.ne.s32.totalorder %s22, %s23
    %p34 = scmp.eq.s32.totalorder %s14, 0
    %p35 = por %p33, %p34
    %p36 = scmp.ne.s32.totalorder %s22, %s23
    %p37 = scmp.eq.s32.totalorder %s15, 1
    %p38 = por %p36, %p37
    %p40 = scmp.ne.s32.totalorder %s23, %s39
    %p41 = scmp.eq.s32.totalorder %s15, 0
    %p42 = por %p40, %p41
    %s43 = ssub.s32 %s9, %s16
    %p44 = scmp.eq.s32.totalorder %s43, 0
    %s46 = sadd.s32 %s45, 1
    %s47 = scalar_select %p44, %s45, %s46
    %p50 = pneg %p44
    %p51 = scmp.eq.s32.totalorder %s9, 1
    %p52 = por %p50, %p51
    %p53 = scmp.ne.s32.totalorder %s45, %s48
    %p54 = scmp.eq.s32.totalorder %s9, 0
    %p55 = por %p53, %p54
    %p56 = scmp.ne.s32.totalorder %s45, %s48
    %p57 = scmp.eq.s32.totalorder %s14, 1
    %p58 = por %p56, %p57
    %p59 = scmp.ne.s32.totalorder %s48, %s49
    %p60 = scmp.eq.s32.totalorder %s14, 0
    %p61 = por %p59, %p60
    %p62 = scmp.ne.s32.totalorder %s48, %s49
    %p63 = scmp.eq.s32.totalorder %s15, 1
    %p64 = por %p62, %p63
    %p66 = scmp.ne.s32.totalorder %s49, %s65
    %p67 = scmp.eq.s32.totalorder %s15, 0
    %p68 = por %p66, %p67
    %s69 = ssub.s32 %s9, %s16
    %p70 = scmp.eq.s32.totalorder %s69, 0
    %s72 = sadd.s32 %s71, 1
    %s73 = scalar_select %p70, %s71, %s72
    %p76 = pneg %p70
    %p77 = scmp.eq.s32.totalorder %s9, 1
    %p78 = por %p76, %p77
    %p79 = scmp.ne.s32.totalorder %s71, %s74
    %p80 = scmp.eq.s32.totalorder %s9, 0
    %p81 = por %p79, %p80
    %p82 = scmp.ne.s32.totalorder %s71, %s74
    %p83 = scmp.eq.s32.totalorder %s14, 1
    %p84 = por %p82, %p83
    %p85 = scmp.ne.s32.totalorder %s74, %s75
    %p86 = scmp.eq.s32.totalorder %s14, 0
    %p87 = por %p85, %p86
    %p88 = scmp.ne.s32.totalorder %s74, %s75
    %p89 = scmp.eq.s32.totalorder %s15, 1
    %p90 = por %p88, %p89
    %p92 = scmp.ne.s32.totalorder %s75, %s91
    %p93 = scmp.eq.s32.totalorder %s15, 0
    %p94 = por %p92, %p93
    %s95 = ssub.s32 %s9, %s16
    %p96 = scmp.eq.s32.totalorder %s95, 0
    %s98 = sadd.s32 %s97, 1
    %s99 = scalar_select %p96, %s97, %s98
    %p102 = pneg %p96
    %p103 = scmp.eq.s32.totalorder %s9, 1
    %p104 = por %p102, %p103
    %p105 = scmp.ne.s32.totalorder %s97, %s100
    %p106 = scmp.eq.s32.totalorder %s9, 0
    %p107 = por %p105, %p106
    %p108 = scmp.ne.s32.totalorder %s97, %s100
    %p109 = scmp.eq.s32.totalorder %s14, 1
    %p110 = por %p108, %p109
    %p111 = scmp.ne.s32.totalorder %s100, %s101
    %p112 = scmp.eq.s32.totalorder %s14, 0
    %p113 = por %p111, %p112
    %p114 = scmp.ne.s32.totalorder %s100, %s101
    %p115 = scmp.eq.s32.totalorder %s15, 1
    %p116 = por %p114, %p115
    %p118 = scmp.ne.s32.totalorder %s101, %s117
    %p119 = scmp.eq.s32.totalorder %s15, 0
    %p120 = por %p118, %p119
    %p121 = scmp.le.s32.totalorder 1, %s9
    %p122 = scmp.lt.s32.totalorder %s9, 3
    %p123 = pnand %p121, %p122
    %p124 = pneg %p123
    // Predicated region
    $region9: #{_lambda_.24} parent=5 // pred_check
      _
    $region10: #{_lambda_.24} parent=5 // pred_check_branch
      %126 = sbr.rel (%p123) target = $region12
    $region11: #{_lambda_.24} parent=5 // pred_region
      %s127 = ssub.s32 %s9, 1
    $region12: #{_lambda_.24} parent=5 // pred_fallthru
      _
    %p128 = scmp.lt.s32.totalorder %s9, 2
    // Predicated region
    $region13: #{_lambda_.24} parent=5 // pred_check
      %p129 = pneg %p128
    $region14: #{_lambda_.24} parent=5 // pred_check_branch
      %131 = sbr.rel (%p129) target = $region16
    $region15: #{_lambda_.24} parent=5 // pred_region
      // Predicated region
      $region17: #{_lambda_.24} parent=15 // pred_check
        %p132 = pneg %p29
      $region18: #{_lambda_.24} parent=15 // pred_check_branch
        %134 = sbr.rel (%p132) target = $region20
      $region19: #{_lambda_.24} parent=15 // pred_region
        %p135 = scmp.lt.s32.totalorder %s9, 1
        %s136 = scalar_select %p135, %s9, 1
        %s137 = smul.addr %s136, 8
        %s138 = scalar_lea.vmem %s0, %s137
      $region20: #{_lambda_.24} parent=15 // pred_fallthru
        _
      // Predicated region
      $region21: #{_lambda_.24} parent=15 // pred_check
        %p139 = pneg %p55
      $region22: #{_lambda_.24} parent=15 // pred_check_branch
        %141 = sbr.rel (%p139) target = $region24
      $region23: #{_lambda_.24} parent=15 // pred_region
        %p142 = scmp.lt.s32.totalorder %s9, 1
        %s143 = scalar_select %p142, %s9, 1
        %s144 = smul.addr %s143, 8
        %s145 = scalar_lea.vmem %s1, %s144
      $region24: #{_lambda_.24} parent=15 // pred_fallthru
        _
      // Predicated region
      $region25: #{_lambda_.24} parent=15 // pred_check
        %p146 = pneg %p81
      $region26: #{_lambda_.24} parent=15 // pred_check_branch
        %148 = sbr.rel (%p146) target = $region28
      $region27: #{_lambda_.24} parent=15 // pred_region
        %p149 = scmp.lt.s32.totalorder %s9, 1
        %s150 = scalar_select %p149, %s9, 1
        %s151 = smul.addr %s150, 8
        %s152 = scalar_lea.vmem %s2, %s151
      $region28: #{_lambda_.24} parent=15 // pred_fallthru
        _
    $region16: #{_lambda_.24} parent=5 // pred_fallthru
      _
    %p153 = scmp.le.s32.totalorder 1, %s9
    %p154 = scmp.lt.s32.totalorder %s9, 3
    %p155 = pnand %p153, %p154
    %p156 = pneg %p155
    // Predicated region
    $region29: #{_lambda_.24} parent=5 // pred_check
      _
    $region30: #{_lambda_.24} parent=5 // pred_check_branch
      %158 = sbr.rel (%p155) target = $region32
    $region31: #{_lambda_.24} parent=5 // pred_region
      %s159 = ssub.s32 %s9, 1
      %p160 = scmp.lt.s32.totalorder %s14, 1
      %s161 = scalar_select %p160, %s14, 1
      %s162 = smul.addr %s161, 8
      %s163 = scalar_lea.vmem %s0, %s162
      %p164 = pneg %p35
      %p165 = pneg %p32
      %p166 = scmp.lt.s32.totalorder %s14, 1
      %s167 = scalar_select %p166, %s14, 1
      %s168 = smul.addr %s167, 8
      %s169 = scalar_lea.vmem %s1, %s168
      %p170 = pneg %p61
      %p171 = pneg %p58
      %p172 = scmp.lt.s32.totalorder %s14, 1
      %s173 = scalar_select %p172, %s14, 1
      %s174 = smul.addr %s173, 8
      %s175 = scalar_lea.vmem %s2, %s174
      %p176 = pneg %p87
      %p177 = pneg %p84
      %p178 = pneg %p113
      %p179 = pneg %p110
      %p180 = scmp.lt.s32.totalorder %s14, 1
      %s181 = scalar_select %p180, %s14, 1
      %s182 = smul.addr %s181, 8
      %s183 = scalar_lea.vmem %s3, %s182
      %p184 = scmp.lt.s32.totalorder %s14, 1
      %s185 = scalar_select %p184, %s14, 1
      %s186 = smul.addr %s185, 8
      %s187 = scalar_lea.vmem %s0, %s186
      %p188 = scmp.lt.s32.totalorder %s14, 1
      %s189 = scalar_select %p188, %s14, 1
      %s190 = smul.addr %s189, 8
      %s191 = scalar_lea.vmem %s1, %s190
      %p192 = scmp.lt.s32.totalorder %s14, 1
      %s193 = scalar_select %p192, %s14, 1
      %s194 = smul.addr %s193, 8
      %s195 = scalar_lea.vmem %s2, %s194
      %p196 = scmp.lt.s32.totalorder %s14, 1
      %s197 = scalar_select %p196, %s14, 1
      %s198 = smul.addr %s197, 8
      %s199 = scalar_lea.vmem %s3, %s198
      %v201 = vld [vmem:[%s187] sm:$0xff]
      %v202 = vpack.c.bf16 %v201, %v201
      %v203 = vld [vmem:[%s191] sm:$0xff]
      %v204 = vpack.c.bf16 %v203, %v203
      %v205 = vld [vmem:[%s195] sm:$0xff]
      %v206 = vpack.c.bf16 %v205, %v205
      %vm207 = vcmask 64512
      %v209 = vsel %vm207, %v202, 0
      %v212 = vsel %vm207, %v204, 0
      %214 = vmatprep.subr.bf16.mxu0 0
      %215 = vmatpush1.bf16.xpose.msra.mxu0 %v212
      %216 = vmatprep.subr.bf16.mxu0 0
      %217 = vmatpush1.bf16.xpose.msra.mxu0 0
      %218 = vmatprep.subr.bf16.mxu0 0
      %219 = vmatpush1.bf16.xpose.msra.mxu0 0
      %220 = vmatprep.subr.bf16.mxu0 0
      %221 = vmatpush1.bf16.xpose.msra.mxu0 0
      %222 = vmatprep.subr.bf16.mxu0 0
      %223 = vmatpush1.bf16.xpose.msra.mxu0 0
      %224 = vmatprep.subr.bf16.mxu0 0
      %225 = vmatpush1.bf16.xpose.msra.mxu0 0
      %226 = vmatprep.subr.bf16.mxu0 0
      %227 = vmatpush1.bf16.xpose.msra.mxu0 0
      %228 = vmatprep.subr.bf16.mxu0 0
      %229 = vmatpush1.bf16.xpose.msra.mxu0 0
      %230 = vmatprep.subr.bf16.mxu0 0
      %231 = vmatpush1.bf16.xpose.msra.mxu0 0
      %232 = vmatprep.subr.bf16.mxu0 0
      %233 = vmatpush1.bf16.xpose.msra.mxu0 0
      %234 = vmatprep.subr.bf16.mxu0 0
      %235 = vmatpush1.bf16.xpose.msra.mxu0 0
      %236 = vmatprep.subr.bf16.mxu0 0
      %237 = vmatpush1.bf16.xpose.msra.mxu0 0
      %238 = vmatprep.subr.bf16.mxu0 0
      %239 = vmatpush1.bf16.xpose.msra.mxu0 0
      %240 = vmatprep.subr.bf16.mxu0 0
      %241 = vmatpush1.bf16.xpose.msra.mxu0 0
      %242 = vmatprep.subr.bf16.mxu0 0
      %243 = vmatpush1.bf16.xpose.msra.mxu0 0
      %244 = vmatprep.subr.bf16.mxu0 0
      %245 = vmatpush1.bf16.xpose.msra.mxu0 0
      %246 = vmatprep.mubr.bf16.mxu0 0
      %247 = vmatmul.mubr.bf16.gmra.mrb[0].mxu0 %v209
      %v248 = vpop.f32.mrb[0].mxu0
      %v249 = vadd.f32 0.0, %v248
      %v250 = vpop.f32.mrb[0].mxu0
      %v251 = vpop.f32.mrb[0].mxu0
      %v252 = vpop.f32.mrb[0].mxu0
      %253 = vdwg.mxu0
      %v254 = vsel %vm207, %v249, -inf
      %255 = vmax.xlane.f32.xlu0 %v254
      %v256 = vpop.xlane.xlu0 %255
      %v257 = vsub.f32 %v249, %v256
      %v258 = vmul.f32 %v257, 1.442695
      %v259 = vpow.pop %v258
      %v260 = vsel %vm207, %v259, 0.0
      %261 = vadd.xlane.f32.xlu0 %v260
      %v262 = vpop.xlane.xlu0 %261
      %v263 = vrcp.pop %v262
      %v264 = vmul.f32 %v259, %v263
      %v265 = vpack.c.bf16 %v264, %v264
      %v267 = vsel %vm207, %v265, 0
      %vm269 = vcmask 1043456
      %v271 = vsel %vm269, %v206, 0
      %273 = vmatprep.subr.bf16.mxu0 0
      %274 = vmatpush1.bf16.msra.mxu0 %v271
      %275 = vmatprep.subr.bf16.mxu0 0
      %276 = vmatpush1.bf16.msra.mxu0 0
      %277 = vmatprep.subr.bf16.mxu0 0
      %278 = vmatpush1.bf16.msra.mxu0 0
      %279 = vmatprep.subr.bf16.mxu0 0
      %280 = vmatpush1.bf16.msra.mxu0 0
      %281 = vmatprep.subr.bf16.mxu0 0
      %282 = vmatpush1.bf16.msra.mxu0 0
      %283 = vmatprep.subr.bf16.mxu0 0
      %284 = vmatpush1.bf16.msra.mxu0 0
      %285 = vmatprep.subr.bf16.mxu0 0
      %286 = vmatpush1.bf16.msra.mxu0 0
      %287 = vmatprep.subr.bf16.mxu0 0
      %288 = vmatpush1.bf16.msra.mxu0 0
      %289 = vmatprep.subr.bf16.mxu0 0
      %290 = vmatpush1.bf16.msra.mxu0 0
      %291 = vmatprep.subr.bf16.mxu0 0
      %292 = vmatpush1.bf16.msra.mxu0 0
      %293 = vmatprep.subr.bf16.mxu0 0
      %294 = vmatpush1.bf16.msra.mxu0 0
      %295 = vmatprep.subr.bf16.mxu0 0
      %296 = vmatpush1.bf16.msra.mxu0 0
      %297 = vmatprep.subr.bf16.mxu0 0
      %298 = vmatpush1.bf16.msra.mxu0 0
      %299 = vmatprep.subr.bf16.mxu0 0
      %300 = vmatpush1.bf16.msra.mxu0 0
      %301 = vmatprep.subr.bf16.mxu0 0
      %302 = vmatpush1.bf16.msra.mxu0 0
      %303 = vmatprep.subr.bf16.mxu0 0
      %304 = vmatpush1.bf16.msra.mxu0 0
      %305 = vmatprep.mubr.bf16.mxu0 0
      %306 = vmatmul.mubr.bf16.gmra.mrb[0].mxu0 %v267
      %v307 = vpop.f32.mrb[0].mxu0
      %v308 = vadd.f32 0.0, %v307
      %v309 = vpop.f32.mrb[0].mxu0
      %v310 = vpop.f32.mrb[0].mxu0
      %v311 = vpop.f32.mrb[0].mxu0
      %312 = vdwg.mxu0
      %313 = vst.msk [vmem:[%s199] sm:$0xff] %vm207, %v308
      %315 = vrot.lane.b32.xlu0 %v202, 120
      %v316 = vpop.permute.xlu0 %315
      %318 = vrot.lane.b32.xlu0 %v204, 120
      %v319 = vpop.permute.xlu0 %318
      %v321 = vsel %vm207, %v316, 0
      %v324 = vsel %vm207, %v319, 0
      %326 = vmatprep.subr.bf16.mxu0 0
      %327 = vmatpush1.bf16.xpose.msra.mxu0 %v324
      %328 = vmatprep.subr.bf16.mxu0 0
      %329 = vmatpush1.bf16.xpose.msra.mxu0 0
      %330 = vmatprep.subr.bf16.mxu0 0
      %331 = vmatpush1.bf16.xpose.msra.mxu0 0
      %332 = vmatprep.subr.bf16.mxu0 0
      %333 = vmatpush1.bf16.xpose.msra.mxu0 0
      %334 = vmatprep.subr.bf16.mxu0 0
      %335 = vmatpush1.bf16.xpose.msra.mxu0 0
      %336 = vmatprep.subr.bf16.mxu0 0
      %337 = vmatpush1.bf16.xpose.msra.mxu0 0
      %338 = vmatprep.subr.bf16.mxu0 0
      %339 = vmatpush1.bf16.xpose.msra.mxu0 0
      %340 = vmatprep.subr.bf16.mxu0 0
      %341 = vmatpush1.bf16.xpose.msra.mxu0 0
      %342 = vmatprep.subr.bf16.mxu0 0
      %343 = vmatpush1.bf16.xpose.msra.mxu0 0
      %344 = vmatprep.subr.bf16.mxu0 0
      %345 = vmatpush1.bf16.xpose.msra.mxu0 0
      %346 = vmatprep.subr.bf16.mxu0 0
      %347 = vmatpush1.bf16.xpose.msra.mxu0 0
      %348 = vmatprep.subr.bf16.mxu0 0
      %349 = vmatpush1.bf16.xpose.msra.mxu0 0
      %350 = vmatprep.subr.bf16.mxu0 0
      %351 = vmatpush1.bf16.xpose.msra.mxu0 0
      %352 = vmatprep.subr.bf16.mxu0 0
      %353 = vmatpush1.bf16.xpose.msra.mxu0 0
      %354 = vmatprep.subr.bf16.mxu0 0
      %355 = vmatpush1.bf16.xpose.msra.mxu0 0
      %356 = vmatprep.subr.bf16.mxu0 0
      %357 = vmatpush1.bf16.xpose.msra.mxu0 0
      %358 = vmatprep.mubr.bf16.mxu0 0
      %359 = vmatmul.mubr.bf16.gmra.mrb[0].mxu0 %v321
      %v360 = vpop.f32.mrb[0].mxu0
      %v361 = vadd.f32 0.0, %v360
      %v362 = vpop.f32.mrb[0].mxu0
      %v363 = vpop.f32.mrb[0].mxu0
      %v364 = vpop.f32.mrb[0].mxu0
      %365 = vdwg.mxu0
      %v366 = vsel %vm207, %v361, -inf
      %367 = vmax.xlane.f32.xlu0 %v366
      %v368 = vpop.xlane.xlu0 %367
      %v369 = vsub.f32 %v361, %v368
      %v370 = vmul.f32 %v369, 1.442695
      %v371 = vpow.pop %v370
      %v372 = vsel %vm207, %v371, 0.0
      %373 = vadd.xlane.f32.xlu0 %v372
      %v374 = vpop.xlane.xlu0 %373
      %v375 = vrcp.pop %v374
      %v376 = vmul.f32 %v371, %v375
      %v377 = vpack.c.bf16 %v376, %v376
      %379 = vrot.lane.b32.xlu0 %v206, 120
      %v380 = vpop.permute.xlu0 %379
      %v382 = vsel %vm207, %v377, 0
      %v385 = vsel %vm269, %v380, 0
      %387 = vmatprep.subr.bf16.mxu0 0
      %388 = vmatpush1.bf16.msra.mxu0 %v385
      %389 = vmatprep.subr.bf16.mxu0 0
      %390 = vmatpush1.bf16.msra.mxu0 0
      %391 = vmatprep.subr.bf16.mxu0 0
      %392 = vmatpush1.bf16.msra.mxu0 0
      %393 = vmatprep.subr.bf16.mxu0 0
      %394 = vmatpush1.bf16.msra.mxu0 0
      %395 = vmatprep.subr.bf16.mxu0 0
      %396 = vmatpush1.bf16.msra.mxu0 0
      %397 = vmatprep.subr.bf16.mxu0 0
      %398 = vmatpush1.bf16.msra.mxu0 0
      %399 = vmatprep.subr.bf16.mxu0 0
      %400 = vmatpush1.bf16.msra.mxu0 0
      %401 = vmatprep.subr.bf16.mxu0 0
      %402 = vmatpush1.bf16.msra.mxu0 0
      %403 = vmatprep.subr.bf16.mxu0 0
      %404 = vmatpush1.bf16.msra.mxu0 0
      %405 = vmatprep.subr.bf16.mxu0 0
      %406 = vmatpush1.bf16.msra.mxu0 0
      %407 = vmatprep.subr.bf16.mxu0 0
      %408 = vmatpush1.bf16.msra.mxu0 0
      %409 = vmatprep.subr.bf16.mxu0 0
      %410 = vmatpush1.bf16.msra.mxu0 0
      %411 = vmatprep.subr.bf16.mxu0 0
      %412 = vmatpush1.bf16.msra.mxu0 0
      %413 = vmatprep.subr.bf16.mxu0 0
      %414 = vmatpush1.bf16.msra.mxu0 0
      %415 = vmatprep.subr.bf16.mxu0 0
      %416 = vmatpush1.bf16.msra.mxu0 0
      %417 = vmatprep.subr.bf16.mxu0 0
      %418 = vmatpush1.bf16.msra.mxu0 0
      %419 = vmatprep.mubr.bf16.mxu0 0
      %420 = vmatmul.mubr.bf16.gmra.mrb[0].mxu0 %v382
      %v421 = vpop.f32.mrb[0].mxu0
      %v422 = vadd.f32 0.0, %v421
      %v423 = vpop.f32.mrb[0].mxu0
      %v424 = vpop.f32.mrb[0].mxu0
      %v425 = vpop.f32.mrb[0].mxu0
      %426 = vdwg.mxu0
      %428 = vrot.lane.b32.xlu0 %v422, 8
      %v429 = vpop.permute.xlu0 %428
      %vm431 = vcmask 130112
      %432 = vst.msk [vmem:[%s199] sm:$0xff] %vm431, %v429
      %433 = vrot.lane.b32.xlu0 %v202, 112
      %v434 = vpop.permute.xlu0 %433
      %435 = vrot.lane.b32.xlu0 %v204, 112
      %v436 = vpop.permute.xlu0 %435
      %v438 = vsel %vm207, %v434, 0
      %v441 = vsel %vm207, %v436, 0
      %443 = vmatprep.subr.bf16.mxu0 0
      %444 = vmatpush1.bf16.xpose.msra.mxu0 %v441
      %445 = vmatprep.subr.bf16.mxu0 0
      %446 = vmatpush1.bf16.xpose.msra.mxu0 0
      %447 = vmatprep.subr.bf16.mxu0 0
      %448 = vmatpush1.bf16.xpose.msra.mxu0 0
      %449 = vmatprep.subr.bf16.mxu0 0
      %450 = vmatpush1.bf16.xpose.msra.mxu0 0
      %451 = vmatprep.subr.bf16.mxu0 0
      %452 = vmatpush1.bf16.xpose.msra.mxu0 0
      %453 = vmatprep.subr.bf16.mxu0 0
      %454 = vmatpush1.bf16.xpose.msra.mxu0 0
      %455 = vmatprep.subr.bf16.mxu0 0
      %456 = vmatpush1.bf16.xpose.msra.mxu0 0
      %457 = vmatprep.subr.bf16.mxu0 0
      %458 = vmatpush1.bf16.xpose.msra.mxu0 0
      %459 = vmatprep.subr.bf16.mxu0 0
      %460 = vmatpush1.bf16.xpose.msra.mxu0 0
      %461 = vmatprep.subr.bf16.mxu0 0
      %462 = vmatpush1.bf16.xpose.msra.mxu0 0
      %463 = vmatprep.subr.bf16.mxu0 0
      %464 = vmatpush1.bf16.xpose.msra.mxu0 0
      %465 = vmatprep.subr.bf16.mxu0 0
      %466 = vmatpush1.bf16.xpose.msra.mxu0 0
      %467 = vmatprep.subr.bf16.mxu0 0
      %468 = vmatpush1.bf16.xpose.msra.mxu0 0
      %469 = vmatprep.subr.bf16.mxu0 0
      %470 = vmatpush1.bf16.xpose.msra.mxu0 0
      %471 = vmatprep.subr.bf16.mxu0 0
      %472 = vmatpush1.bf16.xpose.msra.mxu0 0
      %473 = vmatprep.subr.bf16.mxu0 0
      %474 = vmatpush1.bf16.xpose.msra.mxu0 0
      %475 = vmatprep.mubr.bf16.mxu0 0
      %476 = vmatmul.mubr.bf16.gmra.mrb[0].mxu0 %v438
      %v477 = vpop.f32.mrb[0].mxu0
      %v478 = vadd.f32 0.0, %v477
      %v479 = vpop.f32.mrb[0].mxu0
      %v480 = vpop.f32.mrb[0].mxu0
      %v481 = vpop.f32.mrb[0].mxu0
      %482 = vdwg.mxu0
      %v483 = vsel %vm207, %v478, -inf
      %484 = vmax.xlane.f32.xlu0 %v483
      %v485 = vpop.xlane.xlu0 %484
      %v486 = vsub.f32 %v478, %v485
      %v487 = vmul.f32 %v486, 1.442695
      %v488 = vpow.pop %v487
      %v489 = vsel %vm207, %v488, 0.0
      %490 = vadd.xlane.f32.xlu0 %v489
      %v491 = vpop.xlane.xlu0 %490
      %v492 = vrcp.pop %v491
      %v493 = vmul.f32 %v488, %v492
      %v494 = vpack.c.bf16 %v493, %v493
      %495 = vrot.lane.b32.xlu0 %v206, 112
      %v496 = vpop.permute.xlu0 %495
      %v498 = vsel %vm207, %v494, 0
      %v501 = vsel %vm269, %v496, 0
      %503 = vmatprep.subr.bf16.mxu0 0
      %504 = vmatpush1.bf16.msra.mxu0 %v501
      %505 = vmatprep.subr.bf16.mxu0 0
      %506 = vmatpush1.bf16.msra.mxu0 0
      %507 = vmatprep.subr.bf16.mxu0 0
      %508 = vmatpush1.bf16.msra.mxu0 0
      %509 = vmatprep.subr.bf16.mxu0 0
      %510 = vmatpush1.bf16.msra.mxu0 0
      %511 = vmatprep.subr.bf16.mxu0 0
      %512 = vmatpush1.bf16.msra.mxu0 0
      %513 = vmatprep.subr.bf16.mxu0 0
      %514 = vmatpush1.bf16.msra.mxu0 0
      %515 = vmatprep.subr.bf16.mxu0 0
      %516 = vmatpush1.bf16.msra.mxu0 0
      %517 = vmatprep.subr.bf16.mxu0 0
      %518 = vmatpush1.bf16.msra.mxu0 0
      %519 = vmatprep.subr.bf16.mxu0 0
      %520 = vmatpush1.bf16.msra.mxu0 0
      %521 = vmatprep.subr.bf16.mxu0 0
      %522 = vmatpush1.bf16.msra.mxu0 0
      %523 = vmatprep.subr.bf16.mxu0 0
      %524 = vmatpush1.bf16.msra.mxu0 0
      %525 = vmatprep.subr.bf16.mxu0 0
      %526 = vmatpush1.bf16.msra.mxu0 0
      %527 = vmatprep.subr.bf16.mxu0 0
      %528 = vmatpush1.bf16.msra.mxu0 0
      %529 = vmatprep.subr.bf16.mxu0 0
      %530 = vmatpush1.bf16.msra.mxu0 0
      %531 = vmatprep.subr.bf16.mxu0 0
      %532 = vmatpush1.bf16.msra.mxu0 0
      %533 = vmatprep.subr.bf16.mxu0 0
      %534 = vmatpush1.bf16.msra.mxu0 0
      %535 = vmatprep.mubr.bf16.mxu0 0
      %536 = vmatmul.mubr.bf16.gmra.mrb[0].mxu0 %v498
      %v537 = vpop.f32.mrb[0].mxu0
      %v538 = vadd.f32 0.0, %v537
      %v539 = vpop.f32.mrb[0].mxu0
      %v540 = vpop.f32.mrb[0].mxu0
      %v541 = vpop.f32.mrb[0].mxu0
      %542 = vdwg.mxu0
      %544 = vrot.lane.b32.xlu0 %v538, 16
      %v545 = vpop.permute.xlu0 %544
      %vm547 = vcmask 195712
      %548 = vst.msk [vmem:[%s199] sm:$0xff] %vm547, %v545
      %549 = vrot.lane.b32.xlu0 %v202, 104
      %v550 = vpop.permute.xlu0 %549
      %551 = vrot.lane.b32.xlu0 %v204, 104
      %v552 = vpop.permute.xlu0 %551
      %v554 = vsel %vm207, %v550, 0
      %v557 = vsel %vm207, %v552, 0
      %559 = vmatprep.subr.bf16.mxu0 0
      %560 = vmatpush1.bf16.xpose.msra.mxu0 %v557
      %561 = vmatprep.subr.bf16.mxu0 0
      %562 = vmatpush1.bf16.xpose.msra.mxu0 0
      %563 = vmatprep.subr.bf16.mxu0 0
      %564 = vmatpush1.bf16.xpose.msra.mxu0 0
      %565 = vmatprep.subr.bf16.mxu0 0
      %566 = vmatpush1.bf16.xpose.msra.mxu0 0
      %567 = vmatprep.subr.bf16.mxu0 0
      %568 = vmatpush1.bf16.xpose.msra.mxu0 0
      %569 = vmatprep.subr.bf16.mxu0 0
      %570 = vmatpush1.bf16.xpose.msra.mxu0 0
      %571 = vmatprep.subr.bf16.mxu0 0
      %572 = vmatpush1.bf16.xpose.msra.mxu0 0
      %573 = vmatprep.subr.bf16.mxu0 0
      %574 = vmatpush1.bf16.xpose.msra.mxu0 0
      %575 = vmatprep.subr.bf16.mxu0 0
      %576 = vmatpush1.bf16.xpose.msra.mxu0 0
      %577 = vmatprep.subr.bf16.mxu0 0
      %578 = vmatpush1.bf16.xpose.msra.mxu0 0
      %579 = vmatprep.subr.bf16.mxu0 0
      %580 = vmatpush1.bf16.xpose.msra.mxu0 0
      %581 = vmatprep.subr.bf16.mxu0 0
      %582 = vmatpush1.bf16.xpose.msra.mxu0 0
      %583 = vmatprep.subr.bf16.mxu0 0
      %584 = vmatpush1.bf16.xpose.msra.mxu0 0
      %585 = vmatprep.subr.bf16.mxu0 0
      %586 = vmatpush1.bf16.xpose.msra.mxu0 0
      %587 = vmatprep.subr.bf16.mxu0 0
      %588 = vmatpush1.bf16.xpose.msra.mxu0 0
      %589 = vmatprep.subr.bf16.mxu0 0
      %590 = vmatpush1.bf16.xpose.msra.mxu0 0
      %591 = vmatprep.mubr.bf16.mxu0 0
      %592 = vmatmul.mubr.bf16.gmra.mrb[0].mxu0 %v554
      %v593 = vpop.f32.mrb[0].mxu0
      %v594 = vadd.f32 0.0, %v593
      %v595 = vpop.f32.mrb[0].mxu0
      %v596 = vpop.f32.mrb[0].mxu0
      %v597 = vpop.f32.mrb[0].mxu0
      %598 = vdwg.mxu0
      %v599 = vsel %vm207, %v594, -inf
      %600 = vmax.xlane.f32.xlu0 %v599
      %v601 = vpop.xlane.xlu0 %600
      %v602 = vsub.f32 %v594, %v601
      %v603 = vmul.f32 %v602, 1.442695
      %v604 = vpow.pop %v603
      %v605 = vsel %vm207, %v604, 0.0
      %606 = vadd.xlane.f32.xlu0 %v605
      %v607 = vpop.xlane.xlu0 %606
      %v608 = vrcp.pop %v607
      %v609 = vmul.f32 %v604, %v608
      %v610 = vpack.c.bf16 %v609, %v609
      %611 = vrot.lane.b32.xlu0 %v206, 104
      %v612 = vpop.permute.xlu0 %611
      %v614 = vsel %vm207, %v610, 0
      %v617 = vsel %vm269, %v612, 0
      %619 = vmatprep.subr.bf16.mxu0 0
      %620 = vmatpush1.bf16.msra.mxu0 %v617
      %621 = vmatprep.subr.bf16.mxu0 0
      %622 = vmatpush1.bf16.msra.mxu0 0
      %623 = vmatprep.subr.bf16.mxu0 0
      %624 = vmatpush1.bf16.msra.mxu0 0
      %625 = vmatprep.subr.bf16.mxu0 0
      %626 = vmatpush1.bf16.msra.mxu0 0
      %627 = vmatprep.subr.bf16.mxu0 0
      %628 = vmatpush1.bf16.msra.mxu0 0
      %629 = vmatprep.subr.bf16.mxu0 0
      %630 = vmatpush1.bf16.msra.mxu0 0
      %631 = vmatprep.subr.bf16.mxu0 0
      %632 = vmatpush1.bf16.msra.mxu0 0
      %633 = vmatprep.subr.bf16.mxu0 0
      %634 = vmatpush1.bf16.msra.mxu0 0
      %635 = vmatprep.subr.bf16.mxu0 0
      %636 = vmatpush1.bf16.msra.mxu0 0
      %637 = vmatprep.subr.bf16.mxu0 0
      %638 = vmatpush1.bf16.msra.mxu0 0
      %639 = vmatprep.subr.bf16.mxu0 0
      %640 = vmatpush1.bf16.msra.mxu0 0
      %641 = vmatprep.subr.bf16.mxu0 0
      %642 = vmatpush1.bf16.msra.mxu0 0
      %643 = vmatprep.subr.bf16.mxu0 0
      %644 = vmatpush1.bf16.msra.mxu0 0
      %645 = vmatprep.subr.bf16.mxu0 0
      %646 = vmatpush1.bf16.msra.mxu0 0
      %647 = vmatprep.subr.bf16.mxu0 0
      %648 = vmatpush1.bf16.msra.mxu0 0
      %649 = vmatprep.subr.bf16.mxu0 0
      %650 = vmatpush1.bf16.msra.mxu0 0
      %651 = vmatprep.mubr.bf16.mxu0 0
      %652 = vmatmul.mubr.bf16.gmra.mrb[0].mxu0 %v614
      %v653 = vpop.f32.mrb[0].mxu0
      %v654 = vadd.f32 0.0, %v653
      %v655 = vpop.f32.mrb[0].mxu0
      %v656 = vpop.f32.mrb[0].mxu0
      %v657 = vpop.f32.mrb[0].mxu0
      %658 = vdwg.mxu0
      %660 = vrot.lane.b32.xlu0 %v654, 24
      %v661 = vpop.permute.xlu0 %660
      %vm663 = vcmask 261312
      %664 = vst.msk [vmem:[%s199] sm:$0xff] %vm663, %v661
      %p665 = scmp.lt.s32.totalorder %s14, 1
      %s666 = scalar_select %p665, %s14, 1
      %s667 = smul.addr %s666, 8
      %s668 = scalar_lea.vmem %s3, %s667
      // Predicated region
      $region33: #{_lambda_.24} parent=31 // pred_check
        %p669 = pneg %p110
      $region34: #{_lambda_.24} parent=31 // pred_check_branch
        %671 = sbr.rel (%p669) target = $region36
      $region35: #{_lambda_.24} parent=31 // pred_region
        _
      $region36: #{_lambda_.24} parent=31 // pred_fallthru
        _
    $region32: #{_lambda_.24} parent=5 // pred_fallthru
      _
    %p672 = scmp.le.s32.totalorder 2, %s9
    // Predicated region
    $region37: #{_lambda_.24} parent=5 // pred_check
      %p673 = pneg %p672
    $region38: #{_lambda_.24} parent=5 // pred_check_branch
      %675 = sbr.rel (%p673) target = $region40
    $region39: #{_lambda_.24} parent=5 // pred_region
      %s676 = ssub.s32 %s9, 2
      // Predicated region
      $region41: #{_lambda_.24} parent=39 // pred_check
        %p677 = pneg %p116
      $region42: #{_lambda_.24} parent=39 // pred_check_branch
        %679 = sbr.rel (%p677) target = $region44
      $region43: #{_lambda_.24} parent=39 // pred_region
        %p680 = scmp.lt.s32.totalorder %s15, 1
        %s681 = scalar_select %p680, %s15, 1
        %s682 = smul.addr %s681, 8
        %s683 = scalar_lea.vmem %s3, %s682
      $region44: #{_lambda_.24} parent=39 // pred_fallthru
        _
    $region40: #{_lambda_.24} parent=5 // pred_fallthru
      _
  $region6: #{_lambda_.24} parent=0 // loop_footer
    %s13 = sadd.s32 1, %s9
  $region7: #{_lambda_.24} parent=0 // loop_footer_branch
    %8 = sbr.rel target = $region3
  $region8: #{_lambda_.24} parent=0 // loop_exit
    _

// kernel: _lambda_.27
$region0: #{_lambda_.27}
  #allocation0 [shape = 'u32[]', space=smem, size = 0x4, offset = 0x4, fixed_abs, tag = 'smem constant byte address 0x4 - core index']
  #allocation1 [shape = 'u32[144,128]{1,0:T(1,128)}', space=vmem, size = 0x12000, scoped, tag = 'internal scratch']
  #allocation2 [shape = 'f32[16,32]{1,0:T(8,128)}', space=vmem, size = 0x2000, scoped, tag = 'scratch operand']
  %s0 = inlined_call_operand.vmem [shape: f32[16,64], index: 0, kind: input, shape index: {}]
  %s1 = inlined_call_operand.vmem [shape: bf16[64,32], index: 1, kind: input, shape index: {}]
  %s2 = inlined_call_operand.vmem [shape: f32[16,32], index: 2, kind: input, shape index: {}]
  %s3 = inlined_call_operand.vmem [shape: f32[16,32], index: 3, kind: output, shape index: {}]
  %s4 = sld [smem:[#allocation0]]
  $region30: #{_lambda_.27} parent=0
    _
  %s6 = ssub.s32 1, %s4
  %s7 = scalar_select 0, %s6, %s4
  // Predicated region
  $region2: #{_lambda_.27} parent=0 // pred_check
    _
  $region3: #{_lambda_.27} parent=0 // pred_check_branch
    %9 = sbr.rel (0) target = $region5
  $region4: #{_lambda_.27} parent=0 // pred_region
    _
  $region5: #{_lambda_.27} parent=0 // pred_fallthru
    _
  // Predicated region
  $region6: #{_lambda_.27} parent=0 // pred_check
    _
  $region7: #{_lambda_.27} parent=0 // pred_check_branch
    %11 = sbr.rel (0) target = $region9
  $region8: #{_lambda_.27} parent=0 // pred_region
    _
  $region9: #{_lambda_.27} parent=0 // pred_fallthru
    _
  // Predicated region
  $region10: #{_lambda_.27} parent=0 // pred_check
    _
  $region11: #{_lambda_.27} parent=0 // pred_check_branch
    %13 = sbr.rel (0) target = $region13
  $region12: #{_lambda_.27} parent=0 // pred_region
    _
  $region13: #{_lambda_.27} parent=0 // pred_fallthru
    _
  %p15 = scmp.eq.s32.totalorder 0, 0
  // Predicated region
  $region14: #{_lambda_.27} parent=0 // pred_check
    %p16 = pneg %p15
  $region15: #{_lambda_.27} parent=0 // pred_check_branch
    %18 = sbr.rel (%p16) target = $region17
  $region16: #{_lambda_.27} parent=0 // pred_region
    %vm19 = vcmask 261120
    %20 = vst.msk [vmem:[#allocation2] sm:$0xff] %vm19, 0.0
    %21 = vst.msk [vmem:[#allocation2 + $0x8] sm:$0xff] %vm19, 0.0
  $region17: #{_lambda_.27} parent=0 // pred_fallthru
    _
  %v22 = vld [vmem:[%s0] sm:$0xff]
  %v23 = vld [vmem:[%s0 + $0x8] sm:$0xff]
  %v24 = vmax.f32 %v22, 0.0
  %v25 = vmax.f32 %v23, 0.0
  %v26 = vld [vmem:[#allocation2] sm:$0xff]
  %v27 = vld [vmem:[#allocation2 + $0x8] sm:$0xff]
  %v28 = vpack.c.bf16 %v25, %v24
  %v29 = vld [vmem:[%s1] sm:$0xf]
  %v30 = vld [vmem:[%s1 + $0x4] sm:$0xf]
  %v31 = vld [vmem:[%s1 + $0x8] sm:$0xf]
  %v32 = vld [vmem:[%s1 + $0xc] sm:$0xf]
  %v33 = vld [vmem:[%s1 + $0x10] sm:$0xf]
  %v34 = vld [vmem:[%s1 + $0x14] sm:$0xf]
  %v35 = vld [vmem:[%s1 + $0x18] sm:$0xf]
  %v36 = vld [vmem:[%s1 + $0x1c] sm:$0xf]
  %v45 = vunpack.c.l.b16 %v29
  %v46 = vunpack.c.l.b16 %v30
  %v47 = vunpack.c.l.b16 %v31
  %v48 = vunpack.c.l.b16 %v32
  %v49 = vunpack.c.l.b16 %v33
  %v50 = vunpack.c.l.b16 %v34
  %v51 = vunpack.c.l.b16 %v35
  %v52 = vunpack.c.l.b16 %v36
  %v53 = vpack.c.b16 %v46, %v45
  %v54 = vpack.c.b16 %v48, %v47
  %v55 = vpack.c.b16 %v50, %v49
  %v56 = vpack.c.b16 %v52, %v51
  %vm61 = vcmask 523264
  %v63 = vsel %vm61, %v28, 0
  %65 = vmatprep.subr.bf16.mxu0 0
  %66 = vmatpush1.bf16.msra.mxu0 %v53
  %67 = vmatprep.subr.bf16.mxu0 0
  %68 = vmatpush1.bf16.msra.mxu0 %v54
  %69 = vmatprep.subr.bf16.mxu0 0
  %70 = vmatpush1.bf16.msra.mxu0 %v55
  %71 = vmatprep.subr.bf16.mxu0 0
  %72 = vmatpush1.bf16.msra.mxu0 %v56
  %73 = vmatprep.subr.bf16.mxu0 0
  %74 = vmatpush1.bf16.msra.mxu0 0
  %75 = vmatprep.subr.bf16.mxu0 0
  %76 = vmatpush1.bf16.msra.mxu0 0
  %77 = vmatprep.subr.bf16.mxu0 0
  %78 = vmatpush1.bf16.msra.mxu0 0
  %79 = vmatprep.subr.bf16.mxu0 0
  %80 = vmatpush1.bf16.msra.mxu0 0
  %81 = vmatprep.subr.bf16.mxu0 0
  %82 = vmatpush1.bf16.msra.mxu0 0
  %83 = vmatprep.subr.bf16.mxu0 0
  %84 = vmatpush1.bf16.msra.mxu0 0
  %85 = vmatprep.subr.bf16.mxu0 0
  %86 = vmatpush1.bf16.msra.mxu0 0
  %87 = vmatprep.subr.bf16.mxu0 0
  %88 = vmatpush1.bf16.msra.mxu0 0
  %89 = vmatprep.subr.bf16.mxu0 0
  %90 = vmatpush1.bf16.msra.mxu0 0
  %91 = vmatprep.subr.bf16.mxu0 0
  %92 = vmatpush1.bf16.msra.mxu0 0
  %93 = vmatprep.subr.bf16.mxu0 0
  %94 = vmatpush1.bf16.msra.mxu0 0
  %95 = vmatprep.subr.bf16.mxu0 0
  %96 = vmatpush1.bf16.msra.mxu0 0
  %97 = vmatprep.mubr.bf16.mxu0 0
  %98 = vmatmul.mubr.bf16.gmra.mrb[0].mxu0 %v63
  %v99 = vpop.f32.mrb[0].mxu0
  %v100 = vadd.f32 0.0, %v99
  %v101 = vpop.f32.mrb[0].mxu0
  %v102 = vpop.f32.mrb[0].mxu0
  %v103 = vadd.f32 0.0, %v102
  %v104 = vpop.f32.mrb[0].mxu0
  %105 = vdwg.mxu0
  %v106 = vadd.f32 %v26, %v100
  %v107 = vadd.f32 %v27, %v103
  %vm108 = vcmask 261120
  %109 = vst.msk [vmem:[#allocation2] sm:$0xff] %vm108, %v106
  %110 = vst.msk [vmem:[#allocation2 + $0x8] sm:$0xff] %vm108, %v107
  // Predicated region
  $region18: #{_lambda_.27} parent=0 // pred_check
    %p111 = pneg %p15
  $region19: #{_lambda_.27} parent=0 // pred_check_branch
    %113 = sbr.rel (%p111) target = $region21
  $region20: #{_lambda_.27} parent=0 // pred_region
    %v114 = vld [vmem:[#allocation2] sm:$0xff]
    %v115 = vld [vmem:[#allocation2 + $0x8] sm:$0xff]
    %v116 = vld [vmem:[%s2] sm:$0xff]
    %v117 = vld [vmem:[%s2 + $0x8] sm:$0xff]
    %v118 = vadd.f32 %v114, %v116
    %v119 = vadd.f32 %v115, %v117
    %120 = vst.msk [vmem:[%s3] sm:$0xff] %vm108, %v118
    %121 = vst.msk [vmem:[%s3 + $0x8] sm:$0xff] %vm108, %v119
  $region21: #{_lambda_.27} parent=0 // pred_fallthru
    _
  // Predicated region
  $region22: #{_lambda_.27} parent=0 // pred_check
    _
  $region23: #{_lambda_.27} parent=0 // pred_check_branch
    %123 = sbr.rel (0) target = $region25
  $region24: #{_lambda_.27} parent=0 // pred_region
    _
  $region25: #{_lambda_.27} parent=0 // pred_fallthru
    _
  // Predicated region
  $region26: #{_lambda_.27} parent=0 // pred_check
    _
  $region27: #{_lambda_.27} parent=0 // pred_check_branch
    %125 = sbr.rel (0) target = $region29
  $region28: #{_lambda_.27} parent=0 // pred_region
    _
  $region29: #{_lambda_.27} parent=0 // pred_fallthru
    _

// kernel: _lambda_.37
$region0: #{_lambda_.37}
  #allocation0 [shape = 'u32[]', space=smem, size = 0x4, offset = 0x4, fixed_abs, tag = 'smem constant byte address 0x4 - core index']
  #allocation1 [shape = 'u32[144,128]{1,0:T(1,128)}', space=vmem, size = 0x12000, scoped, tag = 'internal scratch']
  #allocation2 [shape = 'f32[16,128]{1,0:T(8,128)}', space=vmem, size = 0x2000, scoped, tag = 'scratch operand']
  %s0 = inlined_call_operand.vmem [shape: f32[16,32], index: 0, kind: input, shape index: {}]
  %s1 = inlined_call_operand.vmem [shape: f32[1,32], index: 1, kind: input, shape index: {}]
  %s2 = inlined_call_operand.vmem [shape: bf16[32,128], index: 2, kind: input, shape index: {}]
  %s3 = inlined_call_operand.hbm [shape: f32[16,128], index: 3, kind: output, shape index: {}]
  %s4 = sld [smem:[#allocation0]]
  $region30: #{_lambda_.37} parent=0
    _
  %s6 = ssub.s32 1, %s4
  %s7 = scalar_select 0, %s6, %s4
  $region1: #{_lambda_.37} parent=0
    #allocation3 [shape = 'u8[8192]{0}', space=vmem, size = 0x2000, scoped, tag = 'output window, operand 0, single buffered']
    #allocation4 [shape = 's32[1]{0}', space=sflag, size = 0x4, scoped, tag = 'scoped memory for _lambda_.37']
    %8 = vsyncpa [#allocation4], 0
    // Predicated region
    $region2: #{_lambda_.37} parent=1 // pred_check
      _
    $region3: #{_lambda_.37} parent=1 // pred_check_branch
      %10 = sbr.rel (0) target = $region5
    $region4: #{_lambda_.37} parent=1 // pred_region
      _
    $region5: #{_lambda_.37} parent=1 // pred_fallthru
      _
    // Predicated region
    $region6: #{_lambda_.37} parent=1 // pred_check
      _
    $region7: #{_lambda_.37} parent=1 // pred_check_branch
      %12 = sbr.rel (0) target = $region9
    $region8: #{_lambda_.37} parent=1 // pred_region
      _
    $region9: #{_lambda_.37} parent=1 // pred_fallthru
      _
    // Predicated region
    $region10: #{_lambda_.37} parent=1 // pred_check
      _
    $region11: #{_lambda_.37} parent=1 // pred_check_branch
      %14 = sbr.rel (0) target = $region13
    $region12: #{_lambda_.37} parent=1 // pred_region
      _
    $region13: #{_lambda_.37} parent=1 // pred_fallthru
      _
    %p16 = scmp.eq.s32.totalorder 0, 0
    // Predicated region
    $region14: #{_lambda_.37} parent=1 // pred_check
      %p17 = pneg %p16
    $region15: #{_lambda_.37} parent=1 // pred_check_branch
      %19 = sbr.rel (%p17) target = $region17
    $region16: #{_lambda_.37} parent=1 // pred_region
      %20 = vst [vmem:[#allocation2] sm:$0xff] 0.0
      %21 = vst [vmem:[#allocation2 + $0x8] sm:$0xff] 0.0
    $region17: #{_lambda_.37} parent=1 // pred_fallthru
      _
    %v22 = vld [vmem:[%s0] sm:$0xff]
    %v23 = vld [vmem:[%s0 + $0x8] sm:$0xff]
    %v24 = vmul.f32 %v22, %v22
    %v25 = vmul.f32 %v23, %v23
    %vm26 = vcmask 261120
    %v27 = vsel %vm26, %v24, 0.0
    %28 = vadd.xlane.f32.xlu0 %v27
    %v29 = vpop.xlane.xlu0 %28
    %v30 = vsel %vm26, %v25, 0.0
    %31 = vadd.xlane.f32.xlu0 %v30
    %v32 = vpop.xlane.xlu0 %31
    %v33 = vrcp.pop 32.0
    %v34 = vmul.f32 %v29, %v33
    %v35 = vmul.f32 %v32, %v33
    %v36 = vadd.f32 %v34, 1e-06
    %v37 = vadd.f32 %v35, 1e-06
    %v38 = vrsqrt.pop %v36
    %v39 = vrsqrt.pop %v37
    %v40 = vmul.f32 %v22, %v38
    %v41 = vmul.f32 %v23, %v39
    %v42 = vld [vmem:[%s1] sm:$0x1]
    %v44 = vlaneseq
    %v45 = vshrl.u32 %v44, 7
    %v46 = vsub.s32 0, %v45
    %v47 = vrot.slane %v42, %v46
    %v49 = vmul.f32 %v40, %v47
    %v50 = vmul.f32 %v41, %v47
    %v51 = vmul.f32 %v49, 0.17677669
    %v52 = vmul.f32 %v50, 0.17677669
    %v53 = vld [vmem:[#allocation2] sm:$0xff]
    %v54 = vld [vmem:[#allocation2 + $0x8] sm:$0xff]
    %v55 = vpack.c.bf16 %v52, %v51
    %v56 = vld [vmem:[%s2] sm:$0xf]
    %v57 = vld [vmem:[%s2 + $0x4] sm:$0xf]
    %v58 = vld [vmem:[%s2 + $0x8] sm:$0xf]
    %v59 = vld [vmem:[%s2 + $0xc] sm:$0xf]
    %v64 = vunpack.c.l.b16 %v56
    %v65 = vunpack.c.l.b16 %v57
    %v66 = vunpack.c.l.b16 %v58
    %v67 = vunpack.c.l.b16 %v59
    %v68 = vpack.c.b16 %v65, %v64
    %v69 = vpack.c.b16 %v67, %v66
    %v73 = vsel %vm26, %v55, 0
    %75 = vmatprep.subr.bf16.mxu0 0
    %76 = vmatpush1.bf16.msra.mxu0 %v68
    %77 = vmatprep.subr.bf16.mxu0 0
    %78 = vmatpush1.bf16.msra.mxu0 %v69
    %79 = vmatprep.subr.bf16.mxu0 0
    %80 = vmatpush1.bf16.msra.mxu0 0
    %81 = vmatprep.subr.bf16.mxu0 0
    %82 = vmatpush1.bf16.msra.mxu0 0
    %83 = vmatprep.subr.bf16.mxu0 0
    %84 = vmatpush1.bf16.msra.mxu0 0
    %85 = vmatprep.subr.bf16.mxu0 0
    %86 = vmatpush1.bf16.msra.mxu0 0
    %87 = vmatprep.subr.bf16.mxu0 0
    %88 = vmatpush1.bf16.msra.mxu0 0
    %89 = vmatprep.subr.bf16.mxu0 0
    %90 = vmatpush1.bf16.msra.mxu0 0
    %91 = vmatprep.subr.bf16.mxu0 0
    %92 = vmatpush1.bf16.msra.mxu0 0
    %93 = vmatprep.subr.bf16.mxu0 0
    %94 = vmatpush1.bf16.msra.mxu0 0
    %95 = vmatprep.subr.bf16.mxu0 0
    %96 = vmatpush1.bf16.msra.mxu0 0
    %97 = vmatprep.subr.bf16.mxu0 0
    %98 = vmatpush1.bf16.msra.mxu0 0
    %99 = vmatprep.subr.bf16.mxu0 0
    %100 = vmatpush1.bf16.msra.mxu0 0
    %101 = vmatprep.subr.bf16.mxu0 0
    %102 = vmatpush1.bf16.msra.mxu0 0
    %103 = vmatprep.subr.bf16.mxu0 0
    %104 = vmatpush1.bf16.msra.mxu0 0
    %105 = vmatprep.subr.bf16.mxu0 0
    %106 = vmatpush1.bf16.msra.mxu0 0
    %107 = vmatprep.mubr.bf16.mxu0 0
    %108 = vmatmul.mubr.bf16.gmra.mrb[0].mxu0 %v73
    %v109 = vpop.f32.mrb[0].mxu0
    %v110 = vadd.f32 0.0, %v109
    %v111 = vpop.f32.mrb[0].mxu0
    %v112 = vpop.f32.mrb[0].mxu0
    %v113 = vadd.f32 0.0, %v112
    %v114 = vpop.f32.mrb[0].mxu0
    %115 = vdwg.mxu0
    %v116 = vadd.f32 %v53, %v110
    %v117 = vadd.f32 %v54, %v113
    %118 = vst [vmem:[#allocation2] sm:$0xff] %v116
    %119 = vst [vmem:[#allocation2 + $0x8] sm:$0xff] %v117
    // Predicated region
    $region18: #{_lambda_.37} parent=1 // pred_check
      %p120 = pneg %p16
    $region19: #{_lambda_.37} parent=1 // pred_check_branch
      %122 = sbr.rel (%p120) target = $region21
    $region20: #{_lambda_.37} parent=1 // pred_region
      %v123 = vld [vmem:[#allocation2] sm:$0xff]
      %v124 = vld [vmem:[#allocation2 + $0x8] sm:$0xff]
      %125 = vst [vmem:[#allocation3] sm:$0xff] %v123
      %126 = vst [vmem:[#allocation3 + $0x8] sm:$0xff] %v124
    $region21: #{_lambda_.37} parent=1 // pred_fallthru
      _
    // Predicated region
    $region22: #{_lambda_.37} parent=1 // pred_check
      _
    $region23: #{_lambda_.37} parent=1 // pred_check_branch
      %128 = sbr.rel (0) target = $region25
    $region24: #{_lambda_.37} parent=1 // pred_region
      %s130 = ssub.s32 256, 256
      %131 = vsyncadd [#allocation4], %s130
      %s132 = sshll.u32 [#allocation3], 4
      %s133 = int_to_ptr.vmem [resolvable:$true] %s132
      %138 = dma.vmem_to_hbm [thread:$0]  %s133, 256, %s3, [#allocation4], 128, 128, 8
    $region25: #{_lambda_.37} parent=1 // pred_fallthru
      _
    // Predicated region
    $region26: #{_lambda_.37} parent=1 // pred_check
      _
    $region27: #{_lambda_.37} parent=1 // pred_check_branch
      %140 = sbr.rel (0) target = $region29
    $region28: #{_lambda_.37} parent=1 // pred_region
      %141 = dma.done [#allocation4], 256
    $region29: #{_lambda_.37} parent=1 // pred_fallthru
      _
    %142 = vsyncpa [#allocation4], 1

</llo_original>
